<compile_context>
chip_gen: v7x
topology: tpu7x:2x2x1
jax: 0.10.0
libtpu: 0.0.40
codegen_flags: <defaults>
</compile_context>

<pallas_src>
import functools

import jax
import jax.numpy as jnp
from jax import lax
from jax.experimental import pallas as pl
from jax.experimental.pallas import tpu as pltpu

D_MODEL = 32
N_HEADS = 4
D_FF = 4 * D_MODEL  # 128
EPS = 1e-5


def _decoder_layer_kernel(x_ref, cross_ref, w_in_ref, w2_ref, vec_ref, o_ref,
                          *, B, L, S, D, H, dh, F):
    f32 = jnp.float32
    x2d = x_ref[...].reshape(B * L, D).astype(f32)        # (B*L, D)
    cr2d = cross_ref[...].reshape(B * S, D).astype(f32)   # (B*S, D)
    scale = 1.0 / float(dh) ** 0.5

    # ---- static column segments of the packed weight blob -------------------
    # layout: [ W1 | Wq_s Wk_s Wv_s | Wo_s | Wk_c Wv_c | Wq_c | Wo_c ]
    # ordered so no segment crosses a 128-lane tile boundary (F=128, D=32).
    w1      = w_in_ref[:, 0:F]                       # (D, F)
    w_qkv_s = w_in_ref[:, F:F + 3 * D]               # (D, 3D)
    wo_s    = w_in_ref[:, F + 3 * D:F + 4 * D]       # (D, D)
    w_kv_c  = w_in_ref[:, F + 4 * D:F + 6 * D]       # (D, 2D)
    w_q_c   = w_in_ref[:, F + 6 * D:F + 7 * D]       # (D, D)
    wo_c    = w_in_ref[:, F + 7 * D:F + 8 * D]       # (D, D)
    w2 = w2_ref[...]                                 # (F, D)

    # ---- bias / LayerNorm rows (moved out of the old (D+1)-row weight blob) --
    b1      = vec_ref[0:1, 0:F]
    b_qkv_s = vec_ref[1:2, 0:3 * D]
    b_q_c   = vec_ref[2:3, 0:D]
    b_kv_c  = vec_ref[3:4, 0:2 * D]
    bo_s    = vec_ref[4:5, 0:D]
    bo_c    = vec_ref[5:6, 0:D]
    b2      = vec_ref[6:7, 0:D]
    ln_g1, ln_b1 = vec_ref[7:8, 0:D],   vec_ref[8:9, 0:D]
    ln_g2, ln_b2 = vec_ref[9:10, 0:D],  vec_ref[10:11, 0:D]
    ln_g3, ln_b3 = vec_ref[11:12, 0:D], vec_ref[12:13, 0:D]

    def layer_norm(v, g, b):
        mu = jnp.mean(v, axis=-1, keepdims=True)
        c = v - mu
        var = jnp.mean(c * c, axis=-1, keepdims=True)
        return c * lax.rsqrt(var + EPS) * g + b

    def mha(q2d, k2d, v2d, wo, bo, Lq, Lk):
        # q2d: (B*Lq, D), k2d/v2d: (B*Lk, D), already projected.
        q3 = q2d.reshape(B, Lq, D)
        k3 = k2d.reshape(B, Lk, D)
        v3 = v2d.reshape(B, Lk, D)
        # Per-head scores (K = dh is inherent); batch B stays inside the einsum,
        # only the H=4 head loop is statically unrolled.  Head scores are stacked
        # along the sublane axis so softmax runs ONCE over all (b, h, q) rows.
        s = jnp.concatenate(
            [jnp.einsum('bqe,bke->bqk',
                        q3[:, :, h * dh:(h + 1) * dh],
                        k3[:, :, h * dh:(h + 1) * dh],
                        preferred_element_type=f32)
             for h in range(H)], axis=1) * scale            # (B, H*Lq, Lk)
        s = s - jnp.max(s, axis=-1, keepdims=True)
        p = jnp.exp(s)
        p = p / jnp.sum(p, axis=-1, keepdims=True)           # exact divide
        # PV per head; heads merged back by lane concatenation (== concat(heads)).
        ctx = jnp.concatenate(
            [jnp.einsum('bqk,bke->bqe',
                        p[:, h * Lq:(h + 1) * Lq, :],
                        v3[:, :, h * dh:(h + 1) * dh],
                        preferred_element_type=f32)
             for h in range(H)], axis=-1)                    # (B, Lq, D)
        # head-merged output projection: one (B*Lq, D) @ (D, D) matmul.
        return jnp.dot(ctx.reshape(B * Lq, D), wo,
                       preferred_element_type=f32) + bo

    # ---- self attention + residual + norm1 -----------------------------------
    qkv = jnp.dot(x2d, w_qkv_s, preferred_element_type=f32) + b_qkv_s   # (B*L, 3D)
    sa = mha(qkv[:, 0:D], qkv[:, D:2 * D], qkv[:, 2 * D:3 * D],
             wo_s, bo_s, L, L)
    x1 = layer_norm(x2d + sa, ln_g1, ln_b1)                             # (B*L, D)

    # ---- cross attention + residual + norm2 -----------------------------------
    q_c = jnp.dot(x1, w_q_c, preferred_element_type=f32) + b_q_c        # (B*L, D)
    kv_c = jnp.dot(cr2d, w_kv_c, preferred_element_type=f32) + b_kv_c   # (B*S, 2D)
    ca = mha(q_c, kv_c[:, 0:D], kv_c[:, D:2 * D], wo_c, bo_c, L, S)
    x2 = layer_norm(x1 + ca, ln_g2, ln_b2)

    # ---- position-wise FFN (Conv1d k=1 == matmul) + norm3 ---------------------
    y = jnp.maximum(jnp.dot(x2, w1, preferred_element_type=f32) + b1, 0.0)
    y = jnp.dot(y, w2, preferred_element_type=f32) + b2
    out = layer_norm(x2 + y, ln_g3, ln_b3)
    o_ref[...] = out.reshape(B, L, D).astype(o_ref.dtype)


def pack_params(params):
    """One-time parameter packing (hoisted out of the per-call path)."""
    f32 = jnp.float32
    D = params['w_self'].shape[-1]
    F = params['w1'].shape[-1]
    w_s = params['w_self'].astype(f32)   # (4, D, D): Wq, Wk, Wv, Wo
    b_s = params['b_self'].astype(f32)   # (4, D)
    w_c = params['w_cross'].astype(f32)
    b_c = params['b_cross'].astype(f32)

    # Column-packed 2D weight blob; segment order chosen so no matmul operand
    # slice crosses a 128-lane tile boundary:
    #   [ W1 | Wq_s Wk_s Wv_s | Wo_s | Wk_c Wv_c | Wq_c | Wo_c ]
    w_in = jnp.concatenate(
        [params['w1'].astype(f32),
         w_s[0], w_s[1], w_s[2], w_s[3],
         w_c[1], w_c[2], w_c[0], w_c[3]], axis=1)           # (D, F + 8*D)

    W = max(F, 3 * D)
    W = ((W + 127) // 128) * 128                             # lane-pad to 128

    def row(v):
        v = jnp.asarray(v, f32).reshape(-1)
        return jnp.pad(v, (0, W - v.shape[0])).reshape(1, W)

    vec = jnp.concatenate([
        row(params['b1']),
        row(jnp.concatenate([b_s[0], b_s[1], b_s[2]])),
        row(b_c[0]),
        row(jnp.concatenate([b_c[1], b_c[2]])),
        row(b_s[3]),
        row(b_c[3]),
        row(params['b2']),
        row(params['ln_g'][0]), row(params['ln_b'][0]),
        row(params['ln_g'][1]), row(params['ln_b'][1]),
        row(params['ln_g'][2]), row(params['ln_b'][2]),
    ], axis=0)
    vec = jnp.pad(vec, ((0, (-vec.shape[0]) % 8), (0, 0)))   # sublane-pad rows
    return {'w_in': w_in, 'w2': params['w2'].astype(f32), 'vec': vec}


def decoder_layer(x, cross, packed):
    B, L, D = x.shape
    S = cross.shape[1]
    H = N_HEADS
    dh = D // H
    w_in, w2, vec = packed['w_in'], packed['w2'], packed['vec']
    F = w2.shape[0]

    kernel = functools.partial(_decoder_layer_kernel,
                               B=B, L=L, S=S, D=D, H=H, dh=dh, F=F)
    return pl.pallas_call(
        kernel,
        out_shape=jax.ShapeDtypeStruct((B, L, D), x.dtype),
        grid=(1,),
        in_specs=[
            pl.BlockSpec((B, L, D), lambda i: (0, 0, 0)),
            pl.BlockSpec((B, S, D), lambda i: (0, 0, 0)),
            pl.BlockSpec(w_in.shape, lambda i: (0, 0)),
            pl.BlockSpec(w2.shape, lambda i: (0, 0)),
            pl.BlockSpec(vec.shape, lambda i: (0, 0)),
        ],
        out_specs=pl.BlockSpec((B, L, D), lambda i: (0, 0, 0)),
        # Single grid step; on v7x a grid=(B,) "parallel" axis would engage both
        # TensorCores (pure overhead on v5e/v6e at this size).
        compiler_params=pltpu.CompilerParams(dimension_semantics=("arbitrary",)),
    )(x, cross, w_in, w2, vec)


def ref_forward(x, cross, p):
    """Pure-JAX reference for correctness checking."""
    def ln(v, g, b):
        mu = v.mean(-1, keepdims=True)
        var = ((v - mu) ** 2).mean(-1, keepdims=True)
        return (v - mu) / jnp.sqrt(var + EPS) * g + b

    def mha(q_in, kv_in, w, bias):
        q = q_in @ w[0] + bias[0]
        k = kv_in @ w[1] + bias[1]
        v = kv_in @ w[2] + bias[2]
        B_, Lq, D = q.shape
        Lk = k.shape[1]
        H, dh = N_HEADS, D // N_HEADS
        qh = q.reshape(B_, Lq, H, dh)
        kh = k.reshape(B_, Lk, H, dh)
        vh = v.reshape(B_, Lk, H, dh)
        s = jnp.einsum('bqhd,bkhd->bhqk', qh, kh) / jnp.sqrt(dh)
        pr = jax.nn.softmax(s, axis=-1)
        o = jnp.einsum('bhqk,bkhd->bqhd', pr, vh).reshape(B_, Lq, D)
        return o @ w[3] + bias[3]

    x1 = ln(x + mha(x, x, p['w_self'], p['b_self']), p['ln_g'][0], p['ln_b'][0])
    x2 = ln(x1 + mha(x1, cross, p['w_cross'], p['b_cross']), p['ln_g'][1], p['ln_b'][1])
    y = jax.nn.relu(x2 @ p['w1'] + p['b1'])
    y = y @ p['w2'] + p['b2']
    return ln(x2 + y, p['ln_g'][2], p['ln_b'][2])


if __name__ == "__main__":
    B, L, S = 2, 8, 8
    key = jax.random.PRNGKey(0)
    ks = jax.random.split(key, 12)
    sc = 0.05
    params = {
        'w_self':  jax.random.normal(ks[0], (4, D_MODEL, D_MODEL), jnp.float32) * sc,
        'b_self':  jax.random.normal(ks[1], (4, D_MODEL), jnp.float32) * sc,
        'w_cross': jax.random.normal(ks[2], (4, D_MODEL, D_MODEL), jnp.float32) * sc,
        'b_cross': jax.random.normal(ks[3], (4, D_MODEL), jnp.float32) * sc,
        'ln_g':    jnp.ones((3, D_MODEL), jnp.float32),
        'ln_b':    jnp.zeros((3, D_MODEL), jnp.float32),
        'w1':      jax.random.normal(ks[4], (D_MODEL, D_FF), jnp.float32) * sc,
        'b1':      jax.random.normal(ks[5], (1, D_FF), jnp.float32) * sc,
        'w2':      jax.random.normal(ks[6], (D_FF, D_MODEL), jnp.float32) * sc,
        'b2':      jax.random.normal(ks[7], (1, D_MODEL), jnp.float32) * sc,
    }
    x = jax.random.normal(ks[8], (B, L, D_MODEL), jnp.float32)
    cross = jax.random.normal(ks[9], (B, S, D_MODEL), jnp.float32)

    packed = jax.block_until_ready(pack_params(params))   # one-time init packing

    out = jax.block_until_ready(decoder_layer(x, cross, packed))
    ref = jax.block_until_ready(ref_forward(x, cross, params))
    assert out.shape == (B, L, D_MODEL)
    # Softmax uses an exact divide now; the tolerance covers only f32-matmul
    # precision-mode differences (MXU bf16-pass accumulation order) between the
    # Pallas kernel and the XLA reference einsums.
    assert jnp.allclose(out, ref, atol=5e-3, rtol=5e-3), "mismatch vs JAX reference"
    print("KERNEL_OK")
</pallas_src>

<mosaic_0001>
module attributes {stable_mosaic.version = 11 : i64} {
  func.func @_decoder_layer_kernel(%arg0: i32, %arg1: memref<2x8x32xf32, #tpu.memory_space<vmem>>, %arg2: memref<2x8x32xf32, #tpu.memory_space<vmem>>, %arg3: memref<32x384xf32, #tpu.memory_space<vmem>>, %arg4: memref<128x32xf32, #tpu.memory_space<vmem>>, %arg5: memref<16x128xf32, #tpu.memory_space<vmem>>, %arg6: memref<2x8x32xf32, #tpu.memory_space<vmem>>) attributes {dimension_semantics = [#tpu.dimension_semantics<arbitrary>], iteration_bounds = array<i64: 1>, scalar_prefetch = 0 : i64, scratch_operands = 0 : i64, tpu.core_type = #tpu.core_type<tc>, window_params = [{pipeline_mode = #tpu.pipeline_mode<synchronous>, transform_indices = @transform_0, window_bounds = array<i64: 2, 8, 32>}, {pipeline_mode = #tpu.pipeline_mode<synchronous>, transform_indices = @transform_1, window_bounds = array<i64: 2, 8, 32>}, {pipeline_mode = #tpu.pipeline_mode<synchronous>, transform_indices = @transform_2, window_bounds = array<i64: 32, 384>}, {pipeline_mode = #tpu.pipeline_mode<synchronous>, transform_indices = @transform_3, window_bounds = array<i64: 128, 32>}, {pipeline_mode = #tpu.pipeline_mode<synchronous>, transform_indices = @transform_4, window_bounds = array<i64: 16, 128>}, {pipeline_mode = #tpu.pipeline_mode<synchronous>, transform_indices = @transform_5, window_bounds = array<i64: 2, 8, 32>}]} {
    %c0 = arith.constant 0 : index
    %c0_0 = arith.constant 0 : index
    %c0_1 = arith.constant 0 : index
    %0 = vector.load %arg1[%c0, %c0_0, %c0_1] : memref<2x8x32xf32, #tpu.memory_space<vmem>>, vector<2x8x32xf32>
    %1 = vector.shape_cast %0 : vector<2x8x32xf32> to vector<16x32xf32>
    %c0_2 = arith.constant 0 : index
    %c0_3 = arith.constant 0 : index
    %c0_4 = arith.constant 0 : index
    %2 = vector.load %arg2[%c0_2, %c0_3, %c0_4] : memref<2x8x32xf32, #tpu.memory_space<vmem>>, vector<2x8x32xf32>
    %3 = vector.shape_cast %2 : vector<2x8x32xf32> to vector<16x32xf32>
    %c0_5 = arith.constant 0 : index
    %c0_6 = arith.constant 0 : index
    %4 = vector.load %arg3[%c0_5, %c0_6] : memref<32x384xf32, #tpu.memory_space<vmem>>, vector<32x128xf32>
    %c0_7 = arith.constant 0 : index
    %c128 = arith.constant 128 : index
    %5 = vector.load %arg3[%c0_7, %c128] : memref<32x384xf32, #tpu.memory_space<vmem>>, vector<32x96xf32>
    %c0_8 = arith.constant 0 : index
    %c224 = arith.constant 224 : index
    %6 = vector.load %arg3[%c0_8, %c224] : memref<32x384xf32, #tpu.memory_space<vmem>>, vector<32x32xf32>
    %c0_9 = arith.constant 0 : index
    %c256 = arith.constant 256 : index
    %7 = vector.load %arg3[%c0_9, %c256] : memref<32x384xf32, #tpu.memory_space<vmem>>, vector<32x64xf32>
    %c0_10 = arith.constant 0 : index
    %c320 = arith.constant 320 : index
    %8 = vector.load %arg3[%c0_10, %c320] : memref<32x384xf32, #tpu.memory_space<vmem>>, vector<32x32xf32>
    %c0_11 = arith.constant 0 : index
    %c352 = arith.constant 352 : index
    %9 = vector.load %arg3[%c0_11, %c352] : memref<32x384xf32, #tpu.memory_space<vmem>>, vector<32x32xf32>
    %c0_12 = arith.constant 0 : index
    %c0_13 = arith.constant 0 : index
    %10 = vector.load %arg4[%c0_12, %c0_13] : memref<128x32xf32, #tpu.memory_space<vmem>>, vector<128x32xf32>
    %c0_14 = arith.constant 0 : index
    %c0_15 = arith.constant 0 : index
    %11 = vector.load %arg5[%c0_14, %c0_15] : memref<16x128xf32, #tpu.memory_space<vmem>>, vector<1x128xf32>
    %c1 = arith.constant 1 : index
    %c0_16 = arith.constant 0 : index
    %12 = vector.load %arg5[%c1, %c0_16] : memref<16x128xf32, #tpu.memory_space<vmem>>, vector<1x96xf32>
    %c2 = arith.constant 2 : index
    %c0_17 = arith.constant 0 : index
    %13 = vector.load %arg5[%c2, %c0_17] : memref<16x128xf32, #tpu.memory_space<vmem>>, vector<1x32xf32>
    %c3 = arith.constant 3 : index
    %c0_18 = arith.constant 0 : index
    %14 = vector.load %arg5[%c3, %c0_18] : memref<16x128xf32, #tpu.memory_space<vmem>>, vector<1x64xf32>
    %c4 = arith.constant 4 : index
    %c0_19 = arith.constant 0 : index
    %15 = vector.load %arg5[%c4, %c0_19] : memref<16x128xf32, #tpu.memory_space<vmem>>, vector<1x32xf32>
    %c5 = arith.constant 5 : index
    %c0_20 = arith.constant 0 : index
    %16 = vector.load %arg5[%c5, %c0_20] : memref<16x128xf32, #tpu.memory_space<vmem>>, vector<1x32xf32>
    %c6 = arith.constant 6 : index
    %c0_21 = arith.constant 0 : index
    %17 = vector.load %arg5[%c6, %c0_21] : memref<16x128xf32, #tpu.memory_space<vmem>>, vector<1x32xf32>
    %c7 = arith.constant 7 : index
    %c0_22 = arith.constant 0 : index
    %18 = vector.load %arg5[%c7, %c0_22] : memref<16x128xf32, #tpu.memory_space<vmem>>, vector<1x32xf32>
    %c8 = arith.constant 8 : index
    %c0_23 = arith.constant 0 : index
    %19 = vector.load %arg5[%c8, %c0_23] : memref<16x128xf32, #tpu.memory_space<vmem>>, vector<1x32xf32>
    %c9 = arith.constant 9 : index
    %c0_24 = arith.constant 0 : index
    %20 = vector.load %arg5[%c9, %c0_24] : memref<16x128xf32, #tpu.memory_space<vmem>>, vector<1x32xf32>
    %c10 = arith.constant 10 : index
    %c0_25 = arith.constant 0 : index
    %21 = vector.load %arg5[%c10, %c0_25] : memref<16x128xf32, #tpu.memory_space<vmem>>, vector<1x32xf32>
    %c11 = arith.constant 11 : index
    %c0_26 = arith.constant 0 : index
    %22 = vector.load %arg5[%c11, %c0_26] : memref<16x128xf32, #tpu.memory_space<vmem>>, vector<1x32xf32>
    %c12 = arith.constant 12 : index
    %c0_27 = arith.constant 0 : index
    %23 = vector.load %arg5[%c12, %c0_27] : memref<16x128xf32, #tpu.memory_space<vmem>>, vector<1x32xf32>
    %cst = arith.constant dense<0.000000e+00> : vector<16x96xf32>
    %24 = tpu.matmul %1, %5, %cst {dimension_numbers = #tpu.dot_dimension_numbers<[1], [0], [0], [1], [0, 0, 1, 1], [], []>} : vector<16x32xf32>, vector<32x96xf32>, vector<16x96xf32> -> vector<16x96xf32>
    %25 = vector.broadcast %12 : vector<1x96xf32> to vector<16x96xf32>
    %26 = arith.addf %24, %25 : vector<16x96xf32>
    %27 = vector.extract_strided_slice %26 {offsets = [0, 0], sizes = [16, 32], strides = [1, 1]} : vector<16x96xf32> to vector<16x32xf32>
    %28 = vector.extract_strided_slice %26 {offsets = [0, 32], sizes = [16, 32], strides = [1, 1]} : vector<16x96xf32> to vector<16x32xf32>
    %29 = vector.extract_strided_slice %26 {offsets = [0, 64], sizes = [16, 32], strides = [1, 1]} : vector<16x96xf32> to vector<16x32xf32>
    %30 = vector.shape_cast %27 : vector<16x32xf32> to vector<2x8x32xf32>
    %31 = vector.shape_cast %28 : vector<16x32xf32> to vector<2x8x32xf32>
    %32 = vector.shape_cast %29 : vector<16x32xf32> to vector<2x8x32xf32>
    %33 = vector.extract_strided_slice %30 {offsets = [0, 0, 0], sizes = [2, 8, 8], strides = [1, 1, 1]} : vector<2x8x32xf32> to vector<2x8x8xf32>
    %34 = vector.extract_strided_slice %31 {offsets = [0, 0, 0], sizes = [2, 8, 8], strides = [1, 1, 1]} : vector<2x8x32xf32> to vector<2x8x8xf32>
    "tpu.trace_start"() <{level = 10 : i32, message = "bqe,bke->bqk"}> : () -> ()
    %cst_28 = arith.constant dense<0.000000e+00> : vector<2x8x8xf32>
    %35 = tpu.matmul %33, %34, %cst_28 {dimension_numbers = #tpu.dot_dimension_numbers<[2], [2], [1], [1], [0, 0, 0, 1, 1, 1], [0], [0]>} : vector<2x8x8xf32>, vector<2x8x8xf32>, vector<2x8x8xf32> -> vector<2x8x8xf32>
    "tpu.trace_stop"() : () -> ()
    %36 = vector.extract_strided_slice %30 {offsets = [0, 0, 8], sizes = [2, 8, 8], strides = [1, 1, 1]} : vector<2x8x32xf32> to vector<2x8x8xf32>
    %37 = vector.extract_strided_slice %31 {offsets = [0, 0, 8], sizes = [2, 8, 8], strides = [1, 1, 1]} : vector<2x8x32xf32> to vector<2x8x8xf32>
    "tpu.trace_start"() <{level = 10 : i32, message = "bqe,bke->bqk"}> : () -> ()
    %cst_29 = arith.constant dense<0.000000e+00> : vector<2x8x8xf32>
    %38 = tpu.matmul %36, %37, %cst_29 {dimension_numbers = #tpu.dot_dimension_numbers<[2], [2], [1], [1], [0, 0, 0, 1, 1, 1], [0], [0]>} : vector<2x8x8xf32>, vector<2x8x8xf32>, vector<2x8x8xf32> -> vector<2x8x8xf32>
    "tpu.trace_stop"() : () -> ()
    %39 = vector.extract_strided_slice %30 {offsets = [0, 0, 16], sizes = [2, 8, 8], strides = [1, 1, 1]} : vector<2x8x32xf32> to vector<2x8x8xf32>
    %40 = vector.extract_strided_slice %31 {offsets = [0, 0, 16], sizes = [2, 8, 8], strides = [1, 1, 1]} : vector<2x8x32xf32> to vector<2x8x8xf32>
    "tpu.trace_start"() <{level = 10 : i32, message = "bqe,bke->bqk"}> : () -> ()
    %cst_30 = arith.constant dense<0.000000e+00> : vector<2x8x8xf32>
    %41 = tpu.matmul %39, %40, %cst_30 {dimension_numbers = #tpu.dot_dimension_numbers<[2], [2], [1], [1], [0, 0, 0, 1, 1, 1], [0], [0]>} : vector<2x8x8xf32>, vector<2x8x8xf32>, vector<2x8x8xf32> -> vector<2x8x8xf32>
    "tpu.trace_stop"() : () -> ()
    %42 = vector.extract_strided_slice %30 {offsets = [0, 0, 24], sizes = [2, 8, 8], strides = [1, 1, 1]} : vector<2x8x32xf32> to vector<2x8x8xf32>
    %43 = vector.extract_strided_slice %31 {offsets = [0, 0, 24], sizes = [2, 8, 8], strides = [1, 1, 1]} : vector<2x8x32xf32> to vector<2x8x8xf32>
    "tpu.trace_start"() <{level = 10 : i32, message = "bqe,bke->bqk"}> : () -> ()
    %cst_31 = arith.constant dense<0.000000e+00> : vector<2x8x8xf32>
    %44 = tpu.matmul %42, %43, %cst_31 {dimension_numbers = #tpu.dot_dimension_numbers<[2], [2], [1], [1], [0, 0, 0, 1, 1, 1], [0], [0]>} : vector<2x8x8xf32>, vector<2x8x8xf32>, vector<2x8x8xf32> -> vector<2x8x8xf32>
    "tpu.trace_stop"() : () -> ()
    %45 = tpu.concatenate %35, %38, %41, %44 in 1 : vector<2x8x8xf32>, vector<2x8x8xf32>, vector<2x8x8xf32>, vector<2x8x8xf32> -> vector<2x32x8xf32>
    %cst_32 = arith.constant 0.353553385 : f32
    %46 = vector.broadcast %cst_32 : f32 to vector<2x32x8xf32>
    %47 = arith.mulf %45, %46 : vector<2x32x8xf32>
    %cst_33 = arith.constant dense<0xFF800000> : vector<2x32xf32>
    %48 = vector.multi_reduction <maximumf>, %47, %cst_33 [2] : vector<2x32x8xf32> to vector<2x32xf32>
    %49 = vector.shape_cast %48 : vector<2x32xf32> to vector<2x32x1xf32>
    %50 = vector.broadcast %49 : vector<2x32x1xf32> to vector<2x32x8xf32>
    %51 = arith.subf %47, %50 : vector<2x32x8xf32>
    %52 = math.exp %51 : vector<2x32x8xf32>
    %cst_34 = arith.constant dense<0.000000e+00> : vector<2x32xf32>
    %53 = vector.multi_reduction <add>, %52, %cst_34 [2] : vector<2x32x8xf32> to vector<2x32xf32>
    %54 = vector.shape_cast %53 : vector<2x32xf32> to vector<2x32x1xf32>
    %55 = vector.broadcast %54 : vector<2x32x1xf32> to vector<2x32x8xf32>
    %56 = arith.divf %52, %55 : vector<2x32x8xf32>
    %57 = vector.extract_strided_slice %56 {offsets = [0, 0, 0], sizes = [2, 8, 8], strides = [1, 1, 1]} : vector<2x32x8xf32> to vector<2x8x8xf32>
    %58 = vector.extract_strided_slice %32 {offsets = [0, 0, 0], sizes = [2, 8, 8], strides = [1, 1, 1]} : vector<2x8x32xf32> to vector<2x8x8xf32>
    "tpu.trace_start"() <{level = 10 : i32, message = "bqk,bke->bqe"}> : () -> ()
    %cst_35 = arith.constant dense<0.000000e+00> : vector<2x8x8xf32>
    %59 = tpu.matmul %57, %58, %cst_35 {dimension_numbers = #tpu.dot_dimension_numbers<[2], [1], [1], [2], [0, 0, 0, 1, 1, 2], [0], [0]>} : vector<2x8x8xf32>, vector<2x8x8xf32>, vector<2x8x8xf32> -> vector<2x8x8xf32>
    "tpu.trace_stop"() : () -> ()
    %60 = vector.extract_strided_slice %56 {offsets = [0, 8, 0], sizes = [2, 8, 8], strides = [1, 1, 1]} : vector<2x32x8xf32> to vector<2x8x8xf32>
    %61 = vector.extract_strided_slice %32 {offsets = [0, 0, 8], sizes = [2, 8, 8], strides = [1, 1, 1]} : vector<2x8x32xf32> to vector<2x8x8xf32>
    "tpu.trace_start"() <{level = 10 : i32, message = "bqk,bke->bqe"}> : () -> ()
    %cst_36 = arith.constant dense<0.000000e+00> : vector<2x8x8xf32>
    %62 = tpu.matmul %60, %61, %cst_36 {dimension_numbers = #tpu.dot_dimension_numbers<[2], [1], [1], [2], [0, 0, 0, 1, 1, 2], [0], [0]>} : vector<2x8x8xf32>, vector<2x8x8xf32>, vector<2x8x8xf32> -> vector<2x8x8xf32>
    "tpu.trace_stop"() : () -> ()
    %63 = vector.extract_strided_slice %56 {offsets = [0, 16, 0], sizes = [2, 8, 8], strides = [1, 1, 1]} : vector<2x32x8xf32> to vector<2x8x8xf32>
    %64 = vector.extract_strided_slice %32 {offsets = [0, 0, 16], sizes = [2, 8, 8], strides = [1, 1, 1]} : vector<2x8x32xf32> to vector<2x8x8xf32>
    "tpu.trace_start"() <{level = 10 : i32, message = "bqk,bke->bqe"}> : () -> ()
    %cst_37 = arith.constant dense<0.000000e+00> : vector<2x8x8xf32>
    %65 = tpu.matmul %63, %64, %cst_37 {dimension_numbers = #tpu.dot_dimension_numbers<[2], [1], [1], [2], [0, 0, 0, 1, 1, 2], [0], [0]>} : vector<2x8x8xf32>, vector<2x8x8xf32>, vector<2x8x8xf32> -> vector<2x8x8xf32>
    "tpu.trace_stop"() : () -> ()
    %66 = vector.extract_strided_slice %56 {offsets = [0, 24, 0], sizes = [2, 8, 8], strides = [1, 1, 1]} : vector<2x32x8xf32> to vector<2x8x8xf32>
    %67 = vector.extract_strided_slice %32 {offsets = [0, 0, 24], sizes = [2, 8, 8], strides = [1, 1, 1]} : vector<2x8x32xf32> to vector<2x8x8xf32>
    "tpu.trace_start"() <{level = 10 : i32, message = "bqk,bke->bqe"}> : () -> ()
    %cst_38 = arith.constant dense<0.000000e+00> : vector<2x8x8xf32>
    %68 = tpu.matmul %66, %67, %cst_38 {dimension_numbers = #tpu.dot_dimension_numbers<[2], [1], [1], [2], [0, 0, 0, 1, 1, 2], [0], [0]>} : vector<2x8x8xf32>, vector<2x8x8xf32>, vector<2x8x8xf32> -> vector<2x8x8xf32>
    "tpu.trace_stop"() : () -> ()
    %69 = tpu.concatenate %59, %62, %65, %68 in 2 : vector<2x8x8xf32>, vector<2x8x8xf32>, vector<2x8x8xf32>, vector<2x8x8xf32> -> vector<2x8x32xf32>
    %70 = vector.shape_cast %69 : vector<2x8x32xf32> to vector<16x32xf32>
    %cst_39 = arith.constant dense<0.000000e+00> : vector<16x32xf32>
    %71 = tpu.matmul %70, %6, %cst_39 {dimension_numbers = #tpu.dot_dimension_numbers<[1], [0], [0], [1], [0, 0, 1, 1], [], []>} : vector<16x32xf32>, vector<32x32xf32>, vector<16x32xf32> -> vector<16x32xf32>
    %72 = vector.broadcast %15 : vector<1x32xf32> to vector<16x32xf32>
    %73 = arith.addf %71, %72 : vector<16x32xf32>
    %74 = arith.addf %1, %73 : vector<16x32xf32>
    %cst_40 = arith.constant dense<0.000000e+00> : vector<16xf32>
    %75 = vector.multi_reduction <add>, %74, %cst_40 [1] : vector<16x32xf32> to vector<16xf32>
    %76 = vector.shape_cast %75 : vector<16xf32> to vector<16x1xf32>
    %cst_41 = arith.constant 3.200000e+01 : f32
    %77 = vector.broadcast %cst_41 : f32 to vector<16x1xf32>
    %78 = arith.divf %76, %77 : vector<16x1xf32>
    %79 = vector.broadcast %78 : vector<16x1xf32> to vector<16x32xf32>
    %80 = arith.subf %74, %79 : vector<16x32xf32>
    %81 = arith.mulf %80, %80 : vector<16x32xf32>
    %cst_42 = arith.constant dense<0.000000e+00> : vector<16xf32>
    %82 = vector.multi_reduction <add>, %81, %cst_42 [1] : vector<16x32xf32> to vector<16xf32>
    %83 = vector.shape_cast %82 : vector<16xf32> to vector<16x1xf32>
    %cst_43 = arith.constant 3.200000e+01 : f32
    %84 = vector.broadcast %cst_43 : f32 to vector<16x1xf32>
    %85 = arith.divf %83, %84 : vector<16x1xf32>
    %cst_44 = arith.constant 9.99999974E-6 : f32
    %86 = vector.broadcast %cst_44 : f32 to vector<16x1xf32>
    %87 = arith.addf %85, %86 : vector<16x1xf32>
    %88 = math.rsqrt %87 : vector<16x1xf32>
    %89 = vector.broadcast %88 : vector<16x1xf32> to vector<16x32xf32>
    %90 = arith.mulf %80, %89 : vector<16x32xf32>
    %91 = vector.broadcast %18 : vector<1x32xf32> to vector<16x32xf32>
    %92 = arith.mulf %90, %91 : vector<16x32xf32>
    %93 = vector.broadcast %19 : vector<1x32xf32> to vector<16x32xf32>
    %94 = arith.addf %92, %93 : vector<16x32xf32>
    %cst_45 = arith.constant dense<0.000000e+00> : vector<16x32xf32>
    %95 = tpu.matmul %94, %8, %cst_45 {dimension_numbers = #tpu.dot_dimension_numbers<[1], [0], [0], [1], [0, 0, 1, 1], [], []>} : vector<16x32xf32>, vector<32x32xf32>, vector<16x32xf32> -> vector<16x32xf32>
    %96 = vector.broadcast %13 : vector<1x32xf32> to vector<16x32xf32>
    %97 = arith.addf %95, %96 : vector<16x32xf32>
    %cst_46 = arith.constant dense<0.000000e+00> : vector<16x64xf32>
    %98 = tpu.matmul %3, %7, %cst_46 {dimension_numbers = #tpu.dot_dimension_numbers<[1], [0], [0], [1], [0, 0, 1, 1], [], []>} : vector<16x32xf32>, vector<32x64xf32>, vector<16x64xf32> -> vector<16x64xf32>
    %99 = vector.broadcast %14 : vector<1x64xf32> to vector<16x64xf32>
    %100 = arith.addf %98, %99 : vector<16x64xf32>
    %101 = vector.extract_strided_slice %100 {offsets = [0, 0], sizes = [16, 32], strides = [1, 1]} : vector<16x64xf32> to vector<16x32xf32>
    %102 = vector.extract_strided_slice %100 {offsets = [0, 32], sizes = [16, 32], strides = [1, 1]} : vector<16x64xf32> to vector<16x32xf32>
    %103 = vector.shape_cast %97 : vector<16x32xf32> to vector<2x8x32xf32>
    %104 = vector.shape_cast %101 : vector<16x32xf32> to vector<2x8x32xf32>
    %105 = vector.shape_cast %102 : vector<16x32xf32> to vector<2x8x32xf32>
    %106 = vector.extract_strided_slice %103 {offsets = [0, 0, 0], sizes = [2, 8, 8], strides = [1, 1, 1]} : vector<2x8x32xf32> to vector<2x8x8xf32>
    %107 = vector.extract_strided_slice %104 {offsets = [0, 0, 0], sizes = [2, 8, 8], strides = [1, 1, 1]} : vector<2x8x32xf32> to vector<2x8x8xf32>
    "tpu.trace_start"() <{level = 10 : i32, message = "bqe,bke->bqk"}> : () -> ()
    %cst_47 = arith.constant dense<0.000000e+00> : vector<2x8x8xf32>
    %108 = tpu.matmul %106, %107, %cst_47 {dimension_numbers = #tpu.dot_dimension_numbers<[2], [2], [1], [1], [0, 0, 0, 1, 1, 1], [0], [0]>} : vector<2x8x8xf32>, vector<2x8x8xf32>, vector<2x8x8xf32> -> vector<2x8x8xf32>
    "tpu.trace_stop"() : () -> ()
    %109 = vector.extract_strided_slice %103 {offsets = [0, 0, 8], sizes = [2, 8, 8], strides = [1, 1, 1]} : vector<2x8x32xf32> to vector<2x8x8xf32>
    %110 = vector.extract_strided_slice %104 {offsets = [0, 0, 8], sizes = [2, 8, 8], strides = [1, 1, 1]} : vector<2x8x32xf32> to vector<2x8x8xf32>
    "tpu.trace_start"() <{level = 10 : i32, message = "bqe,bke->bqk"}> : () -> ()
    %cst_48 = arith.constant dense<0.000000e+00> : vector<2x8x8xf32>
    %111 = tpu.matmul %109, %110, %cst_48 {dimension_numbers = #tpu.dot_dimension_numbers<[2], [2], [1], [1], [0, 0, 0, 1, 1, 1], [0], [0]>} : vector<2x8x8xf32>, vector<2x8x8xf32>, vector<2x8x8xf32> -> vector<2x8x8xf32>
    "tpu.trace_stop"() : () -> ()
    %112 = vector.extract_strided_slice %103 {offsets = [0, 0, 16], sizes = [2, 8, 8], strides = [1, 1, 1]} : vector<2x8x32xf32> to vector<2x8x8xf32>
    %113 = vector.extract_strided_slice %104 {offsets = [0, 0, 16], sizes = [2, 8, 8], strides = [1, 1, 1]} : vector<2x8x32xf32> to vector<2x8x8xf32>
    "tpu.trace_start"() <{level = 10 : i32, message = "bqe,bke->bqk"}> : () -> ()
    %cst_49 = arith.constant dense<0.000000e+00> : vector<2x8x8xf32>
    %114 = tpu.matmul %112, %113, %cst_49 {dimension_numbers = #tpu.dot_dimension_numbers<[2], [2], [1], [1], [0, 0, 0, 1, 1, 1], [0], [0]>} : vector<2x8x8xf32>, vector<2x8x8xf32>, vector<2x8x8xf32> -> vector<2x8x8xf32>
    "tpu.trace_stop"() : () -> ()
    %115 = vector.extract_strided_slice %103 {offsets = [0, 0, 24], sizes = [2, 8, 8], strides = [1, 1, 1]} : vector<2x8x32xf32> to vector<2x8x8xf32>
    %116 = vector.extract_strided_slice %104 {offsets = [0, 0, 24], sizes = [2, 8, 8], strides = [1, 1, 1]} : vector<2x8x32xf32> to vector<2x8x8xf32>
    "tpu.trace_start"() <{level = 10 : i32, message = "bqe,bke->bqk"}> : () -> ()
    %cst_50 = arith.constant dense<0.000000e+00> : vector<2x8x8xf32>
    %117 = tpu.matmul %115, %116, %cst_50 {dimension_numbers = #tpu.dot_dimension_numbers<[2], [2], [1], [1], [0, 0, 0, 1, 1, 1], [0], [0]>} : vector<2x8x8xf32>, vector<2x8x8xf32>, vector<2x8x8xf32> -> vector<2x8x8xf32>
    "tpu.trace_stop"() : () -> ()
    %118 = tpu.concatenate %108, %111, %114, %117 in 1 : vector<2x8x8xf32>, vector<2x8x8xf32>, vector<2x8x8xf32>, vector<2x8x8xf32> -> vector<2x32x8xf32>
    %cst_51 = arith.constant 0.353553385 : f32
    %119 = vector.broadcast %cst_51 : f32 to vector<2x32x8xf32>
    %120 = arith.mulf %118, %119 : vector<2x32x8xf32>
    %cst_52 = arith.constant dense<0xFF800000> : vector<2x32xf32>
    %121 = vector.multi_reduction <maximumf>, %120, %cst_52 [2] : vector<2x32x8xf32> to vector<2x32xf32>
    %122 = vector.shape_cast %121 : vector<2x32xf32> to vector<2x32x1xf32>
    %123 = vector.broadcast %122 : vector<2x32x1xf32> to vector<2x32x8xf32>
    %124 = arith.subf %120, %123 : vector<2x32x8xf32>
    %125 = math.exp %124 : vector<2x32x8xf32>
    %cst_53 = arith.constant dense<0.000000e+00> : vector<2x32xf32>
    %126 = vector.multi_reduction <add>, %125, %cst_53 [2] : vector<2x32x8xf32> to vector<2x32xf32>
    %127 = vector.shape_cast %126 : vector<2x32xf32> to vector<2x32x1xf32>
    %128 = vector.broadcast %127 : vector<2x32x1xf32> to vector<2x32x8xf32>
    %129 = arith.divf %125, %128 : vector<2x32x8xf32>
    %130 = vector.extract_strided_slice %129 {offsets = [0, 0, 0], sizes = [2, 8, 8], strides = [1, 1, 1]} : vector<2x32x8xf32> to vector<2x8x8xf32>
    %131 = vector.extract_strided_slice %105 {offsets = [0, 0, 0], sizes = [2, 8, 8], strides = [1, 1, 1]} : vector<2x8x32xf32> to vector<2x8x8xf32>
    "tpu.trace_start"() <{level = 10 : i32, message = "bqk,bke->bqe"}> : () -> ()
    %cst_54 = arith.constant dense<0.000000e+00> : vector<2x8x8xf32>
    %132 = tpu.matmul %130, %131, %cst_54 {dimension_numbers = #tpu.dot_dimension_numbers<[2], [1], [1], [2], [0, 0, 0, 1, 1, 2], [0], [0]>} : vector<2x8x8xf32>, vector<2x8x8xf32>, vector<2x8x8xf32> -> vector<2x8x8xf32>
    "tpu.trace_stop"() : () -> ()
    %133 = vector.extract_strided_slice %129 {offsets = [0, 8, 0], sizes = [2, 8, 8], strides = [1, 1, 1]} : vector<2x32x8xf32> to vector<2x8x8xf32>
    %134 = vector.extract_strided_slice %105 {offsets = [0, 0, 8], sizes = [2, 8, 8], strides = [1, 1, 1]} : vector<2x8x32xf32> to vector<2x8x8xf32>
    "tpu.trace_start"() <{level = 10 : i32, message = "bqk,bke->bqe"}> : () -> ()
    %cst_55 = arith.constant dense<0.000000e+00> : vector<2x8x8xf32>
    %135 = tpu.matmul %133, %134, %cst_55 {dimension_numbers = #tpu.dot_dimension_numbers<[2], [1], [1], [2], [0, 0, 0, 1, 1, 2], [0], [0]>} : vector<2x8x8xf32>, vector<2x8x8xf32>, vector<2x8x8xf32> -> vector<2x8x8xf32>
    "tpu.trace_stop"() : () -> ()
    %136 = vector.extract_strided_slice %129 {offsets = [0, 16, 0], sizes = [2, 8, 8], strides = [1, 1, 1]} : vector<2x32x8xf32> to vector<2x8x8xf32>
    %137 = vector.extract_strided_slice %105 {offsets = [0, 0, 16], sizes = [2, 8, 8], strides = [1, 1, 1]} : vector<2x8x32xf32> to vector<2x8x8xf32>
    "tpu.trace_start"() <{level = 10 : i32, message = "bqk,bke->bqe"}> : () -> ()
    %cst_56 = arith.constant dense<0.000000e+00> : vector<2x8x8xf32>
    %138 = tpu.matmul %136, %137, %cst_56 {dimension_numbers = #tpu.dot_dimension_numbers<[2], [1], [1], [2], [0, 0, 0, 1, 1, 2], [0], [0]>} : vector<2x8x8xf32>, vector<2x8x8xf32>, vector<2x8x8xf32> -> vector<2x8x8xf32>
    "tpu.trace_stop"() : () -> ()
    %139 = vector.extract_strided_slice %129 {offsets = [0, 24, 0], sizes = [2, 8, 8], strides = [1, 1, 1]} : vector<2x32x8xf32> to vector<2x8x8xf32>
    %140 = vector.extract_strided_slice %105 {offsets = [0, 0, 24], sizes = [2, 8, 8], strides = [1, 1, 1]} : vector<2x8x32xf32> to vector<2x8x8xf32>
    "tpu.trace_start"() <{level = 10 : i32, message = "bqk,bke->bqe"}> : () -> ()
    %cst_57 = arith.constant dense<0.000000e+00> : vector<2x8x8xf32>
    %141 = tpu.matmul %139, %140, %cst_57 {dimension_numbers = #tpu.dot_dimension_numbers<[2], [1], [1], [2], [0, 0, 0, 1, 1, 2], [0], [0]>} : vector<2x8x8xf32>, vector<2x8x8xf32>, vector<2x8x8xf32> -> vector<2x8x8xf32>
    "tpu.trace_stop"() : () -> ()
    %142 = tpu.concatenate %132, %135, %138, %141 in 2 : vector<2x8x8xf32>, vector<2x8x8xf32>, vector<2x8x8xf32>, vector<2x8x8xf32> -> vector<2x8x32xf32>
    %143 = vector.shape_cast %142 : vector<2x8x32xf32> to vector<16x32xf32>
    %cst_58 = arith.constant dense<0.000000e+00> : vector<16x32xf32>
    %144 = tpu.matmul %143, %9, %cst_58 {dimension_numbers = #tpu.dot_dimension_numbers<[1], [0], [0], [1], [0, 0, 1, 1], [], []>} : vector<16x32xf32>, vector<32x32xf32>, vector<16x32xf32> -> vector<16x32xf32>
    %145 = vector.broadcast %16 : vector<1x32xf32> to vector<16x32xf32>
    %146 = arith.addf %144, %145 : vector<16x32xf32>
    %147 = arith.addf %94, %146 : vector<16x32xf32>
    %cst_59 = arith.constant dense<0.000000e+00> : vector<16xf32>
    %148 = vector.multi_reduction <add>, %147, %cst_59 [1] : vector<16x32xf32> to vector<16xf32>
    %149 = vector.shape_cast %148 : vector<16xf32> to vector<16x1xf32>
    %cst_60 = arith.constant 3.200000e+01 : f32
    %150 = vector.broadcast %cst_60 : f32 to vector<16x1xf32>
    %151 = arith.divf %149, %150 : vector<16x1xf32>
    %152 = vector.broadcast %151 : vector<16x1xf32> to vector<16x32xf32>
    %153 = arith.subf %147, %152 : vector<16x32xf32>
    %154 = arith.mulf %153, %153 : vector<16x32xf32>
    %cst_61 = arith.constant dense<0.000000e+00> : vector<16xf32>
    %155 = vector.multi_reduction <add>, %154, %cst_61 [1] : vector<16x32xf32> to vector<16xf32>
    %156 = vector.shape_cast %155 : vector<16xf32> to vector<16x1xf32>
    %cst_62 = arith.constant 3.200000e+01 : f32
    %157 = vector.broadcast %cst_62 : f32 to vector<16x1xf32>
    %158 = arith.divf %156, %157 : vector<16x1xf32>
    %cst_63 = arith.constant 9.99999974E-6 : f32
    %159 = vector.broadcast %cst_63 : f32 to vector<16x1xf32>
    %160 = arith.addf %158, %159 : vector<16x1xf32>
    %161 = math.rsqrt %160 : vector<16x1xf32>
    %162 = vector.broadcast %161 : vector<16x1xf32> to vector<16x32xf32>
    %163 = arith.mulf %153, %162 : vector<16x32xf32>
    %164 = vector.broadcast %20 : vector<1x32xf32> to vector<16x32xf32>
    %165 = arith.mulf %163, %164 : vector<16x32xf32>
    %166 = vector.broadcast %21 : vector<1x32xf32> to vector<16x32xf32>
    %167 = arith.addf %165, %166 : vector<16x32xf32>
    %cst_64 = arith.constant dense<0.000000e+00> : vector<16x128xf32>
    %168 = tpu.matmul %167, %4, %cst_64 {dimension_numbers = #tpu.dot_dimension_numbers<[1], [0], [0], [1], [0, 0, 1, 1], [], []>} : vector<16x32xf32>, vector<32x128xf32>, vector<16x128xf32> -> vector<16x128xf32>
    %169 = vector.broadcast %11 : vector<1x128xf32> to vector<16x128xf32>
    %170 = arith.addf %168, %169 : vector<16x128xf32>
    %cst_65 = arith.constant 0.000000e+00 : f32
    %171 = vector.broadcast %cst_65 : f32 to vector<16x128xf32>
    %172 = arith.maximumf %170, %171 : vector<16x128xf32>
    %cst_66 = arith.constant dense<0.000000e+00> : vector<16x32xf32>
    %173 = tpu.matmul %172, %10, %cst_66 {dimension_numbers = #tpu.dot_dimension_numbers<[1], [0], [0], [1], [0, 0, 1, 1], [], []>} : vector<16x128xf32>, vector<128x32xf32>, vector<16x32xf32> -> vector<16x32xf32>
    %174 = vector.broadcast %17 : vector<1x32xf32> to vector<16x32xf32>
    %175 = arith.addf %173, %174 : vector<16x32xf32>
    %176 = arith.addf %167, %175 : vector<16x32xf32>
    %cst_67 = arith.constant dense<0.000000e+00> : vector<16xf32>
    %177 = vector.multi_reduction <add>, %176, %cst_67 [1] : vector<16x32xf32> to vector<16xf32>
    %178 = vector.shape_cast %177 : vector<16xf32> to vector<16x1xf32>
    %cst_68 = arith.constant 3.200000e+01 : f32
    %179 = vector.broadcast %cst_68 : f32 to vector<16x1xf32>
    %180 = arith.divf %178, %179 : vector<16x1xf32>
    %181 = vector.broadcast %180 : vector<16x1xf32> to vector<16x32xf32>
    %182 = arith.subf %176, %181 : vector<16x32xf32>
    %183 = arith.mulf %182, %182 : vector<16x32xf32>
    %cst_69 = arith.constant dense<0.000000e+00> : vector<16xf32>
    %184 = vector.multi_reduction <add>, %183, %cst_69 [1] : vector<16x32xf32> to vector<16xf32>
    %185 = vector.shape_cast %184 : vector<16xf32> to vector<16x1xf32>
    %cst_70 = arith.constant 3.200000e+01 : f32
    %186 = vector.broadcast %cst_70 : f32 to vector<16x1xf32>
    %187 = arith.divf %185, %186 : vector<16x1xf32>
    %cst_71 = arith.constant 9.99999974E-6 : f32
    %188 = vector.broadcast %cst_71 : f32 to vector<16x1xf32>
    %189 = arith.addf %187, %188 : vector<16x1xf32>
    %190 = math.rsqrt %189 : vector<16x1xf32>
    %191 = vector.broadcast %190 : vector<16x1xf32> to vector<16x32xf32>
    %192 = arith.mulf %182, %191 : vector<16x32xf32>
    %193 = vector.broadcast %22 : vector<1x32xf32> to vector<16x32xf32>
    %194 = arith.mulf %192, %193 : vector<16x32xf32>
    %195 = vector.broadcast %23 : vector<1x32xf32> to vector<16x32xf32>
    %196 = arith.addf %194, %195 : vector<16x32xf32>
    %197 = vector.shape_cast %196 : vector<16x32xf32> to vector<2x8x32xf32>
    %c0_72 = arith.constant 0 : index
    %c0_73 = arith.constant 0 : index
    %c0_74 = arith.constant 0 : index
    %198 = vector.load %arg6[%c0_72, %c0_73, %c0_74] : memref<2x8x32xf32, #tpu.memory_space<vmem>>, vector<2x8x32xf32>
    tpu.vector_store %arg6[%c0_72, %c0_73, %c0_74], %197 {strides = array<i32>} : memref<2x8x32xf32, #tpu.memory_space<vmem>>, vector<2x8x32xf32>,
    return
  }
  func.func @transform_0(%arg0: i32) -> (i32, i32, i32) {
    %c0_i32 = arith.constant 0 : i32
    %c0_i32_0 = arith.constant 0 : i32
    %c0_i32_1 = arith.constant 0 : i32
    %c0_i32_2 = arith.constant 0 : i32
    return %c0_i32, %c0_i32_0, %c0_i32_1 : i32, i32, i32
  }
  func.func @transform_1(%arg0: i32) -> (i32, i32, i32) {
    %c0_i32 = arith.constant 0 : i32
    %c0_i32_0 = arith.constant 0 : i32
    %c0_i32_1 = arith.constant 0 : i32
    %c0_i32_2 = arith.constant 0 : i32
    return %c0_i32, %c0_i32_0, %c0_i32_1 : i32, i32, i32
  }
  func.func @transform_2(%arg0: i32) -> (i32, i32) {
    %c0_i32 = arith.constant 0 : i32
    %c0_i32_0 = arith.constant 0 : i32
    %c0_i32_1 = arith.constant 0 : i32
    return %c0_i32, %c0_i32_0 : i32, i32
  }
  func.func @transform_3(%arg0: i32) -> (i32, i32) {
    %c0_i32 = arith.constant 0 : i32
    %c0_i32_0 = arith.constant 0 : i32
    %c0_i32_1 = arith.constant 0 : i32
    return %c0_i32, %c0_i32_0 : i32, i32
  }
  func.func @transform_4(%arg0: i32) -> (i32, i32) {
    %c0_i32 = arith.constant 0 : i32
    %c0_i32_0 = arith.constant 0 : i32
    %c0_i32_1 = arith.constant 0 : i32
    return %c0_i32, %c0_i32_0 : i32, i32
  }
  func.func @transform_5(%arg0: i32) -> (i32, i32, i32) {
    %c0_i32 = arith.constant 0 : i32
    %c0_i32_0 = arith.constant 0 : i32
    %c0_i32_1 = arith.constant 0 : i32
    %c0_i32_2 = arith.constant 0 : i32
    return %c0_i32, %c0_i32_0, %c0_i32_1 : i32, i32, i32
  }
}

</mosaic_0001>

<llo_original>
// kernel: tpu_custom_call.1
$region0: #{tpu_custom_call.1}
  #allocation0 [shape = 'u32[]', space=smem, size = 0x4, offset = 0x4, fixed_abs, tag = 'smem constant byte address 0x4 - core index']
  #allocation1 [shape = 'u32[144,128]{1,0:T(1,128)}', space=vmem, size = 0x12000, scoped, tag = 'internal scratch']
  %s0 = inlined_call_operand.vmem [shape: f32[2,8,32], index: 0, kind: input, shape index: {}]
  %s1 = inlined_call_operand.vmem [shape: f32[2,8,32], index: 1, kind: input, shape index: {}]
  %s2 = inlined_call_operand.vmem [shape: f32[32,384], index: 2, kind: input, shape index: {}]
  %s3 = inlined_call_operand.vmem [shape: f32[128,32], index: 3, kind: input, shape index: {}]
  %s4 = inlined_call_operand.vmem [shape: f32[16,128], index: 4, kind: input, shape index: {}]
  %s5 = inlined_call_operand.hbm [shape: f32[2,8,32], index: 5, kind: output, shape index: {}]
  %s6 = sld [smem:[#allocation0]]
  $region30: #{tpu_custom_call.1} parent=0
    _
  %s8 = ssub.s32 1, %s6
  %s9 = scalar_select 0, %s8, %s6
  $region1: #{tpu_custom_call.1} parent=0
    #allocation2 [shape = 'u8[8192]{0}', space=vmem, size = 0x2000, scoped, tag = 'output window, operand 0, single buffered']
    #allocation3 [shape = 's32[1]{0}', space=sflag, size = 0x4, scoped, tag = 'scoped memory for tpu_custom_call.1']
    %10 = vsyncpa [#allocation3], 0
    // Predicated region
    $region2: #{tpu_custom_call.1} parent=1 // pred_check
      _
    $region3: #{tpu_custom_call.1} parent=1 // pred_check_branch
      %12 = sbr.rel (0) target = $region5
    $region4: #{tpu_custom_call.1} parent=1 // pred_region
      _
    $region5: #{tpu_custom_call.1} parent=1 // pred_fallthru
      _
    // Predicated region
    $region6: #{tpu_custom_call.1} parent=1 // pred_check
      _
    $region7: #{tpu_custom_call.1} parent=1 // pred_check_branch
      %14 = sbr.rel (0) target = $region9
    $region8: #{tpu_custom_call.1} parent=1 // pred_region
      _
    $region9: #{tpu_custom_call.1} parent=1 // pred_fallthru
      _
    // Predicated region
    $region10: #{tpu_custom_call.1} parent=1 // pred_check
      _
    $region11: #{tpu_custom_call.1} parent=1 // pred_check_branch
      %16 = sbr.rel (0) target = $region13
    $region12: #{tpu_custom_call.1} parent=1 // pred_region
      _
    $region13: #{tpu_custom_call.1} parent=1 // pred_fallthru
      _
    // Predicated region
    $region14: #{tpu_custom_call.1} parent=1 // pred_check
      _
    $region15: #{tpu_custom_call.1} parent=1 // pred_check_branch
      %18 = sbr.rel (0) target = $region17
    $region16: #{tpu_custom_call.1} parent=1 // pred_region
      _
    $region17: #{tpu_custom_call.1} parent=1 // pred_fallthru
      _
    // Predicated region
    $region18: #{tpu_custom_call.1} parent=1 // pred_check
      _
    $region19: #{tpu_custom_call.1} parent=1 // pred_check_branch
      %20 = sbr.rel (0) target = $region21
    $region20: #{tpu_custom_call.1} parent=1 // pred_region
      _
    $region21: #{tpu_custom_call.1} parent=1 // pred_fallthru
      _
    %v21 = vld [vmem:[%s0] sm:$0xff]
    %v22 = vld [vmem:[%s0 + $0x8] sm:$0xff]
    %v23 = vld [vmem:[%s1] sm:$0xff]
    %v24 = vld [vmem:[%s1 + $0x8] sm:$0xff]
    %v25 = vld [vmem:[%s2] sm:$0xff]
    %v26 = vld [vmem:[%s2 + $0x18] sm:$0xff]
    %v27 = vld [vmem:[%s2 + $0x30] sm:$0xff]
    %v28 = vld [vmem:[%s2 + $0x48] sm:$0xff]
    %v29 = vld [vmem:[%s2 + $0x8] sm:$0xff]
    %v30 = vld [vmem:[%s2 + $0x20] sm:$0xff]
    %v31 = vld [vmem:[%s2 + $0x38] sm:$0xff]
    %v32 = vld [vmem:[%s2 + $0x50] sm:$0xff]
    %v33 = vld [vmem:[%s2 + $0x10] sm:$0xff]
    %v34 = vld [vmem:[%s2 + $0x28] sm:$0xff]
    %v35 = vld [vmem:[%s2 + $0x40] sm:$0xff]
    %v36 = vld [vmem:[%s2 + $0x58] sm:$0xff]
    %v37 = vld [vmem:[%s3] sm:$0xff]
    %v38 = vld [vmem:[%s3 + $0x8] sm:$0xff]
    %v39 = vld [vmem:[%s3 + $0x10] sm:$0xff]
    %v40 = vld [vmem:[%s3 + $0x18] sm:$0xff]
    %v41 = vld [vmem:[%s3 + $0x20] sm:$0xff]
    %v42 = vld [vmem:[%s3 + $0x28] sm:$0xff]
    %v43 = vld [vmem:[%s3 + $0x30] sm:$0xff]
    %v44 = vld [vmem:[%s3 + $0x38] sm:$0xff]
    %v45 = vld [vmem:[%s3 + $0x40] sm:$0xff]
    %v46 = vld [vmem:[%s3 + $0x48] sm:$0xff]
    %v47 = vld [vmem:[%s3 + $0x50] sm:$0xff]
    %v48 = vld [vmem:[%s3 + $0x58] sm:$0xff]
    %v49 = vld [vmem:[%s3 + $0x60] sm:$0xff]
    %v50 = vld [vmem:[%s3 + $0x68] sm:$0xff]
    %v51 = vld [vmem:[%s3 + $0x70] sm:$0xff]
    %v52 = vld [vmem:[%s3 + $0x78] sm:$0xff]
    %v53 = vld [vmem:[%s4] sm:$0x1]
    %v54 = vld [vmem:[%s4 + $0x1] sm:$0x1]
    %v55 = vld [vmem:[%s4 + $0x2] sm:$0x1]
    %v56 = vld [vmem:[%s4 + $0x3] sm:$0x1]
    %v57 = vld [vmem:[%s4 + $0x4] sm:$0x1]
    %v58 = vld [vmem:[%s4 + $0x5] sm:$0x1]
    %v59 = vld [vmem:[%s4 + $0x6] sm:$0x1]
    %v60 = vld [vmem:[%s4 + $0x7] sm:$0x1]
    %v61 = vld [vmem:[%s4 + $0x8] sm:$0x1]
    %v62 = vld [vmem:[%s4 + $0x9] sm:$0x1]
    %v63 = vld [vmem:[%s4 + $0xa] sm:$0x1]
    %v64 = vld [vmem:[%s4 + $0xb] sm:$0x1]
    %v65 = vld [vmem:[%s4 + $0xc] sm:$0x1]
    %v66 = vlaneseq
    %v67 = vshrl.u32 %v66, 7
    %v68 = vsub.s32 0, %v67
    %v69 = vrot.slane %v54, %v68
    %vm70 = vcmask 261120
    %v72 = vsel %vm70, %v21, 0
    %v75 = vsel %vm70, %v22, 0
    %77 = vmatprep.subr.mxu0 0.0
    %78 = vmatpush1.msra.mxu0 %v29
    %79 = vmatprep.subr.mxu0 0.0
    %80 = vmatpush1.msra.mxu0 %v30
    %81 = vmatprep.subr.mxu0 0.0
    %82 = vmatpush1.msra.mxu0 %v31
    %83 = vmatprep.subr.mxu0 0.0
    %84 = vmatpush1.msra.mxu0 %v32
    %85 = vmatprep.subr.mxu0 0.0
    %86 = vmatpush1.msra.mxu0 0.0
    %87 = vmatprep.subr.mxu0 0.0
    %88 = vmatpush1.msra.mxu0 0.0
    %89 = vmatprep.subr.mxu0 0.0
    %90 = vmatpush1.msra.mxu0 0.0
    %91 = vmatprep.subr.mxu0 0.0
    %92 = vmatpush1.msra.mxu0 0.0
    %93 = vmatprep.subr.mxu0 0.0
    %94 = vmatpush1.msra.mxu0 0.0
    %95 = vmatprep.subr.mxu0 0.0
    %96 = vmatpush1.msra.mxu0 0.0
    %97 = vmatprep.subr.mxu0 0.0
    %98 = vmatpush1.msra.mxu0 0.0
    %99 = vmatprep.subr.mxu0 0.0
    %100 = vmatpush1.msra.mxu0 0.0
    %101 = vmatprep.subr.mxu0 0.0
    %102 = vmatpush1.msra.mxu0 0.0
    %103 = vmatprep.subr.mxu0 0.0
    %104 = vmatpush1.msra.mxu0 0.0
    %105 = vmatprep.subr.mxu0 0.0
    %106 = vmatpush1.msra.mxu0 0.0
    %107 = vmatprep.subr.mxu0 0.0
    %108 = vmatpush1.msra.mxu0 0.0
    %109 = vmatprep.subr.mxu0 0.0
    %110 = vmatpush1.msra.mxu0 0.0
    %111 = vmatprep.subr.mxu0 0.0
    %112 = vmatpush1.msra.mxu0 0.0
    %113 = vmatprep.subr.mxu0 0.0
    %114 = vmatpush1.msra.mxu0 0.0
    %115 = vmatprep.subr.mxu0 0.0
    %116 = vmatpush1.msra.mxu0 0.0
    %117 = vmatprep.subr.mxu0 0.0
    %118 = vmatpush1.msra.mxu0 0.0
    %119 = vmatprep.subr.mxu0 0.0
    %120 = vmatpush1.msra.mxu0 0.0
    %121 = vmatprep.subr.mxu0 0.0
    %122 = vmatpush1.msra.mxu0 0.0
    %123 = vmatprep.subr.mxu0 0.0
    %124 = vmatpush1.msra.mxu0 0.0
    %125 = vmatprep.subr.mxu0 0.0
    %126 = vmatpush1.msra.mxu0 0.0
    %127 = vmatprep.subr.mxu0 0.0
    %128 = vmatpush1.msra.mxu0 0.0
    %129 = vmatprep.subr.mxu0 0.0
    %130 = vmatpush1.msra.mxu0 0.0
    %131 = vmatprep.subr.mxu0 0.0
    %132 = vmatpush1.msra.mxu0 0.0
    %133 = vmatprep.subr.mxu0 0.0
    %134 = vmatpush1.msra.mxu0 0.0
    %135 = vmatprep.subr.mxu0 0.0
    %136 = vmatpush1.msra.mxu0 0.0
    %137 = vmatprep.subr.mxu0 0.0
    %138 = vmatpush1.msra.mxu0 0.0
    %139 = vmatprep.subr.mxu0 0.0
    %140 = vmatpush1.msra.mxu0 0.0
    %141 = vmatprep.mubr.f32.mxu0 0.0
    %142 = vmatmul.mubr.f32.gmra.mrb[0].mxu0 %v72
    %v143 = vpop.f32.mrb[0].mxu0
    %v144 = vadd.f32 %v69, %v143
    %v145 = vpop.f32.mrb[0].mxu0
    %146 = vmatprep.mubr.f32.mxu0 0.0
    %147 = vmatmul.mubr.f32.gmra.mrb[0].mxu0 %v75
    %v148 = vpop.f32.mrb[0].mxu0
    %v149 = vadd.f32 %v69, %v148
    %v150 = vpop.f32.mrb[0].mxu0
    %151 = vdwg.mxu0
    %153 = vrot.lane.b32.xlu0 %v144, 96
    %v154 = vpop.permute.xlu0 %153
    %vm155 = vcmask 64512
    %v156 = vsel %vm155, %v144, 0
    %v158 = vsel %vm155, %v154, 0
    %160 = vmatprep.subr.mxu0 0.0
    %161 = vmatpush1.xpose.msra.mxu0 %v158
    %162 = vmatprep.subr.mxu0 0.0
    %163 = vmatpush1.xpose.msra.mxu0 0.0
    %164 = vmatprep.subr.mxu0 0.0
    %165 = vmatpush1.xpose.msra.mxu0 0.0
    %166 = vmatprep.subr.mxu0 0.0
    %167 = vmatpush1.xpose.msra.mxu0 0.0
    %168 = vmatprep.subr.mxu0 0.0
    %169 = vmatpush1.xpose.msra.mxu0 0.0
    %170 = vmatprep.subr.mxu0 0.0
    %171 = vmatpush1.xpose.msra.mxu0 0.0
    %172 = vmatprep.subr.mxu0 0.0
    %173 = vmatpush1.xpose.msra.mxu0 0.0
    %174 = vmatprep.subr.mxu0 0.0
    %175 = vmatpush1.xpose.msra.mxu0 0.0
    %176 = vmatprep.subr.mxu0 0.0
    %177 = vmatpush1.xpose.msra.mxu0 0.0
    %178 = vmatprep.subr.mxu0 0.0
    %179 = vmatpush1.xpose.msra.mxu0 0.0
    %180 = vmatprep.subr.mxu0 0.0
    %181 = vmatpush1.xpose.msra.mxu0 0.0
    %182 = vmatprep.subr.mxu0 0.0
    %183 = vmatpush1.xpose.msra.mxu0 0.0
    %184 = vmatprep.subr.mxu0 0.0
    %185 = vmatpush1.xpose.msra.mxu0 0.0
    %186 = vmatprep.subr.mxu0 0.0
    %187 = vmatpush1.xpose.msra.mxu0 0.0
    %188 = vmatprep.subr.mxu0 0.0
    %189 = vmatpush1.xpose.msra.mxu0 0.0
    %190 = vmatprep.subr.mxu0 0.0
    %191 = vmatpush1.xpose.msra.mxu0 0.0
    %192 = vmatprep.subr.mxu0 0.0
    %193 = vmatpush1.xpose.msra.mxu0 0.0
    %194 = vmatprep.subr.mxu0 0.0
    %195 = vmatpush1.xpose.msra.mxu0 0.0
    %196 = vmatprep.subr.mxu0 0.0
    %197 = vmatpush1.xpose.msra.mxu0 0.0
    %198 = vmatprep.subr.mxu0 0.0
    %199 = vmatpush1.xpose.msra.mxu0 0.0
    %200 = vmatprep.subr.mxu0 0.0
    %201 = vmatpush1.xpose.msra.mxu0 0.0
    %202 = vmatprep.subr.mxu0 0.0
    %203 = vmatpush1.xpose.msra.mxu0 0.0
    %204 = vmatprep.subr.mxu0 0.0
    %205 = vmatpush1.xpose.msra.mxu0 0.0
    %206 = vmatprep.subr.mxu0 0.0
    %207 = vmatpush1.xpose.msra.mxu0 0.0
    %208 = vmatprep.subr.mxu0 0.0
    %209 = vmatpush1.xpose.msra.mxu0 0.0
    %210 = vmatprep.subr.mxu0 0.0
    %211 = vmatpush1.xpose.msra.mxu0 0.0
    %212 = vmatprep.subr.mxu0 0.0
    %213 = vmatpush1.xpose.msra.mxu0 0.0
    %214 = vmatprep.subr.mxu0 0.0
    %215 = vmatpush1.xpose.msra.mxu0 0.0
    %216 = vmatprep.subr.mxu0 0.0
    %217 = vmatpush1.xpose.msra.mxu0 0.0
    %218 = vmatprep.subr.mxu0 0.0
    %219 = vmatpush1.xpose.msra.mxu0 0.0
    %220 = vmatprep.subr.mxu0 0.0
    %221 = vmatpush1.xpose.msra.mxu0 0.0
    %222 = vmatprep.subr.mxu0 0.0
    %223 = vmatpush1.xpose.msra.mxu0 0.0
    %224 = vmatprep.mubr.f32.mxu0 0.0
    %225 = vmatmul.mubr.f32.gmra.mrb[0].mxu0 %v156
    %v226 = vpop.f32.mrb[0].mxu0
    %v227 = vadd.f32 0.0, %v226
    %v228 = vpop.f32.mrb[0].mxu0
    %229 = vdwg.mxu0
    %231 = vrot.lane.b32.xlu0 %v149, 96
    %v232 = vpop.permute.xlu0 %231
    %v233 = vsel %vm155, %v149, 0
    %v235 = vsel %vm155, %v232, 0
    %237 = vmatprep.subr.mxu0 0.0
    %238 = vmatpush1.xpose.msra.mxu0 %v235
    %239 = vmatprep.subr.mxu0 0.0
    %240 = vmatpush1.xpose.msra.mxu0 0.0
    %241 = vmatprep.subr.mxu0 0.0
    %242 = vmatpush1.xpose.msra.mxu0 0.0
    %243 = vmatprep.subr.mxu0 0.0
    %244 = vmatpush1.xpose.msra.mxu0 0.0
    %245 = vmatprep.subr.mxu0 0.0
    %246 = vmatpush1.xpose.msra.mxu0 0.0
    %247 = vmatprep.subr.mxu0 0.0
    %248 = vmatpush1.xpose.msra.mxu0 0.0
    %249 = vmatprep.subr.mxu0 0.0
    %250 = vmatpush1.xpose.msra.mxu0 0.0
    %251 = vmatprep.subr.mxu0 0.0
    %252 = vmatpush1.xpose.msra.mxu0 0.0
    %253 = vmatprep.subr.mxu0 0.0
    %254 = vmatpush1.xpose.msra.mxu0 0.0
    %255 = vmatprep.subr.mxu0 0.0
    %256 = vmatpush1.xpose.msra.mxu0 0.0
    %257 = vmatprep.subr.mxu0 0.0
    %258 = vmatpush1.xpose.msra.mxu0 0.0
    %259 = vmatprep.subr.mxu0 0.0
    %260 = vmatpush1.xpose.msra.mxu0 0.0
    %261 = vmatprep.subr.mxu0 0.0
    %262 = vmatpush1.xpose.msra.mxu0 0.0
    %263 = vmatprep.subr.mxu0 0.0
    %264 = vmatpush1.xpose.msra.mxu0 0.0
    %265 = vmatprep.subr.mxu0 0.0
    %266 = vmatpush1.xpose.msra.mxu0 0.0
    %267 = vmatprep.subr.mxu0 0.0
    %268 = vmatpush1.xpose.msra.mxu0 0.0
    %269 = vmatprep.subr.mxu0 0.0
    %270 = vmatpush1.xpose.msra.mxu0 0.0
    %271 = vmatprep.subr.mxu0 0.0
    %272 = vmatpush1.xpose.msra.mxu0 0.0
    %273 = vmatprep.subr.mxu0 0.0
    %274 = vmatpush1.xpose.msra.mxu0 0.0
    %275 = vmatprep.subr.mxu0 0.0
    %276 = vmatpush1.xpose.msra.mxu0 0.0
    %277 = vmatprep.subr.mxu0 0.0
    %278 = vmatpush1.xpose.msra.mxu0 0.0
    %279 = vmatprep.subr.mxu0 0.0
    %280 = vmatpush1.xpose.msra.mxu0 0.0
    %281 = vmatprep.subr.mxu0 0.0
    %282 = vmatpush1.xpose.msra.mxu0 0.0
    %283 = vmatprep.subr.mxu0 0.0
    %284 = vmatpush1.xpose.msra.mxu0 0.0
    %285 = vmatprep.subr.mxu0 0.0
    %286 = vmatpush1.xpose.msra.mxu0 0.0
    %287 = vmatprep.subr.mxu0 0.0
    %288 = vmatpush1.xpose.msra.mxu0 0.0
    %289 = vmatprep.subr.mxu0 0.0
    %290 = vmatpush1.xpose.msra.mxu0 0.0
    %291 = vmatprep.subr.mxu0 0.0
    %292 = vmatpush1.xpose.msra.mxu0 0.0
    %293 = vmatprep.subr.mxu0 0.0
    %294 = vmatpush1.xpose.msra.mxu0 0.0
    %295 = vmatprep.subr.mxu0 0.0
    %296 = vmatpush1.xpose.msra.mxu0 0.0
    %297 = vmatprep.subr.mxu0 0.0
    %298 = vmatpush1.xpose.msra.mxu0 0.0
    %299 = vmatprep.subr.mxu0 0.0
    %300 = vmatpush1.xpose.msra.mxu0 0.0
    %301 = vmatprep.mubr.f32.mxu0 0.0
    %302 = vmatmul.mubr.f32.gmra.mrb[0].mxu0 %v233
    %v303 = vpop.f32.mrb[0].mxu0
    %v304 = vadd.f32 0.0, %v303
    %v305 = vpop.f32.mrb[0].mxu0
    %306 = vdwg.mxu0
    %307 = vrot.lane.b32.xlu0 %v144, 120
    %v308 = vpop.permute.xlu0 %307
    %309 = vrot.lane.b32.xlu0 %v144, 88
    %v310 = vpop.permute.xlu0 %309
    %v311 = vsel %vm155, %v308, 0
    %v313 = vsel %vm155, %v310, 0
    %315 = vmatprep.subr.mxu0 0.0
    %316 = vmatpush1.xpose.msra.mxu0 %v313
    %317 = vmatprep.subr.mxu0 0.0
    %318 = vmatpush1.xpose.msra.mxu0 0.0
    %319 = vmatprep.subr.mxu0 0.0
    %320 = vmatpush1.xpose.msra.mxu0 0.0
    %321 = vmatprep.subr.mxu0 0.0
    %322 = vmatpush1.xpose.msra.mxu0 0.0
    %323 = vmatprep.subr.mxu0 0.0
    %324 = vmatpush1.xpose.msra.mxu0 0.0
    %325 = vmatprep.subr.mxu0 0.0
    %326 = vmatpush1.xpose.msra.mxu0 0.0
    %327 = vmatprep.subr.mxu0 0.0
    %328 = vmatpush1.xpose.msra.mxu0 0.0
    %329 = vmatprep.subr.mxu0 0.0
    %330 = vmatpush1.xpose.msra.mxu0 0.0
    %331 = vmatprep.subr.mxu0 0.0
    %332 = vmatpush1.xpose.msra.mxu0 0.0
    %333 = vmatprep.subr.mxu0 0.0
    %334 = vmatpush1.xpose.msra.mxu0 0.0
    %335 = vmatprep.subr.mxu0 0.0
    %336 = vmatpush1.xpose.msra.mxu0 0.0
    %337 = vmatprep.subr.mxu0 0.0
    %338 = vmatpush1.xpose.msra.mxu0 0.0
    %339 = vmatprep.subr.mxu0 0.0
    %340 = vmatpush1.xpose.msra.mxu0 0.0
    %341 = vmatprep.subr.mxu0 0.0
    %342 = vmatpush1.xpose.msra.mxu0 0.0
    %343 = vmatprep.subr.mxu0 0.0
    %344 = vmatpush1.xpose.msra.mxu0 0.0
    %345 = vmatprep.subr.mxu0 0.0
    %346 = vmatpush1.xpose.msra.mxu0 0.0
    %347 = vmatprep.subr.mxu0 0.0
    %348 = vmatpush1.xpose.msra.mxu0 0.0
    %349 = vmatprep.subr.mxu0 0.0
    %350 = vmatpush1.xpose.msra.mxu0 0.0
    %351 = vmatprep.subr.mxu0 0.0
    %352 = vmatpush1.xpose.msra.mxu0 0.0
    %353 = vmatprep.subr.mxu0 0.0
    %354 = vmatpush1.xpose.msra.mxu0 0.0
    %355 = vmatprep.subr.mxu0 0.0
    %356 = vmatpush1.xpose.msra.mxu0 0.0
    %357 = vmatprep.subr.mxu0 0.0
    %358 = vmatpush1.xpose.msra.mxu0 0.0
    %359 = vmatprep.subr.mxu0 0.0
    %360 = vmatpush1.xpose.msra.mxu0 0.0
    %361 = vmatprep.subr.mxu0 0.0
    %362 = vmatpush1.xpose.msra.mxu0 0.0
    %363 = vmatprep.subr.mxu0 0.0
    %364 = vmatpush1.xpose.msra.mxu0 0.0
    %365 = vmatprep.subr.mxu0 0.0
    %366 = vmatpush1.xpose.msra.mxu0 0.0
    %367 = vmatprep.subr.mxu0 0.0
    %368 = vmatpush1.xpose.msra.mxu0 0.0
    %369 = vmatprep.subr.mxu0 0.0
    %370 = vmatpush1.xpose.msra.mxu0 0.0
    %371 = vmatprep.subr.mxu0 0.0
    %372 = vmatpush1.xpose.msra.mxu0 0.0
    %373 = vmatprep.subr.mxu0 0.0
    %374 = vmatpush1.xpose.msra.mxu0 0.0
    %375 = vmatprep.subr.mxu0 0.0
    %376 = vmatpush1.xpose.msra.mxu0 0.0
    %377 = vmatprep.subr.mxu0 0.0
    %378 = vmatpush1.xpose.msra.mxu0 0.0
    %379 = vmatprep.mubr.f32.mxu0 0.0
    %380 = vmatmul.mubr.f32.gmra.mrb[0].mxu0 %v311
    %v381 = vpop.f32.mrb[0].mxu0
    %v382 = vadd.f32 0.0, %v381
    %v383 = vpop.f32.mrb[0].mxu0
    %384 = vdwg.mxu0
    %385 = vrot.lane.b32.xlu0 %v149, 120
    %v386 = vpop.permute.xlu0 %385
    %387 = vrot.lane.b32.xlu0 %v149, 88
    %v388 = vpop.permute.xlu0 %387
    %v389 = vsel %vm155, %v386, 0
    %v391 = vsel %vm155, %v388, 0
    %393 = vmatprep.subr.mxu0 0.0
    %394 = vmatpush1.xpose.msra.mxu0 %v391
    %395 = vmatprep.subr.mxu0 0.0
    %396 = vmatpush1.xpose.msra.mxu0 0.0
    %397 = vmatprep.subr.mxu0 0.0
    %398 = vmatpush1.xpose.msra.mxu0 0.0
    %399 = vmatprep.subr.mxu0 0.0
    %400 = vmatpush1.xpose.msra.mxu0 0.0
    %401 = vmatprep.subr.mxu0 0.0
    %402 = vmatpush1.xpose.msra.mxu0 0.0
    %403 = vmatprep.subr.mxu0 0.0
    %404 = vmatpush1.xpose.msra.mxu0 0.0
    %405 = vmatprep.subr.mxu0 0.0
    %406 = vmatpush1.xpose.msra.mxu0 0.0
    %407 = vmatprep.subr.mxu0 0.0
    %408 = vmatpush1.xpose.msra.mxu0 0.0
    %409 = vmatprep.subr.mxu0 0.0
    %410 = vmatpush1.xpose.msra.mxu0 0.0
    %411 = vmatprep.subr.mxu0 0.0
    %412 = vmatpush1.xpose.msra.mxu0 0.0
    %413 = vmatprep.subr.mxu0 0.0
    %414 = vmatpush1.xpose.msra.mxu0 0.0
    %415 = vmatprep.subr.mxu0 0.0
    %416 = vmatpush1.xpose.msra.mxu0 0.0
    %417 = vmatprep.subr.mxu0 0.0
    %418 = vmatpush1.xpose.msra.mxu0 0.0
    %419 = vmatprep.subr.mxu0 0.0
    %420 = vmatpush1.xpose.msra.mxu0 0.0
    %421 = vmatprep.subr.mxu0 0.0
    %422 = vmatpush1.xpose.msra.mxu0 0.0
    %423 = vmatprep.subr.mxu0 0.0
    %424 = vmatpush1.xpose.msra.mxu0 0.0
    %425 = vmatprep.subr.mxu0 0.0
    %426 = vmatpush1.xpose.msra.mxu0 0.0
    %427 = vmatprep.subr.mxu0 0.0
    %428 = vmatpush1.xpose.msra.mxu0 0.0
    %429 = vmatprep.subr.mxu0 0.0
    %430 = vmatpush1.xpose.msra.mxu0 0.0
    %431 = vmatprep.subr.mxu0 0.0
    %432 = vmatpush1.xpose.msra.mxu0 0.0
    %433 = vmatprep.subr.mxu0 0.0
    %434 = vmatpush1.xpose.msra.mxu0 0.0
    %435 = vmatprep.subr.mxu0 0.0
    %436 = vmatpush1.xpose.msra.mxu0 0.0
    %437 = vmatprep.subr.mxu0 0.0
    %438 = vmatpush1.xpose.msra.mxu0 0.0
    %439 = vmatprep.subr.mxu0 0.0
    %440 = vmatpush1.xpose.msra.mxu0 0.0
    %441 = vmatprep.subr.mxu0 0.0
    %442 = vmatpush1.xpose.msra.mxu0 0.0
    %443 = vmatprep.subr.mxu0 0.0
    %444 = vmatpush1.xpose.msra.mxu0 0.0
    %445 = vmatprep.subr.mxu0 0.0
    %446 = vmatpush1.xpose.msra.mxu0 0.0
    %447 = vmatprep.subr.mxu0 0.0
    %448 = vmatpush1.xpose.msra.mxu0 0.0
    %449 = vmatprep.subr.mxu0 0.0
    %450 = vmatpush1.xpose.msra.mxu0 0.0
    %451 = vmatprep.subr.mxu0 0.0
    %452 = vmatpush1.xpose.msra.mxu0 0.0
    %453 = vmatprep.subr.mxu0 0.0
    %454 = vmatpush1.xpose.msra.mxu0 0.0
    %455 = vmatprep.subr.mxu0 0.0
    %456 = vmatpush1.xpose.msra.mxu0 0.0
    %457 = vmatprep.mubr.f32.mxu0 0.0
    %458 = vmatmul.mubr.f32.gmra.mrb[0].mxu0 %v389
    %v459 = vpop.f32.mrb[0].mxu0
    %v460 = vadd.f32 0.0, %v459
    %v461 = vpop.f32.mrb[0].mxu0
    %462 = vdwg.mxu0
    %463 = vrot.lane.b32.xlu0 %v144, 112
    %v464 = vpop.permute.xlu0 %463
    %465 = vrot.lane.b32.xlu0 %v144, 80
    %v466 = vpop.permute.xlu0 %465
    %v467 = vsel %vm155, %v464, 0
    %v469 = vsel %vm155, %v466, 0
    %471 = vmatprep.subr.mxu0 0.0
    %472 = vmatpush1.xpose.msra.mxu0 %v469
    %473 = vmatprep.subr.mxu0 0.0
    %474 = vmatpush1.xpose.msra.mxu0 0.0
    %475 = vmatprep.subr.mxu0 0.0
    %476 = vmatpush1.xpose.msra.mxu0 0.0
    %477 = vmatprep.subr.mxu0 0.0
    %478 = vmatpush1.xpose.msra.mxu0 0.0
    %479 = vmatprep.subr.mxu0 0.0
    %480 = vmatpush1.xpose.msra.mxu0 0.0
    %481 = vmatprep.subr.mxu0 0.0
    %482 = vmatpush1.xpose.msra.mxu0 0.0
    %483 = vmatprep.subr.mxu0 0.0
    %484 = vmatpush1.xpose.msra.mxu0 0.0
    %485 = vmatprep.subr.mxu0 0.0
    %486 = vmatpush1.xpose.msra.mxu0 0.0
    %487 = vmatprep.subr.mxu0 0.0
    %488 = vmatpush1.xpose.msra.mxu0 0.0
    %489 = vmatprep.subr.mxu0 0.0
    %490 = vmatpush1.xpose.msra.mxu0 0.0
    %491 = vmatprep.subr.mxu0 0.0
    %492 = vmatpush1.xpose.msra.mxu0 0.0
    %493 = vmatprep.subr.mxu0 0.0
    %494 = vmatpush1.xpose.msra.mxu0 0.0
    %495 = vmatprep.subr.mxu0 0.0
    %496 = vmatpush1.xpose.msra.mxu0 0.0
    %497 = vmatprep.subr.mxu0 0.0
    %498 = vmatpush1.xpose.msra.mxu0 0.0
    %499 = vmatprep.subr.mxu0 0.0
    %500 = vmatpush1.xpose.msra.mxu0 0.0
    %501 = vmatprep.subr.mxu0 0.0
    %502 = vmatpush1.xpose.msra.mxu0 0.0
    %503 = vmatprep.subr.mxu0 0.0
    %504 = vmatpush1.xpose.msra.mxu0 0.0
    %505 = vmatprep.subr.mxu0 0.0
    %506 = vmatpush1.xpose.msra.mxu0 0.0
    %507 = vmatprep.subr.mxu0 0.0
    %508 = vmatpush1.xpose.msra.mxu0 0.0
    %509 = vmatprep.subr.mxu0 0.0
    %510 = vmatpush1.xpose.msra.mxu0 0.0
    %511 = vmatprep.subr.mxu0 0.0
    %512 = vmatpush1.xpose.msra.mxu0 0.0
    %513 = vmatprep.subr.mxu0 0.0
    %514 = vmatpush1.xpose.msra.mxu0 0.0
    %515 = vmatprep.subr.mxu0 0.0
    %516 = vmatpush1.xpose.msra.mxu0 0.0
    %517 = vmatprep.subr.mxu0 0.0
    %518 = vmatpush1.xpose.msra.mxu0 0.0
    %519 = vmatprep.subr.mxu0 0.0
    %520 = vmatpush1.xpose.msra.mxu0 0.0
    %521 = vmatprep.subr.mxu0 0.0
    %522 = vmatpush1.xpose.msra.mxu0 0.0
    %523 = vmatprep.subr.mxu0 0.0
    %524 = vmatpush1.xpose.msra.mxu0 0.0
    %525 = vmatprep.subr.mxu0 0.0
    %526 = vmatpush1.xpose.msra.mxu0 0.0
    %527 = vmatprep.subr.mxu0 0.0
    %528 = vmatpush1.xpose.msra.mxu0 0.0
    %529 = vmatprep.subr.mxu0 0.0
    %530 = vmatpush1.xpose.msra.mxu0 0.0
    %531 = vmatprep.subr.mxu0 0.0
    %532 = vmatpush1.xpose.msra.mxu0 0.0
    %533 = vmatprep.subr.mxu0 0.0
    %534 = vmatpush1.xpose.msra.mxu0 0.0
    %535 = vmatprep.mubr.f32.mxu0 0.0
    %536 = vmatmul.mubr.f32.gmra.mrb[0].mxu0 %v467
    %v537 = vpop.f32.mrb[0].mxu0
    %v538 = vadd.f32 0.0, %v537
    %v539 = vpop.f32.mrb[0].mxu0
    %540 = vdwg.mxu0
    %541 = vrot.lane.b32.xlu0 %v149, 112
    %v542 = vpop.permute.xlu0 %541
    %543 = vrot.lane.b32.xlu0 %v149, 80
    %v544 = vpop.permute.xlu0 %543
    %v545 = vsel %vm155, %v542, 0
    %v547 = vsel %vm155, %v544, 0
    %549 = vmatprep.subr.mxu0 0.0
    %550 = vmatpush1.xpose.msra.mxu0 %v547
    %551 = vmatprep.subr.mxu0 0.0
    %552 = vmatpush1.xpose.msra.mxu0 0.0
    %553 = vmatprep.subr.mxu0 0.0
    %554 = vmatpush1.xpose.msra.mxu0 0.0
    %555 = vmatprep.subr.mxu0 0.0
    %556 = vmatpush1.xpose.msra.mxu0 0.0
    %557 = vmatprep.subr.mxu0 0.0
    %558 = vmatpush1.xpose.msra.mxu0 0.0
    %559 = vmatprep.subr.mxu0 0.0
    %560 = vmatpush1.xpose.msra.mxu0 0.0
    %561 = vmatprep.subr.mxu0 0.0
    %562 = vmatpush1.xpose.msra.mxu0 0.0
    %563 = vmatprep.subr.mxu0 0.0
    %564 = vmatpush1.xpose.msra.mxu0 0.0
    %565 = vmatprep.subr.mxu0 0.0
    %566 = vmatpush1.xpose.msra.mxu0 0.0
    %567 = vmatprep.subr.mxu0 0.0
    %568 = vmatpush1.xpose.msra.mxu0 0.0
    %569 = vmatprep.subr.mxu0 0.0
    %570 = vmatpush1.xpose.msra.mxu0 0.0
    %571 = vmatprep.subr.mxu0 0.0
    %572 = vmatpush1.xpose.msra.mxu0 0.0
    %573 = vmatprep.subr.mxu0 0.0
    %574 = vmatpush1.xpose.msra.mxu0 0.0
    %575 = vmatprep.subr.mxu0 0.0
    %576 = vmatpush1.xpose.msra.mxu0 0.0
    %577 = vmatprep.subr.mxu0 0.0
    %578 = vmatpush1.xpose.msra.mxu0 0.0
    %579 = vmatprep.subr.mxu0 0.0
    %580 = vmatpush1.xpose.msra.mxu0 0.0
    %581 = vmatprep.subr.mxu0 0.0
    %582 = vmatpush1.xpose.msra.mxu0 0.0
    %583 = vmatprep.subr.mxu0 0.0
    %584 = vmatpush1.xpose.msra.mxu0 0.0
    %585 = vmatprep.subr.mxu0 0.0
    %586 = vmatpush1.xpose.msra.mxu0 0.0
    %587 = vmatprep.subr.mxu0 0.0
    %588 = vmatpush1.xpose.msra.mxu0 0.0
    %589 = vmatprep.subr.mxu0 0.0
    %590 = vmatpush1.xpose.msra.mxu0 0.0
    %591 = vmatprep.subr.mxu0 0.0
    %592 = vmatpush1.xpose.msra.mxu0 0.0
    %593 = vmatprep.subr.mxu0 0.0
    %594 = vmatpush1.xpose.msra.mxu0 0.0
    %595 = vmatprep.subr.mxu0 0.0
    %596 = vmatpush1.xpose.msra.mxu0 0.0
    %597 = vmatprep.subr.mxu0 0.0
    %598 = vmatpush1.xpose.msra.mxu0 0.0
    %599 = vmatprep.subr.mxu0 0.0
    %600 = vmatpush1.xpose.msra.mxu0 0.0
    %601 = vmatprep.subr.mxu0 0.0
    %602 = vmatpush1.xpose.msra.mxu0 0.0
    %603 = vmatprep.subr.mxu0 0.0
    %604 = vmatpush1.xpose.msra.mxu0 0.0
    %605 = vmatprep.subr.mxu0 0.0
    %606 = vmatpush1.xpose.msra.mxu0 0.0
    %607 = vmatprep.subr.mxu0 0.0
    %608 = vmatpush1.xpose.msra.mxu0 0.0
    %609 = vmatprep.subr.mxu0 0.0
    %610 = vmatpush1.xpose.msra.mxu0 0.0
    %611 = vmatprep.subr.mxu0 0.0
    %612 = vmatpush1.xpose.msra.mxu0 0.0
    %613 = vmatprep.mubr.f32.mxu0 0.0
    %614 = vmatmul.mubr.f32.gmra.mrb[0].mxu0 %v545
    %v615 = vpop.f32.mrb[0].mxu0
    %v616 = vadd.f32 0.0, %v615
    %v617 = vpop.f32.mrb[0].mxu0
    %618 = vdwg.mxu0
    %619 = vrot.lane.b32.xlu0 %v144, 104
    %v620 = vpop.permute.xlu0 %619
    %621 = vrot.lane.b32.xlu0 %v144, 72
    %v622 = vpop.permute.xlu0 %621
    %v623 = vsel %vm155, %v620, 0
    %v625 = vsel %vm155, %v622, 0
    %627 = vmatprep.subr.mxu0 0.0
    %628 = vmatpush1.xpose.msra.mxu0 %v625
    %629 = vmatprep.subr.mxu0 0.0
    %630 = vmatpush1.xpose.msra.mxu0 0.0
    %631 = vmatprep.subr.mxu0 0.0
    %632 = vmatpush1.xpose.msra.mxu0 0.0
    %633 = vmatprep.subr.mxu0 0.0
    %634 = vmatpush1.xpose.msra.mxu0 0.0
    %635 = vmatprep.subr.mxu0 0.0
    %636 = vmatpush1.xpose.msra.mxu0 0.0
    %637 = vmatprep.subr.mxu0 0.0
    %638 = vmatpush1.xpose.msra.mxu0 0.0
    %639 = vmatprep.subr.mxu0 0.0
    %640 = vmatpush1.xpose.msra.mxu0 0.0
    %641 = vmatprep.subr.mxu0 0.0
    %642 = vmatpush1.xpose.msra.mxu0 0.0
    %643 = vmatprep.subr.mxu0 0.0
    %644 = vmatpush1.xpose.msra.mxu0 0.0
    %645 = vmatprep.subr.mxu0 0.0
    %646 = vmatpush1.xpose.msra.mxu0 0.0
    %647 = vmatprep.subr.mxu0 0.0
    %648 = vmatpush1.xpose.msra.mxu0 0.0
    %649 = vmatprep.subr.mxu0 0.0
    %650 = vmatpush1.xpose.msra.mxu0 0.0
    %651 = vmatprep.subr.mxu0 0.0
    %652 = vmatpush1.xpose.msra.mxu0 0.0
    %653 = vmatprep.subr.mxu0 0.0
    %654 = vmatpush1.xpose.msra.mxu0 0.0
    %655 = vmatprep.subr.mxu0 0.0
    %656 = vmatpush1.xpose.msra.mxu0 0.0
    %657 = vmatprep.subr.mxu0 0.0
    %658 = vmatpush1.xpose.msra.mxu0 0.0
    %659 = vmatprep.subr.mxu0 0.0
    %660 = vmatpush1.xpose.msra.mxu0 0.0
    %661 = vmatprep.subr.mxu0 0.0
    %662 = vmatpush1.xpose.msra.mxu0 0.0
    %663 = vmatprep.subr.mxu0 0.0
    %664 = vmatpush1.xpose.msra.mxu0 0.0
    %665 = vmatprep.subr.mxu0 0.0
    %666 = vmatpush1.xpose.msra.mxu0 0.0
    %667 = vmatprep.subr.mxu0 0.0
    %668 = vmatpush1.xpose.msra.mxu0 0.0
    %669 = vmatprep.subr.mxu0 0.0
    %670 = vmatpush1.xpose.msra.mxu0 0.0
    %671 = vmatprep.subr.mxu0 0.0
    %672 = vmatpush1.xpose.msra.mxu0 0.0
    %673 = vmatprep.subr.mxu0 0.0
    %674 = vmatpush1.xpose.msra.mxu0 0.0
    %675 = vmatprep.subr.mxu0 0.0
    %676 = vmatpush1.xpose.msra.mxu0 0.0
    %677 = vmatprep.subr.mxu0 0.0
    %678 = vmatpush1.xpose.msra.mxu0 0.0
    %679 = vmatprep.subr.mxu0 0.0
    %680 = vmatpush1.xpose.msra.mxu0 0.0
    %681 = vmatprep.subr.mxu0 0.0
    %682 = vmatpush1.xpose.msra.mxu0 0.0
    %683 = vmatprep.subr.mxu0 0.0
    %684 = vmatpush1.xpose.msra.mxu0 0.0
    %685 = vmatprep.subr.mxu0 0.0
    %686 = vmatpush1.xpose.msra.mxu0 0.0
    %687 = vmatprep.subr.mxu0 0.0
    %688 = vmatpush1.xpose.msra.mxu0 0.0
    %689 = vmatprep.subr.mxu0 0.0
    %690 = vmatpush1.xpose.msra.mxu0 0.0
    %691 = vmatprep.mubr.f32.mxu0 0.0
    %692 = vmatmul.mubr.f32.gmra.mrb[0].mxu0 %v623
    %v693 = vpop.f32.mrb[0].mxu0
    %v694 = vadd.f32 0.0, %v693
    %v695 = vpop.f32.mrb[0].mxu0
    %696 = vdwg.mxu0
    %697 = vrot.lane.b32.xlu0 %v149, 104
    %v698 = vpop.permute.xlu0 %697
    %699 = vrot.lane.b32.xlu0 %v149, 72
    %v700 = vpop.permute.xlu0 %699
    %v701 = vsel %vm155, %v698, 0
    %v703 = vsel %vm155, %v700, 0
    %705 = vmatprep.subr.mxu0 0.0
    %706 = vmatpush1.xpose.msra.mxu0 %v703
    %707 = vmatprep.subr.mxu0 0.0
    %708 = vmatpush1.xpose.msra.mxu0 0.0
    %709 = vmatprep.subr.mxu0 0.0
    %710 = vmatpush1.xpose.msra.mxu0 0.0
    %711 = vmatprep.subr.mxu0 0.0
    %712 = vmatpush1.xpose.msra.mxu0 0.0
    %713 = vmatprep.subr.mxu0 0.0
    %714 = vmatpush1.xpose.msra.mxu0 0.0
    %715 = vmatprep.subr.mxu0 0.0
    %716 = vmatpush1.xpose.msra.mxu0 0.0
    %717 = vmatprep.subr.mxu0 0.0
    %718 = vmatpush1.xpose.msra.mxu0 0.0
    %719 = vmatprep.subr.mxu0 0.0
    %720 = vmatpush1.xpose.msra.mxu0 0.0
    %721 = vmatprep.subr.mxu0 0.0
    %722 = vmatpush1.xpose.msra.mxu0 0.0
    %723 = vmatprep.subr.mxu0 0.0
    %724 = vmatpush1.xpose.msra.mxu0 0.0
    %725 = vmatprep.subr.mxu0 0.0
    %726 = vmatpush1.xpose.msra.mxu0 0.0
    %727 = vmatprep.subr.mxu0 0.0
    %728 = vmatpush1.xpose.msra.mxu0 0.0
    %729 = vmatprep.subr.mxu0 0.0
    %730 = vmatpush1.xpose.msra.mxu0 0.0
    %731 = vmatprep.subr.mxu0 0.0
    %732 = vmatpush1.xpose.msra.mxu0 0.0
    %733 = vmatprep.subr.mxu0 0.0
    %734 = vmatpush1.xpose.msra.mxu0 0.0
    %735 = vmatprep.subr.mxu0 0.0
    %736 = vmatpush1.xpose.msra.mxu0 0.0
    %737 = vmatprep.subr.mxu0 0.0
    %738 = vmatpush1.xpose.msra.mxu0 0.0
    %739 = vmatprep.subr.mxu0 0.0
    %740 = vmatpush1.xpose.msra.mxu0 0.0
    %741 = vmatprep.subr.mxu0 0.0
    %742 = vmatpush1.xpose.msra.mxu0 0.0
    %743 = vmatprep.subr.mxu0 0.0
    %744 = vmatpush1.xpose.msra.mxu0 0.0
    %745 = vmatprep.subr.mxu0 0.0
    %746 = vmatpush1.xpose.msra.mxu0 0.0
    %747 = vmatprep.subr.mxu0 0.0
    %748 = vmatpush1.xpose.msra.mxu0 0.0
    %749 = vmatprep.subr.mxu0 0.0
    %750 = vmatpush1.xpose.msra.mxu0 0.0
    %751 = vmatprep.subr.mxu0 0.0
    %752 = vmatpush1.xpose.msra.mxu0 0.0
    %753 = vmatprep.subr.mxu0 0.0
    %754 = vmatpush1.xpose.msra.mxu0 0.0
    %755 = vmatprep.subr.mxu0 0.0
    %756 = vmatpush1.xpose.msra.mxu0 0.0
    %757 = vmatprep.subr.mxu0 0.0
    %758 = vmatpush1.xpose.msra.mxu0 0.0
    %759 = vmatprep.subr.mxu0 0.0
    %760 = vmatpush1.xpose.msra.mxu0 0.0
    %761 = vmatprep.subr.mxu0 0.0
    %762 = vmatpush1.xpose.msra.mxu0 0.0
    %763 = vmatprep.subr.mxu0 0.0
    %764 = vmatpush1.xpose.msra.mxu0 0.0
    %765 = vmatprep.subr.mxu0 0.0
    %766 = vmatpush1.xpose.msra.mxu0 0.0
    %767 = vmatprep.subr.mxu0 0.0
    %768 = vmatpush1.xpose.msra.mxu0 0.0
    %769 = vmatprep.mubr.f32.mxu0 0.0
    %770 = vmatmul.mubr.f32.gmra.mrb[0].mxu0 %v701
    %v771 = vpop.f32.mrb[0].mxu0
    %v772 = vadd.f32 0.0, %v771
    %v773 = vpop.f32.mrb[0].mxu0
    %774 = vdwg.mxu0
    %v775 = vmul.f32 %v227, 0.35355338
    %v776 = vmul.f32 %v382, 0.35355338
    %v777 = vmul.f32 %v538, 0.35355338
    %v778 = vmul.f32 %v694, 0.35355338
    %v779 = vmul.f32 %v304, 0.35355338
    %v780 = vmul.f32 %v460, 0.35355338
    %v781 = vmul.f32 %v616, 0.35355338
    %v782 = vmul.f32 %v772, 0.35355338
    %v783 = vsel %vm155, %v775, -inf
    %784 = vmax.xlane.f32.xlu0 %v783
    %v785 = vpop.xlane.xlu0 %784
    %v786 = vsel %vm155, %v776, -inf
    %787 = vmax.xlane.f32.xlu0 %v786
    %v788 = vpop.xlane.xlu0 %787
    %v789 = vsel %vm155, %v777, -inf
    %790 = vmax.xlane.f32.xlu0 %v789
    %v791 = vpop.xlane.xlu0 %790
    %v792 = vsel %vm155, %v778, -inf
    %793 = vmax.xlane.f32.xlu0 %v792
    %v794 = vpop.xlane.xlu0 %793
    %v795 = vsel %vm155, %v779, -inf
    %796 = vmax.xlane.f32.xlu0 %v795
    %v797 = vpop.xlane.xlu0 %796
    %v798 = vsel %vm155, %v780, -inf
    %799 = vmax.xlane.f32.xlu0 %v798
    %v800 = vpop.xlane.xlu0 %799
    %v801 = vsel %vm155, %v781, -inf
    %802 = vmax.xlane.f32.xlu0 %v801
    %v803 = vpop.xlane.xlu0 %802
    %v804 = vsel %vm155, %v782, -inf
    %805 = vmax.xlane.f32.xlu0 %v804
    %v806 = vpop.xlane.xlu0 %805
    %v807 = vsub.f32 %v775, %v785
    %v808 = vsub.f32 %v776, %v788
    %v809 = vsub.f32 %v777, %v791
    %v810 = vsub.f32 %v778, %v794
    %v811 = vsub.f32 %v779, %v797
    %v812 = vsub.f32 %v780, %v800
    %v813 = vsub.f32 %v781, %v803
    %v814 = vsub.f32 %v782, %v806
    %v815 = vmul.f32 %v807, 1.442695
    %v816 = vpow.pop %v815
    %v817 = vmul.f32 %v808, 1.442695
    %v818 = vpow.pop %v817
    %v819 = vmul.f32 %v809, 1.442695
    %v820 = vpow.pop %v819
    %v821 = vmul.f32 %v810, 1.442695
    %v822 = vpow.pop %v821
    %v823 = vmul.f32 %v811, 1.442695
    %v824 = vpow.pop %v823
    %v825 = vmul.f32 %v812, 1.442695
    %v826 = vpow.pop %v825
    %v827 = vmul.f32 %v813, 1.442695
    %v828 = vpow.pop %v827
    %v829 = vmul.f32 %v814, 1.442695
    %v830 = vpow.pop %v829
    %v831 = vsel %vm155, %v816, 0.0
    %832 = vadd.xlane.f32.xlu0 %v831
    %v833 = vpop.xlane.xlu0 %832
    %v834 = vsel %vm155, %v818, 0.0
    %835 = vadd.xlane.f32.xlu0 %v834
    %v836 = vpop.xlane.xlu0 %835
    %v837 = vsel %vm155, %v820, 0.0
    %838 = vadd.xlane.f32.xlu0 %v837
    %v839 = vpop.xlane.xlu0 %838
    %v840 = vsel %vm155, %v822, 0.0
    %841 = vadd.xlane.f32.xlu0 %v840
    %v842 = vpop.xlane.xlu0 %841
    %v843 = vsel %vm155, %v824, 0.0
    %844 = vadd.xlane.f32.xlu0 %v843
    %v845 = vpop.xlane.xlu0 %844
    %v846 = vsel %vm155, %v826, 0.0
    %847 = vadd.xlane.f32.xlu0 %v846
    %v848 = vpop.xlane.xlu0 %847
    %v849 = vsel %vm155, %v828, 0.0
    %850 = vadd.xlane.f32.xlu0 %v849
    %v851 = vpop.xlane.xlu0 %850
    %v852 = vsel %vm155, %v830, 0.0
    %853 = vadd.xlane.f32.xlu0 %v852
    %v854 = vpop.xlane.xlu0 %853
    %v855 = vrcp.pop %v833
    %v856 = vmul.f32 %v816, %v855
    %v857 = vrcp.pop %v836
    %v858 = vmul.f32 %v818, %v857
    %v859 = vrcp.pop %v839
    %v860 = vmul.f32 %v820, %v859
    %v861 = vrcp.pop %v842
    %v862 = vmul.f32 %v822, %v861
    %v863 = vrcp.pop %v845
    %v864 = vmul.f32 %v824, %v863
    %v865 = vrcp.pop %v848
    %v866 = vmul.f32 %v826, %v865
    %v867 = vrcp.pop %v851
    %v868 = vmul.f32 %v828, %v867
    %v869 = vrcp.pop %v854
    %v870 = vmul.f32 %v830, %v869
    %871 = vrot.lane.b32.xlu0 %v144, 64
    %v872 = vpop.permute.xlu0 %871
    %v875 = vsel %vm155, %v856, 0
    %877 = vmatprep.subr.mxu0 0.0
    %878 = vmatpush1.msra.mxu0 %v872
    %879 = vmatprep.subr.mxu0 0.0
    %880 = vmatpush1.msra.mxu0 0.0
    %881 = vmatprep.subr.mxu0 0.0
    %882 = vmatpush1.msra.mxu0 0.0
    %883 = vmatprep.subr.mxu0 0.0
    %884 = vmatpush1.msra.mxu0 0.0
    %885 = vmatprep.subr.mxu0 0.0
    %886 = vmatpush1.msra.mxu0 0.0
    %887 = vmatprep.subr.mxu0 0.0
    %888 = vmatpush1.msra.mxu0 0.0
    %889 = vmatprep.subr.mxu0 0.0
    %890 = vmatpush1.msra.mxu0 0.0
    %891 = vmatprep.subr.mxu0 0.0
    %892 = vmatpush1.msra.mxu0 0.0
    %893 = vmatprep.subr.mxu0 0.0
    %894 = vmatpush1.msra.mxu0 0.0
    %895 = vmatprep.subr.mxu0 0.0
    %896 = vmatpush1.msra.mxu0 0.0
    %897 = vmatprep.subr.mxu0 0.0
    %898 = vmatpush1.msra.mxu0 0.0
    %899 = vmatprep.subr.mxu0 0.0
    %900 = vmatpush1.msra.mxu0 0.0
    %901 = vmatprep.subr.mxu0 0.0
    %902 = vmatpush1.msra.mxu0 0.0
    %903 = vmatprep.subr.mxu0 0.0
    %904 = vmatpush1.msra.mxu0 0.0
    %905 = vmatprep.subr.mxu0 0.0
    %906 = vmatpush1.msra.mxu0 0.0
    %907 = vmatprep.subr.mxu0 0.0
    %908 = vmatpush1.msra.mxu0 0.0
    %909 = vmatprep.subr.mxu0 0.0
    %910 = vmatpush1.msra.mxu0 0.0
    %911 = vmatprep.subr.mxu0 0.0
    %912 = vmatpush1.msra.mxu0 0.0
    %913 = vmatprep.subr.mxu0 0.0
    %914 = vmatpush1.msra.mxu0 0.0
    %915 = vmatprep.subr.mxu0 0.0
    %916 = vmatpush1.msra.mxu0 0.0
    %917 = vmatprep.subr.mxu0 0.0
    %918 = vmatpush1.msra.mxu0 0.0
    %919 = vmatprep.subr.mxu0 0.0
    %920 = vmatpush1.msra.mxu0 0.0
    %921 = vmatprep.subr.mxu0 0.0
    %922 = vmatpush1.msra.mxu0 0.0
    %923 = vmatprep.subr.mxu0 0.0
    %924 = vmatpush1.msra.mxu0 0.0
    %925 = vmatprep.subr.mxu0 0.0
    %926 = vmatpush1.msra.mxu0 0.0
    %927 = vmatprep.subr.mxu0 0.0
    %928 = vmatpush1.msra.mxu0 0.0
    %929 = vmatprep.subr.mxu0 0.0
    %930 = vmatpush1.msra.mxu0 0.0
    %931 = vmatprep.subr.mxu0 0.0
    %932 = vmatpush1.msra.mxu0 0.0
    %933 = vmatprep.subr.mxu0 0.0
    %934 = vmatpush1.msra.mxu0 0.0
    %935 = vmatprep.subr.mxu0 0.0
    %936 = vmatpush1.msra.mxu0 0.0
    %937 = vmatprep.subr.mxu0 0.0
    %938 = vmatpush1.msra.mxu0 0.0
    %939 = vmatprep.subr.mxu0 0.0
    %940 = vmatpush1.msra.mxu0 0.0
    %941 = vmatprep.mubr.f32.mxu0 0.0
    %942 = vmatmul.mubr.f32.gmra.mrb[0].mxu0 %v875
    %v943 = vpop.f32.mrb[0].mxu0
    %v944 = vadd.f32 0.0, %v943
    %v945 = vpop.f32.mrb[0].mxu0
    %946 = vdwg.mxu0
    %947 = vrot.lane.b32.xlu0 %v149, 64
    %v948 = vpop.permute.xlu0 %947
    %v951 = vsel %vm155, %v864, 0
    %953 = vmatprep.subr.mxu0 0.0
    %954 = vmatpush1.msra.mxu0 %v948
    %955 = vmatprep.subr.mxu0 0.0
    %956 = vmatpush1.msra.mxu0 0.0
    %957 = vmatprep.subr.mxu0 0.0
    %958 = vmatpush1.msra.mxu0 0.0
    %959 = vmatprep.subr.mxu0 0.0
    %960 = vmatpush1.msra.mxu0 0.0
    %961 = vmatprep.subr.mxu0 0.0
    %962 = vmatpush1.msra.mxu0 0.0
    %963 = vmatprep.subr.mxu0 0.0
    %964 = vmatpush1.msra.mxu0 0.0
    %965 = vmatprep.subr.mxu0 0.0
    %966 = vmatpush1.msra.mxu0 0.0
    %967 = vmatprep.subr.mxu0 0.0
    %968 = vmatpush1.msra.mxu0 0.0
    %969 = vmatprep.subr.mxu0 0.0
    %970 = vmatpush1.msra.mxu0 0.0
    %971 = vmatprep.subr.mxu0 0.0
    %972 = vmatpush1.msra.mxu0 0.0
    %973 = vmatprep.subr.mxu0 0.0
    %974 = vmatpush1.msra.mxu0 0.0
    %975 = vmatprep.subr.mxu0 0.0
    %976 = vmatpush1.msra.mxu0 0.0
    %977 = vmatprep.subr.mxu0 0.0
    %978 = vmatpush1.msra.mxu0 0.0
    %979 = vmatprep.subr.mxu0 0.0
    %980 = vmatpush1.msra.mxu0 0.0
    %981 = vmatprep.subr.mxu0 0.0
    %982 = vmatpush1.msra.mxu0 0.0
    %983 = vmatprep.subr.mxu0 0.0
    %984 = vmatpush1.msra.mxu0 0.0
    %985 = vmatprep.subr.mxu0 0.0
    %986 = vmatpush1.msra.mxu0 0.0
    %987 = vmatprep.subr.mxu0 0.0
    %988 = vmatpush1.msra.mxu0 0.0
    %989 = vmatprep.subr.mxu0 0.0
    %990 = vmatpush1.msra.mxu0 0.0
    %991 = vmatprep.subr.mxu0 0.0
    %992 = vmatpush1.msra.mxu0 0.0
    %993 = vmatprep.subr.mxu0 0.0
    %994 = vmatpush1.msra.mxu0 0.0
    %995 = vmatprep.subr.mxu0 0.0
    %996 = vmatpush1.msra.mxu0 0.0
    %997 = vmatprep.subr.mxu0 0.0
    %998 = vmatpush1.msra.mxu0 0.0
    %999 = vmatprep.subr.mxu0 0.0
    %1000 = vmatpush1.msra.mxu0 0.0
    %1001 = vmatprep.subr.mxu0 0.0
    %1002 = vmatpush1.msra.mxu0 0.0
    %1003 = vmatprep.subr.mxu0 0.0
    %1004 = vmatpush1.msra.mxu0 0.0
    %1005 = vmatprep.subr.mxu0 0.0
    %1006 = vmatpush1.msra.mxu0 0.0
    %1007 = vmatprep.subr.mxu0 0.0
    %1008 = vmatpush1.msra.mxu0 0.0
    %1009 = vmatprep.subr.mxu0 0.0
    %1010 = vmatpush1.msra.mxu0 0.0
    %1011 = vmatprep.subr.mxu0 0.0
    %1012 = vmatpush1.msra.mxu0 0.0
    %1013 = vmatprep.subr.mxu0 0.0
    %1014 = vmatpush1.msra.mxu0 0.0
    %1015 = vmatprep.subr.mxu0 0.0
    %1016 = vmatpush1.msra.mxu0 0.0
    %1017 = vmatprep.mubr.f32.mxu0 0.0
    %1018 = vmatmul.mubr.f32.gmra.mrb[0].mxu0 %v951
    %v1019 = vpop.f32.mrb[0].mxu0
    %v1020 = vadd.f32 0.0, %v1019
    %v1021 = vpop.f32.mrb[0].mxu0
    %1022 = vdwg.mxu0
    %1023 = vrot.lane.b32.xlu0 %v144, 56
    %v1024 = vpop.permute.xlu0 %1023
    %v1027 = vsel %vm155, %v858, 0
    %1029 = vmatprep.subr.mxu0 0.0
    %1030 = vmatpush1.msra.mxu0 %v1024
    %1031 = vmatprep.subr.mxu0 0.0
    %1032 = vmatpush1.msra.mxu0 0.0
    %1033 = vmatprep.subr.mxu0 0.0
    %1034 = vmatpush1.msra.mxu0 0.0
    %1035 = vmatprep.subr.mxu0 0.0
    %1036 = vmatpush1.msra.mxu0 0.0
    %1037 = vmatprep.subr.mxu0 0.0
    %1038 = vmatpush1.msra.mxu0 0.0
    %1039 = vmatprep.subr.mxu0 0.0
    %1040 = vmatpush1.msra.mxu0 0.0
    %1041 = vmatprep.subr.mxu0 0.0
    %1042 = vmatpush1.msra.mxu0 0.0
    %1043 = vmatprep.subr.mxu0 0.0
    %1044 = vmatpush1.msra.mxu0 0.0
    %1045 = vmatprep.subr.mxu0 0.0
    %1046 = vmatpush1.msra.mxu0 0.0
    %1047 = vmatprep.subr.mxu0 0.0
    %1048 = vmatpush1.msra.mxu0 0.0
    %1049 = vmatprep.subr.mxu0 0.0
    %1050 = vmatpush1.msra.mxu0 0.0
    %1051 = vmatprep.subr.mxu0 0.0
    %1052 = vmatpush1.msra.mxu0 0.0
    %1053 = vmatprep.subr.mxu0 0.0
    %1054 = vmatpush1.msra.mxu0 0.0
    %1055 = vmatprep.subr.mxu0 0.0
    %1056 = vmatpush1.msra.mxu0 0.0
    %1057 = vmatprep.subr.mxu0 0.0
    %1058 = vmatpush1.msra.mxu0 0.0
    %1059 = vmatprep.subr.mxu0 0.0
    %1060 = vmatpush1.msra.mxu0 0.0
    %1061 = vmatprep.subr.mxu0 0.0
    %1062 = vmatpush1.msra.mxu0 0.0
    %1063 = vmatprep.subr.mxu0 0.0
    %1064 = vmatpush1.msra.mxu0 0.0
    %1065 = vmatprep.subr.mxu0 0.0
    %1066 = vmatpush1.msra.mxu0 0.0
    %1067 = vmatprep.subr.mxu0 0.0
    %1068 = vmatpush1.msra.mxu0 0.0
    %1069 = vmatprep.subr.mxu0 0.0
    %1070 = vmatpush1.msra.mxu0 0.0
    %1071 = vmatprep.subr.mxu0 0.0
    %1072 = vmatpush1.msra.mxu0 0.0
    %1073 = vmatprep.subr.mxu0 0.0
    %1074 = vmatpush1.msra.mxu0 0.0
    %1075 = vmatprep.subr.mxu0 0.0
    %1076 = vmatpush1.msra.mxu0 0.0
    %1077 = vmatprep.subr.mxu0 0.0
    %1078 = vmatpush1.msra.mxu0 0.0
    %1079 = vmatprep.subr.mxu0 0.0
    %1080 = vmatpush1.msra.mxu0 0.0
    %1081 = vmatprep.subr.mxu0 0.0
    %1082 = vmatpush1.msra.mxu0 0.0
    %1083 = vmatprep.subr.mxu0 0.0
    %1084 = vmatpush1.msra.mxu0 0.0
    %1085 = vmatprep.subr.mxu0 0.0
    %1086 = vmatpush1.msra.mxu0 0.0
    %1087 = vmatprep.subr.mxu0 0.0
    %1088 = vmatpush1.msra.mxu0 0.0
    %1089 = vmatprep.subr.mxu0 0.0
    %1090 = vmatpush1.msra.mxu0 0.0
    %1091 = vmatprep.subr.mxu0 0.0
    %1092 = vmatpush1.msra.mxu0 0.0
    %1093 = vmatprep.mubr.f32.mxu0 0.0
    %1094 = vmatmul.mubr.f32.gmra.mrb[0].mxu0 %v1027
    %v1095 = vpop.f32.mrb[0].mxu0
    %v1096 = vadd.f32 0.0, %v1095
    %v1097 = vpop.f32.mrb[0].mxu0
    %1098 = vdwg.mxu0
    %1099 = vrot.lane.b32.xlu0 %v149, 56
    %v1100 = vpop.permute.xlu0 %1099
    %v1103 = vsel %vm155, %v866, 0
    %1105 = vmatprep.subr.mxu0 0.0
    %1106 = vmatpush1.msra.mxu0 %v1100
    %1107 = vmatprep.subr.mxu0 0.0
    %1108 = vmatpush1.msra.mxu0 0.0
    %1109 = vmatprep.subr.mxu0 0.0
    %1110 = vmatpush1.msra.mxu0 0.0
    %1111 = vmatprep.subr.mxu0 0.0
    %1112 = vmatpush1.msra.mxu0 0.0
    %1113 = vmatprep.subr.mxu0 0.0
    %1114 = vmatpush1.msra.mxu0 0.0
    %1115 = vmatprep.subr.mxu0 0.0
    %1116 = vmatpush1.msra.mxu0 0.0
    %1117 = vmatprep.subr.mxu0 0.0
    %1118 = vmatpush1.msra.mxu0 0.0
    %1119 = vmatprep.subr.mxu0 0.0
    %1120 = vmatpush1.msra.mxu0 0.0
    %1121 = vmatprep.subr.mxu0 0.0
    %1122 = vmatpush1.msra.mxu0 0.0
    %1123 = vmatprep.subr.mxu0 0.0
    %1124 = vmatpush1.msra.mxu0 0.0
    %1125 = vmatprep.subr.mxu0 0.0
    %1126 = vmatpush1.msra.mxu0 0.0
    %1127 = vmatprep.subr.mxu0 0.0
    %1128 = vmatpush1.msra.mxu0 0.0
    %1129 = vmatprep.subr.mxu0 0.0
    %1130 = vmatpush1.msra.mxu0 0.0
    %1131 = vmatprep.subr.mxu0 0.0
    %1132 = vmatpush1.msra.mxu0 0.0
    %1133 = vmatprep.subr.mxu0 0.0
    %1134 = vmatpush1.msra.mxu0 0.0
    %1135 = vmatprep.subr.mxu0 0.0
    %1136 = vmatpush1.msra.mxu0 0.0
    %1137 = vmatprep.subr.mxu0 0.0
    %1138 = vmatpush1.msra.mxu0 0.0
    %1139 = vmatprep.subr.mxu0 0.0
    %1140 = vmatpush1.msra.mxu0 0.0
    %1141 = vmatprep.subr.mxu0 0.0
    %1142 = vmatpush1.msra.mxu0 0.0
    %1143 = vmatprep.subr.mxu0 0.0
    %1144 = vmatpush1.msra.mxu0 0.0
    %1145 = vmatprep.subr.mxu0 0.0
    %1146 = vmatpush1.msra.mxu0 0.0
    %1147 = vmatprep.subr.mxu0 0.0
    %1148 = vmatpush1.msra.mxu0 0.0
    %1149 = vmatprep.subr.mxu0 0.0
    %1150 = vmatpush1.msra.mxu0 0.0
    %1151 = vmatprep.subr.mxu0 0.0
    %1152 = vmatpush1.msra.mxu0 0.0
    %1153 = vmatprep.subr.mxu0 0.0
    %1154 = vmatpush1.msra.mxu0 0.0
    %1155 = vmatprep.subr.mxu0 0.0
    %1156 = vmatpush1.msra.mxu0 0.0
    %1157 = vmatprep.subr.mxu0 0.0
    %1158 = vmatpush1.msra.mxu0 0.0
    %1159 = vmatprep.subr.mxu0 0.0
    %1160 = vmatpush1.msra.mxu0 0.0
    %1161 = vmatprep.subr.mxu0 0.0
    %1162 = vmatpush1.msra.mxu0 0.0
    %1163 = vmatprep.subr.mxu0 0.0
    %1164 = vmatpush1.msra.mxu0 0.0
    %1165 = vmatprep.subr.mxu0 0.0
    %1166 = vmatpush1.msra.mxu0 0.0
    %1167 = vmatprep.subr.mxu0 0.0
    %1168 = vmatpush1.msra.mxu0 0.0
    %1169 = vmatprep.mubr.f32.mxu0 0.0
    %1170 = vmatmul.mubr.f32.gmra.mrb[0].mxu0 %v1103
    %v1171 = vpop.f32.mrb[0].mxu0
    %v1172 = vadd.f32 0.0, %v1171
    %v1173 = vpop.f32.mrb[0].mxu0
    %1174 = vdwg.mxu0
    %1175 = vrot.lane.b32.xlu0 %v144, 48
    %v1176 = vpop.permute.xlu0 %1175
    %v1179 = vsel %vm155, %v860, 0
    %1181 = vmatprep.subr.mxu0 0.0
    %1182 = vmatpush1.msra.mxu0 %v1176
    %1183 = vmatprep.subr.mxu0 0.0
    %1184 = vmatpush1.msra.mxu0 0.0
    %1185 = vmatprep.subr.mxu0 0.0
    %1186 = vmatpush1.msra.mxu0 0.0
    %1187 = vmatprep.subr.mxu0 0.0
    %1188 = vmatpush1.msra.mxu0 0.0
    %1189 = vmatprep.subr.mxu0 0.0
    %1190 = vmatpush1.msra.mxu0 0.0
    %1191 = vmatprep.subr.mxu0 0.0
    %1192 = vmatpush1.msra.mxu0 0.0
    %1193 = vmatprep.subr.mxu0 0.0
    %1194 = vmatpush1.msra.mxu0 0.0
    %1195 = vmatprep.subr.mxu0 0.0
    %1196 = vmatpush1.msra.mxu0 0.0
    %1197 = vmatprep.subr.mxu0 0.0
    %1198 = vmatpush1.msra.mxu0 0.0
    %1199 = vmatprep.subr.mxu0 0.0
    %1200 = vmatpush1.msra.mxu0 0.0
    %1201 = vmatprep.subr.mxu0 0.0
    %1202 = vmatpush1.msra.mxu0 0.0
    %1203 = vmatprep.subr.mxu0 0.0
    %1204 = vmatpush1.msra.mxu0 0.0
    %1205 = vmatprep.subr.mxu0 0.0
    %1206 = vmatpush1.msra.mxu0 0.0
    %1207 = vmatprep.subr.mxu0 0.0
    %1208 = vmatpush1.msra.mxu0 0.0
    %1209 = vmatprep.subr.mxu0 0.0
    %1210 = vmatpush1.msra.mxu0 0.0
    %1211 = vmatprep.subr.mxu0 0.0
    %1212 = vmatpush1.msra.mxu0 0.0
    %1213 = vmatprep.subr.mxu0 0.0
    %1214 = vmatpush1.msra.mxu0 0.0
    %1215 = vmatprep.subr.mxu0 0.0
    %1216 = vmatpush1.msra.mxu0 0.0
    %1217 = vmatprep.subr.mxu0 0.0
    %1218 = vmatpush1.msra.mxu0 0.0
    %1219 = vmatprep.subr.mxu0 0.0
    %1220 = vmatpush1.msra.mxu0 0.0
    %1221 = vmatprep.subr.mxu0 0.0
    %1222 = vmatpush1.msra.mxu0 0.0
    %1223 = vmatprep.subr.mxu0 0.0
    %1224 = vmatpush1.msra.mxu0 0.0
    %1225 = vmatprep.subr.mxu0 0.0
    %1226 = vmatpush1.msra.mxu0 0.0
    %1227 = vmatprep.subr.mxu0 0.0
    %1228 = vmatpush1.msra.mxu0 0.0
    %1229 = vmatprep.subr.mxu0 0.0
    %1230 = vmatpush1.msra.mxu0 0.0
    %1231 = vmatprep.subr.mxu0 0.0
    %1232 = vmatpush1.msra.mxu0 0.0
    %1233 = vmatprep.subr.mxu0 0.0
    %1234 = vmatpush1.msra.mxu0 0.0
    %1235 = vmatprep.subr.mxu0 0.0
    %1236 = vmatpush1.msra.mxu0 0.0
    %1237 = vmatprep.subr.mxu0 0.0
    %1238 = vmatpush1.msra.mxu0 0.0
    %1239 = vmatprep.subr.mxu0 0.0
    %1240 = vmatpush1.msra.mxu0 0.0
    %1241 = vmatprep.subr.mxu0 0.0
    %1242 = vmatpush1.msra.mxu0 0.0
    %1243 = vmatprep.subr.mxu0 0.0
    %1244 = vmatpush1.msra.mxu0 0.0
    %1245 = vmatprep.mubr.f32.mxu0 0.0
    %1246 = vmatmul.mubr.f32.gmra.mrb[0].mxu0 %v1179
    %v1247 = vpop.f32.mrb[0].mxu0
    %v1248 = vadd.f32 0.0, %v1247
    %v1249 = vpop.f32.mrb[0].mxu0
    %1250 = vdwg.mxu0
    %1251 = vrot.lane.b32.xlu0 %v149, 48
    %v1252 = vpop.permute.xlu0 %1251
    %v1255 = vsel %vm155, %v868, 0
    %1257 = vmatprep.subr.mxu0 0.0
    %1258 = vmatpush1.msra.mxu0 %v1252
    %1259 = vmatprep.subr.mxu0 0.0
    %1260 = vmatpush1.msra.mxu0 0.0
    %1261 = vmatprep.subr.mxu0 0.0
    %1262 = vmatpush1.msra.mxu0 0.0
    %1263 = vmatprep.subr.mxu0 0.0
    %1264 = vmatpush1.msra.mxu0 0.0
    %1265 = vmatprep.subr.mxu0 0.0
    %1266 = vmatpush1.msra.mxu0 0.0
    %1267 = vmatprep.subr.mxu0 0.0
    %1268 = vmatpush1.msra.mxu0 0.0
    %1269 = vmatprep.subr.mxu0 0.0
    %1270 = vmatpush1.msra.mxu0 0.0
    %1271 = vmatprep.subr.mxu0 0.0
    %1272 = vmatpush1.msra.mxu0 0.0
    %1273 = vmatprep.subr.mxu0 0.0
    %1274 = vmatpush1.msra.mxu0 0.0
    %1275 = vmatprep.subr.mxu0 0.0
    %1276 = vmatpush1.msra.mxu0 0.0
    %1277 = vmatprep.subr.mxu0 0.0
    %1278 = vmatpush1.msra.mxu0 0.0
    %1279 = vmatprep.subr.mxu0 0.0
    %1280 = vmatpush1.msra.mxu0 0.0
    %1281 = vmatprep.subr.mxu0 0.0
    %1282 = vmatpush1.msra.mxu0 0.0
    %1283 = vmatprep.subr.mxu0 0.0
    %1284 = vmatpush1.msra.mxu0 0.0
    %1285 = vmatprep.subr.mxu0 0.0
    %1286 = vmatpush1.msra.mxu0 0.0
    %1287 = vmatprep.subr.mxu0 0.0
    %1288 = vmatpush1.msra.mxu0 0.0
    %1289 = vmatprep.subr.mxu0 0.0
    %1290 = vmatpush1.msra.mxu0 0.0
    %1291 = vmatprep.subr.mxu0 0.0
    %1292 = vmatpush1.msra.mxu0 0.0
    %1293 = vmatprep.subr.mxu0 0.0
    %1294 = vmatpush1.msra.mxu0 0.0
    %1295 = vmatprep.subr.mxu0 0.0
    %1296 = vmatpush1.msra.mxu0 0.0
    %1297 = vmatprep.subr.mxu0 0.0
    %1298 = vmatpush1.msra.mxu0 0.0
    %1299 = vmatprep.subr.mxu0 0.0
    %1300 = vmatpush1.msra.mxu0 0.0
    %1301 = vmatprep.subr.mxu0 0.0
    %1302 = vmatpush1.msra.mxu0 0.0
    %1303 = vmatprep.subr.mxu0 0.0
    %1304 = vmatpush1.msra.mxu0 0.0
    %1305 = vmatprep.subr.mxu0 0.0
    %1306 = vmatpush1.msra.mxu0 0.0
    %1307 = vmatprep.subr.mxu0 0.0
    %1308 = vmatpush1.msra.mxu0 0.0
    %1309 = vmatprep.subr.mxu0 0.0
    %1310 = vmatpush1.msra.mxu0 0.0
    %1311 = vmatprep.subr.mxu0 0.0
    %1312 = vmatpush1.msra.mxu0 0.0
    %1313 = vmatprep.subr.mxu0 0.0
    %1314 = vmatpush1.msra.mxu0 0.0
    %1315 = vmatprep.subr.mxu0 0.0
    %1316 = vmatpush1.msra.mxu0 0.0
    %1317 = vmatprep.subr.mxu0 0.0
    %1318 = vmatpush1.msra.mxu0 0.0
    %1319 = vmatprep.subr.mxu0 0.0
    %1320 = vmatpush1.msra.mxu0 0.0
    %1321 = vmatprep.mubr.f32.mxu0 0.0
    %1322 = vmatmul.mubr.f32.gmra.mrb[0].mxu0 %v1255
    %v1323 = vpop.f32.mrb[0].mxu0
    %v1324 = vadd.f32 0.0, %v1323
    %v1325 = vpop.f32.mrb[0].mxu0
    %1326 = vdwg.mxu0
    %1327 = vrot.lane.b32.xlu0 %v144, 40
    %v1328 = vpop.permute.xlu0 %1327
    %v1331 = vsel %vm155, %v862, 0
    %1333 = vmatprep.subr.mxu0 0.0
    %1334 = vmatpush1.msra.mxu0 %v1328
    %1335 = vmatprep.subr.mxu0 0.0
    %1336 = vmatpush1.msra.mxu0 0.0
    %1337 = vmatprep.subr.mxu0 0.0
    %1338 = vmatpush1.msra.mxu0 0.0
    %1339 = vmatprep.subr.mxu0 0.0
    %1340 = vmatpush1.msra.mxu0 0.0
    %1341 = vmatprep.subr.mxu0 0.0
    %1342 = vmatpush1.msra.mxu0 0.0
    %1343 = vmatprep.subr.mxu0 0.0
    %1344 = vmatpush1.msra.mxu0 0.0
    %1345 = vmatprep.subr.mxu0 0.0
    %1346 = vmatpush1.msra.mxu0 0.0
    %1347 = vmatprep.subr.mxu0 0.0
    %1348 = vmatpush1.msra.mxu0 0.0
    %1349 = vmatprep.subr.mxu0 0.0
    %1350 = vmatpush1.msra.mxu0 0.0
    %1351 = vmatprep.subr.mxu0 0.0
    %1352 = vmatpush1.msra.mxu0 0.0
    %1353 = vmatprep.subr.mxu0 0.0
    %1354 = vmatpush1.msra.mxu0 0.0
    %1355 = vmatprep.subr.mxu0 0.0
    %1356 = vmatpush1.msra.mxu0 0.0
    %1357 = vmatprep.subr.mxu0 0.0
    %1358 = vmatpush1.msra.mxu0 0.0
    %1359 = vmatprep.subr.mxu0 0.0
    %1360 = vmatpush1.msra.mxu0 0.0
    %1361 = vmatprep.subr.mxu0 0.0
    %1362 = vmatpush1.msra.mxu0 0.0
    %1363 = vmatprep.subr.mxu0 0.0
    %1364 = vmatpush1.msra.mxu0 0.0
    %1365 = vmatprep.subr.mxu0 0.0
    %1366 = vmatpush1.msra.mxu0 0.0
    %1367 = vmatprep.subr.mxu0 0.0
    %1368 = vmatpush1.msra.mxu0 0.0
    %1369 = vmatprep.subr.mxu0 0.0
    %1370 = vmatpush1.msra.mxu0 0.0
    %1371 = vmatprep.subr.mxu0 0.0
    %1372 = vmatpush1.msra.mxu0 0.0
    %1373 = vmatprep.subr.mxu0 0.0
    %1374 = vmatpush1.msra.mxu0 0.0
    %1375 = vmatprep.subr.mxu0 0.0
    %1376 = vmatpush1.msra.mxu0 0.0
    %1377 = vmatprep.subr.mxu0 0.0
    %1378 = vmatpush1.msra.mxu0 0.0
    %1379 = vmatprep.subr.mxu0 0.0
    %1380 = vmatpush1.msra.mxu0 0.0
    %1381 = vmatprep.subr.mxu0 0.0
    %1382 = vmatpush1.msra.mxu0 0.0
    %1383 = vmatprep.subr.mxu0 0.0
    %1384 = vmatpush1.msra.mxu0 0.0
    %1385 = vmatprep.subr.mxu0 0.0
    %1386 = vmatpush1.msra.mxu0 0.0
    %1387 = vmatprep.subr.mxu0 0.0
    %1388 = vmatpush1.msra.mxu0 0.0
    %1389 = vmatprep.subr.mxu0 0.0
    %1390 = vmatpush1.msra.mxu0 0.0
    %1391 = vmatprep.subr.mxu0 0.0
    %1392 = vmatpush1.msra.mxu0 0.0
    %1393 = vmatprep.subr.mxu0 0.0
    %1394 = vmatpush1.msra.mxu0 0.0
    %1395 = vmatprep.subr.mxu0 0.0
    %1396 = vmatpush1.msra.mxu0 0.0
    %1397 = vmatprep.mubr.f32.mxu0 0.0
    %1398 = vmatmul.mubr.f32.gmra.mrb[0].mxu0 %v1331
    %v1399 = vpop.f32.mrb[0].mxu0
    %v1400 = vadd.f32 0.0, %v1399
    %v1401 = vpop.f32.mrb[0].mxu0
    %1402 = vdwg.mxu0
    %1403 = vrot.lane.b32.xlu0 %v149, 40
    %v1404 = vpop.permute.xlu0 %1403
    %v1407 = vsel %vm155, %v870, 0
    %1409 = vmatprep.subr.mxu0 0.0
    %1410 = vmatpush1.msra.mxu0 %v1404
    %1411 = vmatprep.subr.mxu0 0.0
    %1412 = vmatpush1.msra.mxu0 0.0
    %1413 = vmatprep.subr.mxu0 0.0
    %1414 = vmatpush1.msra.mxu0 0.0
    %1415 = vmatprep.subr.mxu0 0.0
    %1416 = vmatpush1.msra.mxu0 0.0
    %1417 = vmatprep.subr.mxu0 0.0
    %1418 = vmatpush1.msra.mxu0 0.0
    %1419 = vmatprep.subr.mxu0 0.0
    %1420 = vmatpush1.msra.mxu0 0.0
    %1421 = vmatprep.subr.mxu0 0.0
    %1422 = vmatpush1.msra.mxu0 0.0
    %1423 = vmatprep.subr.mxu0 0.0
    %1424 = vmatpush1.msra.mxu0 0.0
    %1425 = vmatprep.subr.mxu0 0.0
    %1426 = vmatpush1.msra.mxu0 0.0
    %1427 = vmatprep.subr.mxu0 0.0
    %1428 = vmatpush1.msra.mxu0 0.0
    %1429 = vmatprep.subr.mxu0 0.0
    %1430 = vmatpush1.msra.mxu0 0.0
    %1431 = vmatprep.subr.mxu0 0.0
    %1432 = vmatpush1.msra.mxu0 0.0
    %1433 = vmatprep.subr.mxu0 0.0
    %1434 = vmatpush1.msra.mxu0 0.0
    %1435 = vmatprep.subr.mxu0 0.0
    %1436 = vmatpush1.msra.mxu0 0.0
    %1437 = vmatprep.subr.mxu0 0.0
    %1438 = vmatpush1.msra.mxu0 0.0
    %1439 = vmatprep.subr.mxu0 0.0
    %1440 = vmatpush1.msra.mxu0 0.0
    %1441 = vmatprep.subr.mxu0 0.0
    %1442 = vmatpush1.msra.mxu0 0.0
    %1443 = vmatprep.subr.mxu0 0.0
    %1444 = vmatpush1.msra.mxu0 0.0
    %1445 = vmatprep.subr.mxu0 0.0
    %1446 = vmatpush1.msra.mxu0 0.0
    %1447 = vmatprep.subr.mxu0 0.0
    %1448 = vmatpush1.msra.mxu0 0.0
    %1449 = vmatprep.subr.mxu0 0.0
    %1450 = vmatpush1.msra.mxu0 0.0
    %1451 = vmatprep.subr.mxu0 0.0
    %1452 = vmatpush1.msra.mxu0 0.0
    %1453 = vmatprep.subr.mxu0 0.0
    %1454 = vmatpush1.msra.mxu0 0.0
    %1455 = vmatprep.subr.mxu0 0.0
    %1456 = vmatpush1.msra.mxu0 0.0
    %1457 = vmatprep.subr.mxu0 0.0
    %1458 = vmatpush1.msra.mxu0 0.0
    %1459 = vmatprep.subr.mxu0 0.0
    %1460 = vmatpush1.msra.mxu0 0.0
    %1461 = vmatprep.subr.mxu0 0.0
    %1462 = vmatpush1.msra.mxu0 0.0
    %1463 = vmatprep.subr.mxu0 0.0
    %1464 = vmatpush1.msra.mxu0 0.0
    %1465 = vmatprep.subr.mxu0 0.0
    %1466 = vmatpush1.msra.mxu0 0.0
    %1467 = vmatprep.subr.mxu0 0.0
    %1468 = vmatpush1.msra.mxu0 0.0
    %1469 = vmatprep.subr.mxu0 0.0
    %1470 = vmatpush1.msra.mxu0 0.0
    %1471 = vmatprep.subr.mxu0 0.0
    %1472 = vmatpush1.msra.mxu0 0.0
    %1473 = vmatprep.mubr.f32.mxu0 0.0
    %1474 = vmatmul.mubr.f32.gmra.mrb[0].mxu0 %v1407
    %v1475 = vpop.f32.mrb[0].mxu0
    %v1476 = vadd.f32 0.0, %v1475
    %v1477 = vpop.f32.mrb[0].mxu0
    %1478 = vdwg.mxu0
    %1481 = vrot.lane.b32.xlu0 %v1096, 8
    %v1482 = vpop.permute.xlu0 %1481
    %1483 = vrot.lane.b32.xlu0 %v1172, 8
    %v1484 = vpop.permute.xlu0 %1483
    %1489 = vrot.lane.b32.xlu0 %v1248, 16
    %v1490 = vpop.permute.xlu0 %1489
    %1491 = vrot.lane.b32.xlu0 %v1324, 16
    %v1492 = vpop.permute.xlu0 %1491
    %1497 = vrot.lane.b32.xlu0 %v1400, 24
    %v1498 = vpop.permute.xlu0 %1497
    %1499 = vrot.lane.b32.xlu0 %v1476, 24
    %v1500 = vpop.permute.xlu0 %1499
    %v1503 = vsel %vm155, %v944, %v1482
    %v1504 = vsel %vm155, %v1020, %v1484
    %vm1505 = vcmask 130048
    %v1506 = vsel %vm1505, %v1503, %v1490
    %v1507 = vsel %vm1505, %v1504, %v1492
    %vm1508 = vcmask 195584
    %v1509 = vsel %vm1508, %v1506, %v1498
    %v1510 = vsel %vm1508, %v1507, %v1500
    %v1511 = vlaneseq
    %v1512 = vshrl.u32 %v1511, 7
    %v1513 = vsub.s32 0, %v1512
    %v1514 = vrot.slane %v57, %v1513
    %1519 = vrot.lane.b32.xlu0 %v29, 32
    %v1520 = vpop.permute.xlu0 %1519
    %1521 = vrot.lane.b32.xlu0 %v30, 32
    %v1522 = vpop.permute.xlu0 %1521
    %1523 = vrot.lane.b32.xlu0 %v31, 32
    %v1524 = vpop.permute.xlu0 %1523
    %1525 = vrot.lane.b32.xlu0 %v32, 32
    %v1526 = vpop.permute.xlu0 %1525
    %v1532 = vsel %vm70, %v1509, 0
    %v1535 = vsel %vm70, %v1510, 0
    %1537 = vmatprep.subr.mxu0 0.0
    %1538 = vmatpush1.msra.mxu0 %v1520
    %1539 = vmatprep.subr.mxu0 0.0
    %1540 = vmatpush1.msra.mxu0 %v1522
    %1541 = vmatprep.subr.mxu0 0.0
    %1542 = vmatpush1.msra.mxu0 %v1524
    %1543 = vmatprep.subr.mxu0 0.0
    %1544 = vmatpush1.msra.mxu0 %v1526
    %1545 = vmatprep.subr.mxu0 0.0
    %1546 = vmatpush1.msra.mxu0 0.0
    %1547 = vmatprep.subr.mxu0 0.0
    %1548 = vmatpush1.msra.mxu0 0.0
    %1549 = vmatprep.subr.mxu0 0.0
    %1550 = vmatpush1.msra.mxu0 0.0
    %1551 = vmatprep.subr.mxu0 0.0
    %1552 = vmatpush1.msra.mxu0 0.0
    %1553 = vmatprep.subr.mxu0 0.0
    %1554 = vmatpush1.msra.mxu0 0.0
    %1555 = vmatprep.subr.mxu0 0.0
    %1556 = vmatpush1.msra.mxu0 0.0
    %1557 = vmatprep.subr.mxu0 0.0
    %1558 = vmatpush1.msra.mxu0 0.0
    %1559 = vmatprep.subr.mxu0 0.0
    %1560 = vmatpush1.msra.mxu0 0.0
    %1561 = vmatprep.subr.mxu0 0.0
    %1562 = vmatpush1.msra.mxu0 0.0
    %1563 = vmatprep.subr.mxu0 0.0
    %1564 = vmatpush1.msra.mxu0 0.0
    %1565 = vmatprep.subr.mxu0 0.0
    %1566 = vmatpush1.msra.mxu0 0.0
    %1567 = vmatprep.subr.mxu0 0.0
    %1568 = vmatpush1.msra.mxu0 0.0
    %1569 = vmatprep.subr.mxu0 0.0
    %1570 = vmatpush1.msra.mxu0 0.0
    %1571 = vmatprep.subr.mxu0 0.0
    %1572 = vmatpush1.msra.mxu0 0.0
    %1573 = vmatprep.subr.mxu0 0.0
    %1574 = vmatpush1.msra.mxu0 0.0
    %1575 = vmatprep.subr.mxu0 0.0
    %1576 = vmatpush1.msra.mxu0 0.0
    %1577 = vmatprep.subr.mxu0 0.0
    %1578 = vmatpush1.msra.mxu0 0.0
    %1579 = vmatprep.subr.mxu0 0.0
    %1580 = vmatpush1.msra.mxu0 0.0
    %1581 = vmatprep.subr.mxu0 0.0
    %1582 = vmatpush1.msra.mxu0 0.0
    %1583 = vmatprep.subr.mxu0 0.0
    %1584 = vmatpush1.msra.mxu0 0.0
    %1585 = vmatprep.subr.mxu0 0.0
    %1586 = vmatpush1.msra.mxu0 0.0
    %1587 = vmatprep.subr.mxu0 0.0
    %1588 = vmatpush1.msra.mxu0 0.0
    %1589 = vmatprep.subr.mxu0 0.0
    %1590 = vmatpush1.msra.mxu0 0.0
    %1591 = vmatprep.subr.mxu0 0.0
    %1592 = vmatpush1.msra.mxu0 0.0
    %1593 = vmatprep.subr.mxu0 0.0
    %1594 = vmatpush1.msra.mxu0 0.0
    %1595 = vmatprep.subr.mxu0 0.0
    %1596 = vmatpush1.msra.mxu0 0.0
    %1597 = vmatprep.subr.mxu0 0.0
    %1598 = vmatpush1.msra.mxu0 0.0
    %1599 = vmatprep.subr.mxu0 0.0
    %1600 = vmatpush1.msra.mxu0 0.0
    %1601 = vmatprep.mubr.f32.mxu0 0.0
    %1602 = vmatmul.mubr.f32.gmra.mrb[0].mxu0 %v1532
    %v1603 = vpop.f32.mrb[0].mxu0
    %v1604 = vadd.f32 %v1514, %v1603
    %v1605 = vpop.f32.mrb[0].mxu0
    %1606 = vmatprep.mubr.f32.mxu0 0.0
    %1607 = vmatmul.mubr.f32.gmra.mrb[0].mxu0 %v1535
    %v1608 = vpop.f32.mrb[0].mxu0
    %v1609 = vadd.f32 %v1514, %v1608
    %v1610 = vpop.f32.mrb[0].mxu0
    %1611 = vdwg.mxu0
    %v1612 = vadd.f32 %v21, %v1604
    %v1613 = vadd.f32 %v22, %v1609
    %v1614 = vsel %vm70, %v1612, 0.0
    %1615 = vadd.xlane.f32.xlu0 %v1614
    %v1616 = vpop.xlane.xlu0 %1615
    %v1617 = vsel %vm70, %v1613, 0.0
    %1618 = vadd.xlane.f32.xlu0 %v1617
    %v1619 = vpop.xlane.xlu0 %1618
    %v1620 = vrcp.pop 32.0
    %v1621 = vmul.f32 %v1616, %v1620
    %v1622 = vmul.f32 %v1619, %v1620
    %v1623 = vsub.f32 %v1612, %v1621
    %v1624 = vsub.f32 %v1613, %v1622
    %v1625 = vmul.f32 %v1623, %v1623
    %v1626 = vmul.f32 %v1624, %v1624
    %v1627 = vsel %vm70, %v1625, 0.0
    %1628 = vadd.xlane.f32.xlu0 %v1627
    %v1629 = vpop.xlane.xlu0 %1628
    %v1630 = vsel %vm70, %v1626, 0.0
    %1631 = vadd.xlane.f32.xlu0 %v1630
    %v1632 = vpop.xlane.xlu0 %1631
    %v1633 = vmul.f32 %v1629, %v1620
    %v1634 = vmul.f32 %v1632, %v1620
    %v1635 = vadd.f32 %v1633, 1e-05
    %v1636 = vadd.f32 %v1634, 1e-05
    %v1637 = vrsqrt.pop %v1635
    %v1638 = vrsqrt.pop %v1636
    %v1639 = vmul.f32 %v1623, %v1637
    %v1640 = vmul.f32 %v1624, %v1638
    %v1641 = vlaneseq
    %v1642 = vshrl.u32 %v1641, 7
    %v1643 = vsub.s32 0, %v1642
    %v1644 = vrot.slane %v60, %v1643
    %v1645 = vmul.f32 %v1639, %v1644
    %v1646 = vmul.f32 %v1640, %v1644
    %v1647 = vlaneseq
    %v1648 = vshrl.u32 %v1647, 7
    %v1649 = vsub.s32 0, %v1648
    %v1650 = vrot.slane %v61, %v1649
    %v1651 = vadd.f32 %v1645, %v1650
    %v1652 = vadd.f32 %v1646, %v1650
    %v1653 = vlaneseq
    %v1654 = vshrl.u32 %v1653, 7
    %v1655 = vsub.s32 0, %v1654
    %v1656 = vrot.slane %v55, %v1655
    %1661 = vrot.lane.b32.xlu0 %v33, 64
    %v1662 = vpop.permute.xlu0 %1661
    %1663 = vrot.lane.b32.xlu0 %v34, 64
    %v1664 = vpop.permute.xlu0 %1663
    %1665 = vrot.lane.b32.xlu0 %v35, 64
    %v1666 = vpop.permute.xlu0 %1665
    %1667 = vrot.lane.b32.xlu0 %v36, 64
    %v1668 = vpop.permute.xlu0 %1667
    %v1674 = vsel %vm70, %v1651, 0
    %v1677 = vsel %vm70, %v1652, 0
    %1679 = vmatprep.subr.mxu0 0.0
    %1680 = vmatpush1.msra.mxu0 %v1662
    %1681 = vmatprep.subr.mxu0 0.0
    %1682 = vmatpush1.msra.mxu0 %v1664
    %1683 = vmatprep.subr.mxu0 0.0
    %1684 = vmatpush1.msra.mxu0 %v1666
    %1685 = vmatprep.subr.mxu0 0.0
    %1686 = vmatpush1.msra.mxu0 %v1668
    %1687 = vmatprep.subr.mxu0 0.0
    %1688 = vmatpush1.msra.mxu0 0.0
    %1689 = vmatprep.subr.mxu0 0.0
    %1690 = vmatpush1.msra.mxu0 0.0
    %1691 = vmatprep.subr.mxu0 0.0
    %1692 = vmatpush1.msra.mxu0 0.0
    %1693 = vmatprep.subr.mxu0 0.0
    %1694 = vmatpush1.msra.mxu0 0.0
    %1695 = vmatprep.subr.mxu0 0.0
    %1696 = vmatpush1.msra.mxu0 0.0
    %1697 = vmatprep.subr.mxu0 0.0
    %1698 = vmatpush1.msra.mxu0 0.0
    %1699 = vmatprep.subr.mxu0 0.0
    %1700 = vmatpush1.msra.mxu0 0.0
    %1701 = vmatprep.subr.mxu0 0.0
    %1702 = vmatpush1.msra.mxu0 0.0
    %1703 = vmatprep.subr.mxu0 0.0
    %1704 = vmatpush1.msra.mxu0 0.0
    %1705 = vmatprep.subr.mxu0 0.0
    %1706 = vmatpush1.msra.mxu0 0.0
    %1707 = vmatprep.subr.mxu0 0.0
    %1708 = vmatpush1.msra.mxu0 0.0
    %1709 = vmatprep.subr.mxu0 0.0
    %1710 = vmatpush1.msra.mxu0 0.0
    %1711 = vmatprep.subr.mxu0 0.0
    %1712 = vmatpush1.msra.mxu0 0.0
    %1713 = vmatprep.subr.mxu0 0.0
    %1714 = vmatpush1.msra.mxu0 0.0
    %1715 = vmatprep.subr.mxu0 0.0
    %1716 = vmatpush1.msra.mxu0 0.0
    %1717 = vmatprep.subr.mxu0 0.0
    %1718 = vmatpush1.msra.mxu0 0.0
    %1719 = vmatprep.subr.mxu0 0.0
    %1720 = vmatpush1.msra.mxu0 0.0
    %1721 = vmatprep.subr.mxu0 0.0
    %1722 = vmatpush1.msra.mxu0 0.0
    %1723 = vmatprep.subr.mxu0 0.0
    %1724 = vmatpush1.msra.mxu0 0.0
    %1725 = vmatprep.subr.mxu0 0.0
    %1726 = vmatpush1.msra.mxu0 0.0
    %1727 = vmatprep.subr.mxu0 0.0
    %1728 = vmatpush1.msra.mxu0 0.0
    %1729 = vmatprep.subr.mxu0 0.0
    %1730 = vmatpush1.msra.mxu0 0.0
    %1731 = vmatprep.subr.mxu0 0.0
    %1732 = vmatpush1.msra.mxu0 0.0
    %1733 = vmatprep.subr.mxu0 0.0
    %1734 = vmatpush1.msra.mxu0 0.0
    %1735 = vmatprep.subr.mxu0 0.0
    %1736 = vmatpush1.msra.mxu0 0.0
    %1737 = vmatprep.subr.mxu0 0.0
    %1738 = vmatpush1.msra.mxu0 0.0
    %1739 = vmatprep.subr.mxu0 0.0
    %1740 = vmatpush1.msra.mxu0 0.0
    %1741 = vmatprep.subr.mxu0 0.0
    %1742 = vmatpush1.msra.mxu0 0.0
    %1743 = vmatprep.mubr.f32.mxu0 0.0
    %1744 = vmatmul.mubr.f32.gmra.mrb[0].mxu0 %v1674
    %v1745 = vpop.f32.mrb[0].mxu0
    %v1746 = vadd.f32 %v1656, %v1745
    %v1747 = vpop.f32.mrb[0].mxu0
    %1748 = vmatprep.mubr.f32.mxu0 0.0
    %1749 = vmatmul.mubr.f32.gmra.mrb[0].mxu0 %v1677
    %v1750 = vpop.f32.mrb[0].mxu0
    %v1751 = vadd.f32 %v1656, %v1750
    %v1752 = vpop.f32.mrb[0].mxu0
    %1753 = vdwg.mxu0
    %v1754 = vlaneseq
    %v1755 = vshrl.u32 %v1754, 7
    %v1756 = vsub.s32 0, %v1755
    %v1757 = vrot.slane %v56, %v1756
    %v1759 = vsel %vm70, %v23, 0
    %v1762 = vsel %vm70, %v24, 0
    %1764 = vmatprep.subr.mxu0 0.0
    %1765 = vmatpush1.msra.mxu0 %v33
    %1766 = vmatprep.subr.mxu0 0.0
    %1767 = vmatpush1.msra.mxu0 %v34
    %1768 = vmatprep.subr.mxu0 0.0
    %1769 = vmatpush1.msra.mxu0 %v35
    %1770 = vmatprep.subr.mxu0 0.0
    %1771 = vmatpush1.msra.mxu0 %v36
    %1772 = vmatprep.subr.mxu0 0.0
    %1773 = vmatpush1.msra.mxu0 0.0
    %1774 = vmatprep.subr.mxu0 0.0
    %1775 = vmatpush1.msra.mxu0 0.0
    %1776 = vmatprep.subr.mxu0 0.0
    %1777 = vmatpush1.msra.mxu0 0.0
    %1778 = vmatprep.subr.mxu0 0.0
    %1779 = vmatpush1.msra.mxu0 0.0
    %1780 = vmatprep.subr.mxu0 0.0
    %1781 = vmatpush1.msra.mxu0 0.0
    %1782 = vmatprep.subr.mxu0 0.0
    %1783 = vmatpush1.msra.mxu0 0.0
    %1784 = vmatprep.subr.mxu0 0.0
    %1785 = vmatpush1.msra.mxu0 0.0
    %1786 = vmatprep.subr.mxu0 0.0
    %1787 = vmatpush1.msra.mxu0 0.0
    %1788 = vmatprep.subr.mxu0 0.0
    %1789 = vmatpush1.msra.mxu0 0.0
    %1790 = vmatprep.subr.mxu0 0.0
    %1791 = vmatpush1.msra.mxu0 0.0
    %1792 = vmatprep.subr.mxu0 0.0
    %1793 = vmatpush1.msra.mxu0 0.0
    %1794 = vmatprep.subr.mxu0 0.0
    %1795 = vmatpush1.msra.mxu0 0.0
    %1796 = vmatprep.subr.mxu0 0.0
    %1797 = vmatpush1.msra.mxu0 0.0
    %1798 = vmatprep.subr.mxu0 0.0
    %1799 = vmatpush1.msra.mxu0 0.0
    %1800 = vmatprep.subr.mxu0 0.0
    %1801 = vmatpush1.msra.mxu0 0.0
    %1802 = vmatprep.subr.mxu0 0.0
    %1803 = vmatpush1.msra.mxu0 0.0
    %1804 = vmatprep.subr.mxu0 0.0
    %1805 = vmatpush1.msra.mxu0 0.0
    %1806 = vmatprep.subr.mxu0 0.0
    %1807 = vmatpush1.msra.mxu0 0.0
    %1808 = vmatprep.subr.mxu0 0.0
    %1809 = vmatpush1.msra.mxu0 0.0
    %1810 = vmatprep.subr.mxu0 0.0
    %1811 = vmatpush1.msra.mxu0 0.0
    %1812 = vmatprep.subr.mxu0 0.0
    %1813 = vmatpush1.msra.mxu0 0.0
    %1814 = vmatprep.subr.mxu0 0.0
    %1815 = vmatpush1.msra.mxu0 0.0
    %1816 = vmatprep.subr.mxu0 0.0
    %1817 = vmatpush1.msra.mxu0 0.0
    %1818 = vmatprep.subr.mxu0 0.0
    %1819 = vmatpush1.msra.mxu0 0.0
    %1820 = vmatprep.subr.mxu0 0.0
    %1821 = vmatpush1.msra.mxu0 0.0
    %1822 = vmatprep.subr.mxu0 0.0
    %1823 = vmatpush1.msra.mxu0 0.0
    %1824 = vmatprep.subr.mxu0 0.0
    %1825 = vmatpush1.msra.mxu0 0.0
    %1826 = vmatprep.subr.mxu0 0.0
    %1827 = vmatpush1.msra.mxu0 0.0
    %1828 = vmatprep.mubr.f32.mxu0 0.0
    %1829 = vmatmul.mubr.f32.gmra.mrb[0].mxu0 %v1759
    %v1830 = vpop.f32.mrb[0].mxu0
    %v1831 = vadd.f32 %v1757, %v1830
    %v1832 = vpop.f32.mrb[0].mxu0
    %1833 = vmatprep.mubr.f32.mxu0 0.0
    %1834 = vmatmul.mubr.f32.gmra.mrb[0].mxu0 %v1762
    %v1835 = vpop.f32.mrb[0].mxu0
    %v1836 = vadd.f32 %v1757, %v1835
    %v1837 = vpop.f32.mrb[0].mxu0
    %1838 = vdwg.mxu0
    %v1840 = vsel %vm155, %v1746, 0
    %v1843 = vsel %vm155, %v1831, 0
    %1845 = vmatprep.subr.mxu0 0.0
    %1846 = vmatpush1.xpose.msra.mxu0 %v1843
    %1847 = vmatprep.subr.mxu0 0.0
    %1848 = vmatpush1.xpose.msra.mxu0 0.0
    %1849 = vmatprep.subr.mxu0 0.0
    %1850 = vmatpush1.xpose.msra.mxu0 0.0
    %1851 = vmatprep.subr.mxu0 0.0
    %1852 = vmatpush1.xpose.msra.mxu0 0.0
    %1853 = vmatprep.subr.mxu0 0.0
    %1854 = vmatpush1.xpose.msra.mxu0 0.0
    %1855 = vmatprep.subr.mxu0 0.0
    %1856 = vmatpush1.xpose.msra.mxu0 0.0
    %1857 = vmatprep.subr.mxu0 0.0
    %1858 = vmatpush1.xpose.msra.mxu0 0.0
    %1859 = vmatprep.subr.mxu0 0.0
    %1860 = vmatpush1.xpose.msra.mxu0 0.0
    %1861 = vmatprep.subr.mxu0 0.0
    %1862 = vmatpush1.xpose.msra.mxu0 0.0
    %1863 = vmatprep.subr.mxu0 0.0
    %1864 = vmatpush1.xpose.msra.mxu0 0.0
    %1865 = vmatprep.subr.mxu0 0.0
    %1866 = vmatpush1.xpose.msra.mxu0 0.0
    %1867 = vmatprep.subr.mxu0 0.0
    %1868 = vmatpush1.xpose.msra.mxu0 0.0
    %1869 = vmatprep.subr.mxu0 0.0
    %1870 = vmatpush1.xpose.msra.mxu0 0.0
    %1871 = vmatprep.subr.mxu0 0.0
    %1872 = vmatpush1.xpose.msra.mxu0 0.0
    %1873 = vmatprep.subr.mxu0 0.0
    %1874 = vmatpush1.xpose.msra.mxu0 0.0
    %1875 = vmatprep.subr.mxu0 0.0
    %1876 = vmatpush1.xpose.msra.mxu0 0.0
    %1877 = vmatprep.subr.mxu0 0.0
    %1878 = vmatpush1.xpose.msra.mxu0 0.0
    %1879 = vmatprep.subr.mxu0 0.0
    %1880 = vmatpush1.xpose.msra.mxu0 0.0
    %1881 = vmatprep.subr.mxu0 0.0
    %1882 = vmatpush1.xpose.msra.mxu0 0.0
    %1883 = vmatprep.subr.mxu0 0.0
    %1884 = vmatpush1.xpose.msra.mxu0 0.0
    %1885 = vmatprep.subr.mxu0 0.0
    %1886 = vmatpush1.xpose.msra.mxu0 0.0
    %1887 = vmatprep.subr.mxu0 0.0
    %1888 = vmatpush1.xpose.msra.mxu0 0.0
    %1889 = vmatprep.subr.mxu0 0.0
    %1890 = vmatpush1.xpose.msra.mxu0 0.0
    %1891 = vmatprep.subr.mxu0 0.0
    %1892 = vmatpush1.xpose.msra.mxu0 0.0
    %1893 = vmatprep.subr.mxu0 0.0
    %1894 = vmatpush1.xpose.msra.mxu0 0.0
    %1895 = vmatprep.subr.mxu0 0.0
    %1896 = vmatpush1.xpose.msra.mxu0 0.0
    %1897 = vmatprep.subr.mxu0 0.0
    %1898 = vmatpush1.xpose.msra.mxu0 0.0
    %1899 = vmatprep.subr.mxu0 0.0
    %1900 = vmatpush1.xpose.msra.mxu0 0.0
    %1901 = vmatprep.subr.mxu0 0.0
    %1902 = vmatpush1.xpose.msra.mxu0 0.0
    %1903 = vmatprep.subr.mxu0 0.0
    %1904 = vmatpush1.xpose.msra.mxu0 0.0
    %1905 = vmatprep.subr.mxu0 0.0
    %1906 = vmatpush1.xpose.msra.mxu0 0.0
    %1907 = vmatprep.subr.mxu0 0.0
    %1908 = vmatpush1.xpose.msra.mxu0 0.0
    %1909 = vmatprep.mubr.f32.mxu0 0.0
    %1910 = vmatmul.mubr.f32.gmra.mrb[0].mxu0 %v1840
    %v1911 = vpop.f32.mrb[0].mxu0
    %v1912 = vadd.f32 0.0, %v1911
    %v1913 = vpop.f32.mrb[0].mxu0
    %1914 = vdwg.mxu0
    %v1916 = vsel %vm155, %v1751, 0
    %v1919 = vsel %vm155, %v1836, 0
    %1921 = vmatprep.subr.mxu0 0.0
    %1922 = vmatpush1.xpose.msra.mxu0 %v1919
    %1923 = vmatprep.subr.mxu0 0.0
    %1924 = vmatpush1.xpose.msra.mxu0 0.0
    %1925 = vmatprep.subr.mxu0 0.0
    %1926 = vmatpush1.xpose.msra.mxu0 0.0
    %1927 = vmatprep.subr.mxu0 0.0
    %1928 = vmatpush1.xpose.msra.mxu0 0.0
    %1929 = vmatprep.subr.mxu0 0.0
    %1930 = vmatpush1.xpose.msra.mxu0 0.0
    %1931 = vmatprep.subr.mxu0 0.0
    %1932 = vmatpush1.xpose.msra.mxu0 0.0
    %1933 = vmatprep.subr.mxu0 0.0
    %1934 = vmatpush1.xpose.msra.mxu0 0.0
    %1935 = vmatprep.subr.mxu0 0.0
    %1936 = vmatpush1.xpose.msra.mxu0 0.0
    %1937 = vmatprep.subr.mxu0 0.0
    %1938 = vmatpush1.xpose.msra.mxu0 0.0
    %1939 = vmatprep.subr.mxu0 0.0
    %1940 = vmatpush1.xpose.msra.mxu0 0.0
    %1941 = vmatprep.subr.mxu0 0.0
    %1942 = vmatpush1.xpose.msra.mxu0 0.0
    %1943 = vmatprep.subr.mxu0 0.0
    %1944 = vmatpush1.xpose.msra.mxu0 0.0
    %1945 = vmatprep.subr.mxu0 0.0
    %1946 = vmatpush1.xpose.msra.mxu0 0.0
    %1947 = vmatprep.subr.mxu0 0.0
    %1948 = vmatpush1.xpose.msra.mxu0 0.0
    %1949 = vmatprep.subr.mxu0 0.0
    %1950 = vmatpush1.xpose.msra.mxu0 0.0
    %1951 = vmatprep.subr.mxu0 0.0
    %1952 = vmatpush1.xpose.msra.mxu0 0.0
    %1953 = vmatprep.subr.mxu0 0.0
    %1954 = vmatpush1.xpose.msra.mxu0 0.0
    %1955 = vmatprep.subr.mxu0 0.0
    %1956 = vmatpush1.xpose.msra.mxu0 0.0
    %1957 = vmatprep.subr.mxu0 0.0
    %1958 = vmatpush1.xpose.msra.mxu0 0.0
    %1959 = vmatprep.subr.mxu0 0.0
    %1960 = vmatpush1.xpose.msra.mxu0 0.0
    %1961 = vmatprep.subr.mxu0 0.0
    %1962 = vmatpush1.xpose.msra.mxu0 0.0
    %1963 = vmatprep.subr.mxu0 0.0
    %1964 = vmatpush1.xpose.msra.mxu0 0.0
    %1965 = vmatprep.subr.mxu0 0.0
    %1966 = vmatpush1.xpose.msra.mxu0 0.0
    %1967 = vmatprep.subr.mxu0 0.0
    %1968 = vmatpush1.xpose.msra.mxu0 0.0
    %1969 = vmatprep.subr.mxu0 0.0
    %1970 = vmatpush1.xpose.msra.mxu0 0.0
    %1971 = vmatprep.subr.mxu0 0.0
    %1972 = vmatpush1.xpose.msra.mxu0 0.0
    %1973 = vmatprep.subr.mxu0 0.0
    %1974 = vmatpush1.xpose.msra.mxu0 0.0
    %1975 = vmatprep.subr.mxu0 0.0
    %1976 = vmatpush1.xpose.msra.mxu0 0.0
    %1977 = vmatprep.subr.mxu0 0.0
    %1978 = vmatpush1.xpose.msra.mxu0 0.0
    %1979 = vmatprep.subr.mxu0 0.0
    %1980 = vmatpush1.xpose.msra.mxu0 0.0
    %1981 = vmatprep.subr.mxu0 0.0
    %1982 = vmatpush1.xpose.msra.mxu0 0.0
    %1983 = vmatprep.subr.mxu0 0.0
    %1984 = vmatpush1.xpose.msra.mxu0 0.0
    %1985 = vmatprep.mubr.f32.mxu0 0.0
    %1986 = vmatmul.mubr.f32.gmra.mrb[0].mxu0 %v1916
    %v1987 = vpop.f32.mrb[0].mxu0
    %v1988 = vadd.f32 0.0, %v1987
    %v1989 = vpop.f32.mrb[0].mxu0
    %1990 = vdwg.mxu0
    %1991 = vrot.lane.b32.xlu0 %v1746, 120
    %v1992 = vpop.permute.xlu0 %1991
    %1993 = vrot.lane.b32.xlu0 %v1831, 120
    %v1994 = vpop.permute.xlu0 %1993
    %v1995 = vsel %vm155, %v1992, 0
    %v1997 = vsel %vm155, %v1994, 0
    %1999 = vmatprep.subr.mxu0 0.0
    %2000 = vmatpush1.xpose.msra.mxu0 %v1997
    %2001 = vmatprep.subr.mxu0 0.0
    %2002 = vmatpush1.xpose.msra.mxu0 0.0
    %2003 = vmatprep.subr.mxu0 0.0
    %2004 = vmatpush1.xpose.msra.mxu0 0.0
    %2005 = vmatprep.subr.mxu0 0.0
    %2006 = vmatpush1.xpose.msra.mxu0 0.0
    %2007 = vmatprep.subr.mxu0 0.0
    %2008 = vmatpush1.xpose.msra.mxu0 0.0
    %2009 = vmatprep.subr.mxu0 0.0
    %2010 = vmatpush1.xpose.msra.mxu0 0.0
    %2011 = vmatprep.subr.mxu0 0.0
    %2012 = vmatpush1.xpose.msra.mxu0 0.0
    %2013 = vmatprep.subr.mxu0 0.0
    %2014 = vmatpush1.xpose.msra.mxu0 0.0
    %2015 = vmatprep.subr.mxu0 0.0
    %2016 = vmatpush1.xpose.msra.mxu0 0.0
    %2017 = vmatprep.subr.mxu0 0.0
    %2018 = vmatpush1.xpose.msra.mxu0 0.0
    %2019 = vmatprep.subr.mxu0 0.0
    %2020 = vmatpush1.xpose.msra.mxu0 0.0
    %2021 = vmatprep.subr.mxu0 0.0
    %2022 = vmatpush1.xpose.msra.mxu0 0.0
    %2023 = vmatprep.subr.mxu0 0.0
    %2024 = vmatpush1.xpose.msra.mxu0 0.0
    %2025 = vmatprep.subr.mxu0 0.0
    %2026 = vmatpush1.xpose.msra.mxu0 0.0
    %2027 = vmatprep.subr.mxu0 0.0
    %2028 = vmatpush1.xpose.msra.mxu0 0.0
    %2029 = vmatprep.subr.mxu0 0.0
    %2030 = vmatpush1.xpose.msra.mxu0 0.0
    %2031 = vmatprep.subr.mxu0 0.0
    %2032 = vmatpush1.xpose.msra.mxu0 0.0
    %2033 = vmatprep.subr.mxu0 0.0
    %2034 = vmatpush1.xpose.msra.mxu0 0.0
    %2035 = vmatprep.subr.mxu0 0.0
    %2036 = vmatpush1.xpose.msra.mxu0 0.0
    %2037 = vmatprep.subr.mxu0 0.0
    %2038 = vmatpush1.xpose.msra.mxu0 0.0
    %2039 = vmatprep.subr.mxu0 0.0
    %2040 = vmatpush1.xpose.msra.mxu0 0.0
    %2041 = vmatprep.subr.mxu0 0.0
    %2042 = vmatpush1.xpose.msra.mxu0 0.0
    %2043 = vmatprep.subr.mxu0 0.0
    %2044 = vmatpush1.xpose.msra.mxu0 0.0
    %2045 = vmatprep.subr.mxu0 0.0
    %2046 = vmatpush1.xpose.msra.mxu0 0.0
    %2047 = vmatprep.subr.mxu0 0.0
    %2048 = vmatpush1.xpose.msra.mxu0 0.0
    %2049 = vmatprep.subr.mxu0 0.0
    %2050 = vmatpush1.xpose.msra.mxu0 0.0
    %2051 = vmatprep.subr.mxu0 0.0
    %2052 = vmatpush1.xpose.msra.mxu0 0.0
    %2053 = vmatprep.subr.mxu0 0.0
    %2054 = vmatpush1.xpose.msra.mxu0 0.0
    %2055 = vmatprep.subr.mxu0 0.0
    %2056 = vmatpush1.xpose.msra.mxu0 0.0
    %2057 = vmatprep.subr.mxu0 0.0
    %2058 = vmatpush1.xpose.msra.mxu0 0.0
    %2059 = vmatprep.subr.mxu0 0.0
    %2060 = vmatpush1.xpose.msra.mxu0 0.0
    %2061 = vmatprep.subr.mxu0 0.0
    %2062 = vmatpush1.xpose.msra.mxu0 0.0
    %2063 = vmatprep.mubr.f32.mxu0 0.0
    %2064 = vmatmul.mubr.f32.gmra.mrb[0].mxu0 %v1995
    %v2065 = vpop.f32.mrb[0].mxu0
    %v2066 = vadd.f32 0.0, %v2065
    %v2067 = vpop.f32.mrb[0].mxu0
    %2068 = vdwg.mxu0
    %2069 = vrot.lane.b32.xlu0 %v1751, 120
    %v2070 = vpop.permute.xlu0 %2069
    %2071 = vrot.lane.b32.xlu0 %v1836, 120
    %v2072 = vpop.permute.xlu0 %2071
    %v2073 = vsel %vm155, %v2070, 0
    %v2075 = vsel %vm155, %v2072, 0
    %2077 = vmatprep.subr.mxu0 0.0
    %2078 = vmatpush1.xpose.msra.mxu0 %v2075
    %2079 = vmatprep.subr.mxu0 0.0
    %2080 = vmatpush1.xpose.msra.mxu0 0.0
    %2081 = vmatprep.subr.mxu0 0.0
    %2082 = vmatpush1.xpose.msra.mxu0 0.0
    %2083 = vmatprep.subr.mxu0 0.0
    %2084 = vmatpush1.xpose.msra.mxu0 0.0
    %2085 = vmatprep.subr.mxu0 0.0
    %2086 = vmatpush1.xpose.msra.mxu0 0.0
    %2087 = vmatprep.subr.mxu0 0.0
    %2088 = vmatpush1.xpose.msra.mxu0 0.0
    %2089 = vmatprep.subr.mxu0 0.0
    %2090 = vmatpush1.xpose.msra.mxu0 0.0
    %2091 = vmatprep.subr.mxu0 0.0
    %2092 = vmatpush1.xpose.msra.mxu0 0.0
    %2093 = vmatprep.subr.mxu0 0.0
    %2094 = vmatpush1.xpose.msra.mxu0 0.0
    %2095 = vmatprep.subr.mxu0 0.0
    %2096 = vmatpush1.xpose.msra.mxu0 0.0
    %2097 = vmatprep.subr.mxu0 0.0
    %2098 = vmatpush1.xpose.msra.mxu0 0.0
    %2099 = vmatprep.subr.mxu0 0.0
    %2100 = vmatpush1.xpose.msra.mxu0 0.0
    %2101 = vmatprep.subr.mxu0 0.0
    %2102 = vmatpush1.xpose.msra.mxu0 0.0
    %2103 = vmatprep.subr.mxu0 0.0
    %2104 = vmatpush1.xpose.msra.mxu0 0.0
    %2105 = vmatprep.subr.mxu0 0.0
    %2106 = vmatpush1.xpose.msra.mxu0 0.0
    %2107 = vmatprep.subr.mxu0 0.0
    %2108 = vmatpush1.xpose.msra.mxu0 0.0
    %2109 = vmatprep.subr.mxu0 0.0
    %2110 = vmatpush1.xpose.msra.mxu0 0.0
    %2111 = vmatprep.subr.mxu0 0.0
    %2112 = vmatpush1.xpose.msra.mxu0 0.0
    %2113 = vmatprep.subr.mxu0 0.0
    %2114 = vmatpush1.xpose.msra.mxu0 0.0
    %2115 = vmatprep.subr.mxu0 0.0
    %2116 = vmatpush1.xpose.msra.mxu0 0.0
    %2117 = vmatprep.subr.mxu0 0.0
    %2118 = vmatpush1.xpose.msra.mxu0 0.0
    %2119 = vmatprep.subr.mxu0 0.0
    %2120 = vmatpush1.xpose.msra.mxu0 0.0
    %2121 = vmatprep.subr.mxu0 0.0
    %2122 = vmatpush1.xpose.msra.mxu0 0.0
    %2123 = vmatprep.subr.mxu0 0.0
    %2124 = vmatpush1.xpose.msra.mxu0 0.0
    %2125 = vmatprep.subr.mxu0 0.0
    %2126 = vmatpush1.xpose.msra.mxu0 0.0
    %2127 = vmatprep.subr.mxu0 0.0
    %2128 = vmatpush1.xpose.msra.mxu0 0.0
    %2129 = vmatprep.subr.mxu0 0.0
    %2130 = vmatpush1.xpose.msra.mxu0 0.0
    %2131 = vmatprep.subr.mxu0 0.0
    %2132 = vmatpush1.xpose.msra.mxu0 0.0
    %2133 = vmatprep.subr.mxu0 0.0
    %2134 = vmatpush1.xpose.msra.mxu0 0.0
    %2135 = vmatprep.subr.mxu0 0.0
    %2136 = vmatpush1.xpose.msra.mxu0 0.0
    %2137 = vmatprep.subr.mxu0 0.0
    %2138 = vmatpush1.xpose.msra.mxu0 0.0
    %2139 = vmatprep.subr.mxu0 0.0
    %2140 = vmatpush1.xpose.msra.mxu0 0.0
    %2141 = vmatprep.mubr.f32.mxu0 0.0
    %2142 = vmatmul.mubr.f32.gmra.mrb[0].mxu0 %v2073
    %v2143 = vpop.f32.mrb[0].mxu0
    %v2144 = vadd.f32 0.0, %v2143
    %v2145 = vpop.f32.mrb[0].mxu0
    %2146 = vdwg.mxu0
    %2147 = vrot.lane.b32.xlu0 %v1746, 112
    %v2148 = vpop.permute.xlu0 %2147
    %2149 = vrot.lane.b32.xlu0 %v1831, 112
    %v2150 = vpop.permute.xlu0 %2149
    %v2151 = vsel %vm155, %v2148, 0
    %v2153 = vsel %vm155, %v2150, 0
    %2155 = vmatprep.subr.mxu0 0.0
    %2156 = vmatpush1.xpose.msra.mxu0 %v2153
    %2157 = vmatprep.subr.mxu0 0.0
    %2158 = vmatpush1.xpose.msra.mxu0 0.0
    %2159 = vmatprep.subr.mxu0 0.0
    %2160 = vmatpush1.xpose.msra.mxu0 0.0
    %2161 = vmatprep.subr.mxu0 0.0
    %2162 = vmatpush1.xpose.msra.mxu0 0.0
    %2163 = vmatprep.subr.mxu0 0.0
    %2164 = vmatpush1.xpose.msra.mxu0 0.0
    %2165 = vmatprep.subr.mxu0 0.0
    %2166 = vmatpush1.xpose.msra.mxu0 0.0
    %2167 = vmatprep.subr.mxu0 0.0
    %2168 = vmatpush1.xpose.msra.mxu0 0.0
    %2169 = vmatprep.subr.mxu0 0.0
    %2170 = vmatpush1.xpose.msra.mxu0 0.0
    %2171 = vmatprep.subr.mxu0 0.0
    %2172 = vmatpush1.xpose.msra.mxu0 0.0
    %2173 = vmatprep.subr.mxu0 0.0
    %2174 = vmatpush1.xpose.msra.mxu0 0.0
    %2175 = vmatprep.subr.mxu0 0.0
    %2176 = vmatpush1.xpose.msra.mxu0 0.0
    %2177 = vmatprep.subr.mxu0 0.0
    %2178 = vmatpush1.xpose.msra.mxu0 0.0
    %2179 = vmatprep.subr.mxu0 0.0
    %2180 = vmatpush1.xpose.msra.mxu0 0.0
    %2181 = vmatprep.subr.mxu0 0.0
    %2182 = vmatpush1.xpose.msra.mxu0 0.0
    %2183 = vmatprep.subr.mxu0 0.0
    %2184 = vmatpush1.xpose.msra.mxu0 0.0
    %2185 = vmatprep.subr.mxu0 0.0
    %2186 = vmatpush1.xpose.msra.mxu0 0.0
    %2187 = vmatprep.subr.mxu0 0.0
    %2188 = vmatpush1.xpose.msra.mxu0 0.0
    %2189 = vmatprep.subr.mxu0 0.0
    %2190 = vmatpush1.xpose.msra.mxu0 0.0
    %2191 = vmatprep.subr.mxu0 0.0
    %2192 = vmatpush1.xpose.msra.mxu0 0.0
    %2193 = vmatprep.subr.mxu0 0.0
    %2194 = vmatpush1.xpose.msra.mxu0 0.0
    %2195 = vmatprep.subr.mxu0 0.0
    %2196 = vmatpush1.xpose.msra.mxu0 0.0
    %2197 = vmatprep.subr.mxu0 0.0
    %2198 = vmatpush1.xpose.msra.mxu0 0.0
    %2199 = vmatprep.subr.mxu0 0.0
    %2200 = vmatpush1.xpose.msra.mxu0 0.0
    %2201 = vmatprep.subr.mxu0 0.0
    %2202 = vmatpush1.xpose.msra.mxu0 0.0
    %2203 = vmatprep.subr.mxu0 0.0
    %2204 = vmatpush1.xpose.msra.mxu0 0.0
    %2205 = vmatprep.subr.mxu0 0.0
    %2206 = vmatpush1.xpose.msra.mxu0 0.0
    %2207 = vmatprep.subr.mxu0 0.0
    %2208 = vmatpush1.xpose.msra.mxu0 0.0
    %2209 = vmatprep.subr.mxu0 0.0
    %2210 = vmatpush1.xpose.msra.mxu0 0.0
    %2211 = vmatprep.subr.mxu0 0.0
    %2212 = vmatpush1.xpose.msra.mxu0 0.0
    %2213 = vmatprep.subr.mxu0 0.0
    %2214 = vmatpush1.xpose.msra.mxu0 0.0
    %2215 = vmatprep.subr.mxu0 0.0
    %2216 = vmatpush1.xpose.msra.mxu0 0.0
    %2217 = vmatprep.subr.mxu0 0.0
    %2218 = vmatpush1.xpose.msra.mxu0 0.0
    %2219 = vmatprep.mubr.f32.mxu0 0.0
    %2220 = vmatmul.mubr.f32.gmra.mrb[0].mxu0 %v2151
    %v2221 = vpop.f32.mrb[0].mxu0
    %v2222 = vadd.f32 0.0, %v2221
    %v2223 = vpop.f32.mrb[0].mxu0
    %2224 = vdwg.mxu0
    %2225 = vrot.lane.b32.xlu0 %v1751, 112
    %v2226 = vpop.permute.xlu0 %2225
    %2227 = vrot.lane.b32.xlu0 %v1836, 112
    %v2228 = vpop.permute.xlu0 %2227
    %v2229 = vsel %vm155, %v2226, 0
    %v2231 = vsel %vm155, %v2228, 0
    %2233 = vmatprep.subr.mxu0 0.0
    %2234 = vmatpush1.xpose.msra.mxu0 %v2231
    %2235 = vmatprep.subr.mxu0 0.0
    %2236 = vmatpush1.xpose.msra.mxu0 0.0
    %2237 = vmatprep.subr.mxu0 0.0
    %2238 = vmatpush1.xpose.msra.mxu0 0.0
    %2239 = vmatprep.subr.mxu0 0.0
    %2240 = vmatpush1.xpose.msra.mxu0 0.0
    %2241 = vmatprep.subr.mxu0 0.0
    %2242 = vmatpush1.xpose.msra.mxu0 0.0
    %2243 = vmatprep.subr.mxu0 0.0
    %2244 = vmatpush1.xpose.msra.mxu0 0.0
    %2245 = vmatprep.subr.mxu0 0.0
    %2246 = vmatpush1.xpose.msra.mxu0 0.0
    %2247 = vmatprep.subr.mxu0 0.0
    %2248 = vmatpush1.xpose.msra.mxu0 0.0
    %2249 = vmatprep.subr.mxu0 0.0
    %2250 = vmatpush1.xpose.msra.mxu0 0.0
    %2251 = vmatprep.subr.mxu0 0.0
    %2252 = vmatpush1.xpose.msra.mxu0 0.0
    %2253 = vmatprep.subr.mxu0 0.0
    %2254 = vmatpush1.xpose.msra.mxu0 0.0
    %2255 = vmatprep.subr.mxu0 0.0
    %2256 = vmatpush1.xpose.msra.mxu0 0.0
    %2257 = vmatprep.subr.mxu0 0.0
    %2258 = vmatpush1.xpose.msra.mxu0 0.0
    %2259 = vmatprep.subr.mxu0 0.0
    %2260 = vmatpush1.xpose.msra.mxu0 0.0
    %2261 = vmatprep.subr.mxu0 0.0
    %2262 = vmatpush1.xpose.msra.mxu0 0.0
    %2263 = vmatprep.subr.mxu0 0.0
    %2264 = vmatpush1.xpose.msra.mxu0 0.0
    %2265 = vmatprep.subr.mxu0 0.0
    %2266 = vmatpush1.xpose.msra.mxu0 0.0
    %2267 = vmatprep.subr.mxu0 0.0
    %2268 = vmatpush1.xpose.msra.mxu0 0.0
    %2269 = vmatprep.subr.mxu0 0.0
    %2270 = vmatpush1.xpose.msra.mxu0 0.0
    %2271 = vmatprep.subr.mxu0 0.0
    %2272 = vmatpush1.xpose.msra.mxu0 0.0
    %2273 = vmatprep.subr.mxu0 0.0
    %2274 = vmatpush1.xpose.msra.mxu0 0.0
    %2275 = vmatprep.subr.mxu0 0.0
    %2276 = vmatpush1.xpose.msra.mxu0 0.0
    %2277 = vmatprep.subr.mxu0 0.0
    %2278 = vmatpush1.xpose.msra.mxu0 0.0
    %2279 = vmatprep.subr.mxu0 0.0
    %2280 = vmatpush1.xpose.msra.mxu0 0.0
    %2281 = vmatprep.subr.mxu0 0.0
    %2282 = vmatpush1.xpose.msra.mxu0 0.0
    %2283 = vmatprep.subr.mxu0 0.0
    %2284 = vmatpush1.xpose.msra.mxu0 0.0
    %2285 = vmatprep.subr.mxu0 0.0
    %2286 = vmatpush1.xpose.msra.mxu0 0.0
    %2287 = vmatprep.subr.mxu0 0.0
    %2288 = vmatpush1.xpose.msra.mxu0 0.0
    %2289 = vmatprep.subr.mxu0 0.0
    %2290 = vmatpush1.xpose.msra.mxu0 0.0
    %2291 = vmatprep.subr.mxu0 0.0
    %2292 = vmatpush1.xpose.msra.mxu0 0.0
    %2293 = vmatprep.subr.mxu0 0.0
    %2294 = vmatpush1.xpose.msra.mxu0 0.0
    %2295 = vmatprep.subr.mxu0 0.0
    %2296 = vmatpush1.xpose.msra.mxu0 0.0
    %2297 = vmatprep.mubr.f32.mxu0 0.0
    %2298 = vmatmul.mubr.f32.gmra.mrb[0].mxu0 %v2229
    %v2299 = vpop.f32.mrb[0].mxu0
    %v2300 = vadd.f32 0.0, %v2299
    %v2301 = vpop.f32.mrb[0].mxu0
    %2302 = vdwg.mxu0
    %2303 = vrot.lane.b32.xlu0 %v1746, 104
    %v2304 = vpop.permute.xlu0 %2303
    %2305 = vrot.lane.b32.xlu0 %v1831, 104
    %v2306 = vpop.permute.xlu0 %2305
    %v2307 = vsel %vm155, %v2304, 0
    %v2309 = vsel %vm155, %v2306, 0
    %2311 = vmatprep.subr.mxu0 0.0
    %2312 = vmatpush1.xpose.msra.mxu0 %v2309
    %2313 = vmatprep.subr.mxu0 0.0
    %2314 = vmatpush1.xpose.msra.mxu0 0.0
    %2315 = vmatprep.subr.mxu0 0.0
    %2316 = vmatpush1.xpose.msra.mxu0 0.0
    %2317 = vmatprep.subr.mxu0 0.0
    %2318 = vmatpush1.xpose.msra.mxu0 0.0
    %2319 = vmatprep.subr.mxu0 0.0
    %2320 = vmatpush1.xpose.msra.mxu0 0.0
    %2321 = vmatprep.subr.mxu0 0.0
    %2322 = vmatpush1.xpose.msra.mxu0 0.0
    %2323 = vmatprep.subr.mxu0 0.0
    %2324 = vmatpush1.xpose.msra.mxu0 0.0
    %2325 = vmatprep.subr.mxu0 0.0
    %2326 = vmatpush1.xpose.msra.mxu0 0.0
    %2327 = vmatprep.subr.mxu0 0.0
    %2328 = vmatpush1.xpose.msra.mxu0 0.0
    %2329 = vmatprep.subr.mxu0 0.0
    %2330 = vmatpush1.xpose.msra.mxu0 0.0
    %2331 = vmatprep.subr.mxu0 0.0
    %2332 = vmatpush1.xpose.msra.mxu0 0.0
    %2333 = vmatprep.subr.mxu0 0.0
    %2334 = vmatpush1.xpose.msra.mxu0 0.0
    %2335 = vmatprep.subr.mxu0 0.0
    %2336 = vmatpush1.xpose.msra.mxu0 0.0
    %2337 = vmatprep.subr.mxu0 0.0
    %2338 = vmatpush1.xpose.msra.mxu0 0.0
    %2339 = vmatprep.subr.mxu0 0.0
    %2340 = vmatpush1.xpose.msra.mxu0 0.0
    %2341 = vmatprep.subr.mxu0 0.0
    %2342 = vmatpush1.xpose.msra.mxu0 0.0
    %2343 = vmatprep.subr.mxu0 0.0
    %2344 = vmatpush1.xpose.msra.mxu0 0.0
    %2345 = vmatprep.subr.mxu0 0.0
    %2346 = vmatpush1.xpose.msra.mxu0 0.0
    %2347 = vmatprep.subr.mxu0 0.0
    %2348 = vmatpush1.xpose.msra.mxu0 0.0
    %2349 = vmatprep.subr.mxu0 0.0
    %2350 = vmatpush1.xpose.msra.mxu0 0.0
    %2351 = vmatprep.subr.mxu0 0.0
    %2352 = vmatpush1.xpose.msra.mxu0 0.0
    %2353 = vmatprep.subr.mxu0 0.0
    %2354 = vmatpush1.xpose.msra.mxu0 0.0
    %2355 = vmatprep.subr.mxu0 0.0
    %2356 = vmatpush1.xpose.msra.mxu0 0.0
    %2357 = vmatprep.subr.mxu0 0.0
    %2358 = vmatpush1.xpose.msra.mxu0 0.0
    %2359 = vmatprep.subr.mxu0 0.0
    %2360 = vmatpush1.xpose.msra.mxu0 0.0
    %2361 = vmatprep.subr.mxu0 0.0
    %2362 = vmatpush1.xpose.msra.mxu0 0.0
    %2363 = vmatprep.subr.mxu0 0.0
    %2364 = vmatpush1.xpose.msra.mxu0 0.0
    %2365 = vmatprep.subr.mxu0 0.0
    %2366 = vmatpush1.xpose.msra.mxu0 0.0
    %2367 = vmatprep.subr.mxu0 0.0
    %2368 = vmatpush1.xpose.msra.mxu0 0.0
    %2369 = vmatprep.subr.mxu0 0.0
    %2370 = vmatpush1.xpose.msra.mxu0 0.0
    %2371 = vmatprep.subr.mxu0 0.0
    %2372 = vmatpush1.xpose.msra.mxu0 0.0
    %2373 = vmatprep.subr.mxu0 0.0
    %2374 = vmatpush1.xpose.msra.mxu0 0.0
    %2375 = vmatprep.mubr.f32.mxu0 0.0
    %2376 = vmatmul.mubr.f32.gmra.mrb[0].mxu0 %v2307
    %v2377 = vpop.f32.mrb[0].mxu0
    %v2378 = vadd.f32 0.0, %v2377
    %v2379 = vpop.f32.mrb[0].mxu0
    %2380 = vdwg.mxu0
    %2381 = vrot.lane.b32.xlu0 %v1751, 104
    %v2382 = vpop.permute.xlu0 %2381
    %2383 = vrot.lane.b32.xlu0 %v1836, 104
    %v2384 = vpop.permute.xlu0 %2383
    %v2385 = vsel %vm155, %v2382, 0
    %v2387 = vsel %vm155, %v2384, 0
    %2389 = vmatprep.subr.mxu0 0.0
    %2390 = vmatpush1.xpose.msra.mxu0 %v2387
    %2391 = vmatprep.subr.mxu0 0.0
    %2392 = vmatpush1.xpose.msra.mxu0 0.0
    %2393 = vmatprep.subr.mxu0 0.0
    %2394 = vmatpush1.xpose.msra.mxu0 0.0
    %2395 = vmatprep.subr.mxu0 0.0
    %2396 = vmatpush1.xpose.msra.mxu0 0.0
    %2397 = vmatprep.subr.mxu0 0.0
    %2398 = vmatpush1.xpose.msra.mxu0 0.0
    %2399 = vmatprep.subr.mxu0 0.0
    %2400 = vmatpush1.xpose.msra.mxu0 0.0
    %2401 = vmatprep.subr.mxu0 0.0
    %2402 = vmatpush1.xpose.msra.mxu0 0.0
    %2403 = vmatprep.subr.mxu0 0.0
    %2404 = vmatpush1.xpose.msra.mxu0 0.0
    %2405 = vmatprep.subr.mxu0 0.0
    %2406 = vmatpush1.xpose.msra.mxu0 0.0
    %2407 = vmatprep.subr.mxu0 0.0
    %2408 = vmatpush1.xpose.msra.mxu0 0.0
    %2409 = vmatprep.subr.mxu0 0.0
    %2410 = vmatpush1.xpose.msra.mxu0 0.0
    %2411 = vmatprep.subr.mxu0 0.0
    %2412 = vmatpush1.xpose.msra.mxu0 0.0
    %2413 = vmatprep.subr.mxu0 0.0
    %2414 = vmatpush1.xpose.msra.mxu0 0.0
    %2415 = vmatprep.subr.mxu0 0.0
    %2416 = vmatpush1.xpose.msra.mxu0 0.0
    %2417 = vmatprep.subr.mxu0 0.0
    %2418 = vmatpush1.xpose.msra.mxu0 0.0
    %2419 = vmatprep.subr.mxu0 0.0
    %2420 = vmatpush1.xpose.msra.mxu0 0.0
    %2421 = vmatprep.subr.mxu0 0.0
    %2422 = vmatpush1.xpose.msra.mxu0 0.0
    %2423 = vmatprep.subr.mxu0 0.0
    %2424 = vmatpush1.xpose.msra.mxu0 0.0
    %2425 = vmatprep.subr.mxu0 0.0
    %2426 = vmatpush1.xpose.msra.mxu0 0.0
    %2427 = vmatprep.subr.mxu0 0.0
    %2428 = vmatpush1.xpose.msra.mxu0 0.0
    %2429 = vmatprep.subr.mxu0 0.0
    %2430 = vmatpush1.xpose.msra.mxu0 0.0
    %2431 = vmatprep.subr.mxu0 0.0
    %2432 = vmatpush1.xpose.msra.mxu0 0.0
    %2433 = vmatprep.subr.mxu0 0.0
    %2434 = vmatpush1.xpose.msra.mxu0 0.0
    %2435 = vmatprep.subr.mxu0 0.0
    %2436 = vmatpush1.xpose.msra.mxu0 0.0
    %2437 = vmatprep.subr.mxu0 0.0
    %2438 = vmatpush1.xpose.msra.mxu0 0.0
    %2439 = vmatprep.subr.mxu0 0.0
    %2440 = vmatpush1.xpose.msra.mxu0 0.0
    %2441 = vmatprep.subr.mxu0 0.0
    %2442 = vmatpush1.xpose.msra.mxu0 0.0
    %2443 = vmatprep.subr.mxu0 0.0
    %2444 = vmatpush1.xpose.msra.mxu0 0.0
    %2445 = vmatprep.subr.mxu0 0.0
    %2446 = vmatpush1.xpose.msra.mxu0 0.0
    %2447 = vmatprep.subr.mxu0 0.0
    %2448 = vmatpush1.xpose.msra.mxu0 0.0
    %2449 = vmatprep.subr.mxu0 0.0
    %2450 = vmatpush1.xpose.msra.mxu0 0.0
    %2451 = vmatprep.subr.mxu0 0.0
    %2452 = vmatpush1.xpose.msra.mxu0 0.0
    %2453 = vmatprep.mubr.f32.mxu0 0.0
    %2454 = vmatmul.mubr.f32.gmra.mrb[0].mxu0 %v2385
    %v2455 = vpop.f32.mrb[0].mxu0
    %v2456 = vadd.f32 0.0, %v2455
    %v2457 = vpop.f32.mrb[0].mxu0
    %2458 = vdwg.mxu0
    %v2459 = vmul.f32 %v1912, 0.35355338
    %v2460 = vmul.f32 %v2066, 0.35355338
    %v2461 = vmul.f32 %v2222, 0.35355338
    %v2462 = vmul.f32 %v2378, 0.35355338
    %v2463 = vmul.f32 %v1988, 0.35355338
    %v2464 = vmul.f32 %v2144, 0.35355338
    %v2465 = vmul.f32 %v2300, 0.35355338
    %v2466 = vmul.f32 %v2456, 0.35355338
    %v2467 = vsel %vm155, %v2459, -inf
    %2468 = vmax.xlane.f32.xlu0 %v2467
    %v2469 = vpop.xlane.xlu0 %2468
    %v2470 = vsel %vm155, %v2460, -inf
    %2471 = vmax.xlane.f32.xlu0 %v2470
    %v2472 = vpop.xlane.xlu0 %2471
    %v2473 = vsel %vm155, %v2461, -inf
    %2474 = vmax.xlane.f32.xlu0 %v2473
    %v2475 = vpop.xlane.xlu0 %2474
    %v2476 = vsel %vm155, %v2462, -inf
    %2477 = vmax.xlane.f32.xlu0 %v2476
    %v2478 = vpop.xlane.xlu0 %2477
    %v2479 = vsel %vm155, %v2463, -inf
    %2480 = vmax.xlane.f32.xlu0 %v2479
    %v2481 = vpop.xlane.xlu0 %2480
    %v2482 = vsel %vm155, %v2464, -inf
    %2483 = vmax.xlane.f32.xlu0 %v2482
    %v2484 = vpop.xlane.xlu0 %2483
    %v2485 = vsel %vm155, %v2465, -inf
    %2486 = vmax.xlane.f32.xlu0 %v2485
    %v2487 = vpop.xlane.xlu0 %2486
    %v2488 = vsel %vm155, %v2466, -inf
    %2489 = vmax.xlane.f32.xlu0 %v2488
    %v2490 = vpop.xlane.xlu0 %2489
    %v2491 = vsub.f32 %v2459, %v2469
    %v2492 = vsub.f32 %v2460, %v2472
    %v2493 = vsub.f32 %v2461, %v2475
    %v2494 = vsub.f32 %v2462, %v2478
    %v2495 = vsub.f32 %v2463, %v2481
    %v2496 = vsub.f32 %v2464, %v2484
    %v2497 = vsub.f32 %v2465, %v2487
    %v2498 = vsub.f32 %v2466, %v2490
    %v2499 = vmul.f32 %v2491, 1.442695
    %v2500 = vpow.pop %v2499
    %v2501 = vmul.f32 %v2492, 1.442695
    %v2502 = vpow.pop %v2501
    %v2503 = vmul.f32 %v2493, 1.442695
    %v2504 = vpow.pop %v2503
    %v2505 = vmul.f32 %v2494, 1.442695
    %v2506 = vpow.pop %v2505
    %v2507 = vmul.f32 %v2495, 1.442695
    %v2508 = vpow.pop %v2507
    %v2509 = vmul.f32 %v2496, 1.442695
    %v2510 = vpow.pop %v2509
    %v2511 = vmul.f32 %v2497, 1.442695
    %v2512 = vpow.pop %v2511
    %v2513 = vmul.f32 %v2498, 1.442695
    %v2514 = vpow.pop %v2513
    %v2515 = vsel %vm155, %v2500, 0.0
    %2516 = vadd.xlane.f32.xlu0 %v2515
    %v2517 = vpop.xlane.xlu0 %2516
    %v2518 = vsel %vm155, %v2502, 0.0
    %2519 = vadd.xlane.f32.xlu0 %v2518
    %v2520 = vpop.xlane.xlu0 %2519
    %v2521 = vsel %vm155, %v2504, 0.0
    %2522 = vadd.xlane.f32.xlu0 %v2521
    %v2523 = vpop.xlane.xlu0 %2522
    %v2524 = vsel %vm155, %v2506, 0.0
    %2525 = vadd.xlane.f32.xlu0 %v2524
    %v2526 = vpop.xlane.xlu0 %2525
    %v2527 = vsel %vm155, %v2508, 0.0
    %2528 = vadd.xlane.f32.xlu0 %v2527
    %v2529 = vpop.xlane.xlu0 %2528
    %v2530 = vsel %vm155, %v2510, 0.0
    %2531 = vadd.xlane.f32.xlu0 %v2530
    %v2532 = vpop.xlane.xlu0 %2531
    %v2533 = vsel %vm155, %v2512, 0.0
    %2534 = vadd.xlane.f32.xlu0 %v2533
    %v2535 = vpop.xlane.xlu0 %2534
    %v2536 = vsel %vm155, %v2514, 0.0
    %2537 = vadd.xlane.f32.xlu0 %v2536
    %v2538 = vpop.xlane.xlu0 %2537
    %v2539 = vrcp.pop %v2517
    %v2540 = vmul.f32 %v2500, %v2539
    %v2541 = vrcp.pop %v2520
    %v2542 = vmul.f32 %v2502, %v2541
    %v2543 = vrcp.pop %v2523
    %v2544 = vmul.f32 %v2504, %v2543
    %v2545 = vrcp.pop %v2526
    %v2546 = vmul.f32 %v2506, %v2545
    %v2547 = vrcp.pop %v2529
    %v2548 = vmul.f32 %v2508, %v2547
    %v2549 = vrcp.pop %v2532
    %v2550 = vmul.f32 %v2510, %v2549
    %v2551 = vrcp.pop %v2535
    %v2552 = vmul.f32 %v2512, %v2551
    %v2553 = vrcp.pop %v2538
    %v2554 = vmul.f32 %v2514, %v2553
    %2555 = vrot.lane.b32.xlu0 %v1831, 96
    %v2556 = vpop.permute.xlu0 %2555
    %v2559 = vsel %vm155, %v2540, 0
    %2561 = vmatprep.subr.mxu0 0.0
    %2562 = vmatpush1.msra.mxu0 %v2556
    %2563 = vmatprep.subr.mxu0 0.0
    %2564 = vmatpush1.msra.mxu0 0.0
    %2565 = vmatprep.subr.mxu0 0.0
    %2566 = vmatpush1.msra.mxu0 0.0
    %2567 = vmatprep.subr.mxu0 0.0
    %2568 = vmatpush1.msra.mxu0 0.0
    %2569 = vmatprep.subr.mxu0 0.0
    %2570 = vmatpush1.msra.mxu0 0.0
    %2571 = vmatprep.subr.mxu0 0.0
    %2572 = vmatpush1.msra.mxu0 0.0
    %2573 = vmatprep.subr.mxu0 0.0
    %2574 = vmatpush1.msra.mxu0 0.0
    %2575 = vmatprep.subr.mxu0 0.0
    %2576 = vmatpush1.msra.mxu0 0.0
    %2577 = vmatprep.subr.mxu0 0.0
    %2578 = vmatpush1.msra.mxu0 0.0
    %2579 = vmatprep.subr.mxu0 0.0
    %2580 = vmatpush1.msra.mxu0 0.0
    %2581 = vmatprep.subr.mxu0 0.0
    %2582 = vmatpush1.msra.mxu0 0.0
    %2583 = vmatprep.subr.mxu0 0.0
    %2584 = vmatpush1.msra.mxu0 0.0
    %2585 = vmatprep.subr.mxu0 0.0
    %2586 = vmatpush1.msra.mxu0 0.0
    %2587 = vmatprep.subr.mxu0 0.0
    %2588 = vmatpush1.msra.mxu0 0.0
    %2589 = vmatprep.subr.mxu0 0.0
    %2590 = vmatpush1.msra.mxu0 0.0
    %2591 = vmatprep.subr.mxu0 0.0
    %2592 = vmatpush1.msra.mxu0 0.0
    %2593 = vmatprep.subr.mxu0 0.0
    %2594 = vmatpush1.msra.mxu0 0.0
    %2595 = vmatprep.subr.mxu0 0.0
    %2596 = vmatpush1.msra.mxu0 0.0
    %2597 = vmatprep.subr.mxu0 0.0
    %2598 = vmatpush1.msra.mxu0 0.0
    %2599 = vmatprep.subr.mxu0 0.0
    %2600 = vmatpush1.msra.mxu0 0.0
    %2601 = vmatprep.subr.mxu0 0.0
    %2602 = vmatpush1.msra.mxu0 0.0
    %2603 = vmatprep.subr.mxu0 0.0
    %2604 = vmatpush1.msra.mxu0 0.0
    %2605 = vmatprep.subr.mxu0 0.0
    %2606 = vmatpush1.msra.mxu0 0.0
    %2607 = vmatprep.subr.mxu0 0.0
    %2608 = vmatpush1.msra.mxu0 0.0
    %2609 = vmatprep.subr.mxu0 0.0
    %2610 = vmatpush1.msra.mxu0 0.0
    %2611 = vmatprep.subr.mxu0 0.0
    %2612 = vmatpush1.msra.mxu0 0.0
    %2613 = vmatprep.subr.mxu0 0.0
    %2614 = vmatpush1.msra.mxu0 0.0
    %2615 = vmatprep.subr.mxu0 0.0
    %2616 = vmatpush1.msra.mxu0 0.0
    %2617 = vmatprep.subr.mxu0 0.0
    %2618 = vmatpush1.msra.mxu0 0.0
    %2619 = vmatprep.subr.mxu0 0.0
    %2620 = vmatpush1.msra.mxu0 0.0
    %2621 = vmatprep.subr.mxu0 0.0
    %2622 = vmatpush1.msra.mxu0 0.0
    %2623 = vmatprep.subr.mxu0 0.0
    %2624 = vmatpush1.msra.mxu0 0.0
    %2625 = vmatprep.mubr.f32.mxu0 0.0
    %2626 = vmatmul.mubr.f32.gmra.mrb[0].mxu0 %v2559
    %v2627 = vpop.f32.mrb[0].mxu0
    %v2628 = vadd.f32 0.0, %v2627
    %v2629 = vpop.f32.mrb[0].mxu0
    %2630 = vdwg.mxu0
    %2631 = vrot.lane.b32.xlu0 %v1836, 96
    %v2632 = vpop.permute.xlu0 %2631
    %v2635 = vsel %vm155, %v2548, 0
    %2637 = vmatprep.subr.mxu0 0.0
    %2638 = vmatpush1.msra.mxu0 %v2632
    %2639 = vmatprep.subr.mxu0 0.0
    %2640 = vmatpush1.msra.mxu0 0.0
    %2641 = vmatprep.subr.mxu0 0.0
    %2642 = vmatpush1.msra.mxu0 0.0
    %2643 = vmatprep.subr.mxu0 0.0
    %2644 = vmatpush1.msra.mxu0 0.0
    %2645 = vmatprep.subr.mxu0 0.0
    %2646 = vmatpush1.msra.mxu0 0.0
    %2647 = vmatprep.subr.mxu0 0.0
    %2648 = vmatpush1.msra.mxu0 0.0
    %2649 = vmatprep.subr.mxu0 0.0
    %2650 = vmatpush1.msra.mxu0 0.0
    %2651 = vmatprep.subr.mxu0 0.0
    %2652 = vmatpush1.msra.mxu0 0.0
    %2653 = vmatprep.subr.mxu0 0.0
    %2654 = vmatpush1.msra.mxu0 0.0
    %2655 = vmatprep.subr.mxu0 0.0
    %2656 = vmatpush1.msra.mxu0 0.0
    %2657 = vmatprep.subr.mxu0 0.0
    %2658 = vmatpush1.msra.mxu0 0.0
    %2659 = vmatprep.subr.mxu0 0.0
    %2660 = vmatpush1.msra.mxu0 0.0
    %2661 = vmatprep.subr.mxu0 0.0
    %2662 = vmatpush1.msra.mxu0 0.0
    %2663 = vmatprep.subr.mxu0 0.0
    %2664 = vmatpush1.msra.mxu0 0.0
    %2665 = vmatprep.subr.mxu0 0.0
    %2666 = vmatpush1.msra.mxu0 0.0
    %2667 = vmatprep.subr.mxu0 0.0
    %2668 = vmatpush1.msra.mxu0 0.0
    %2669 = vmatprep.subr.mxu0 0.0
    %2670 = vmatpush1.msra.mxu0 0.0
    %2671 = vmatprep.subr.mxu0 0.0
    %2672 = vmatpush1.msra.mxu0 0.0
    %2673 = vmatprep.subr.mxu0 0.0
    %2674 = vmatpush1.msra.mxu0 0.0
    %2675 = vmatprep.subr.mxu0 0.0
    %2676 = vmatpush1.msra.mxu0 0.0
    %2677 = vmatprep.subr.mxu0 0.0
    %2678 = vmatpush1.msra.mxu0 0.0
    %2679 = vmatprep.subr.mxu0 0.0
    %2680 = vmatpush1.msra.mxu0 0.0
    %2681 = vmatprep.subr.mxu0 0.0
    %2682 = vmatpush1.msra.mxu0 0.0
    %2683 = vmatprep.subr.mxu0 0.0
    %2684 = vmatpush1.msra.mxu0 0.0
    %2685 = vmatprep.subr.mxu0 0.0
    %2686 = vmatpush1.msra.mxu0 0.0
    %2687 = vmatprep.subr.mxu0 0.0
    %2688 = vmatpush1.msra.mxu0 0.0
    %2689 = vmatprep.subr.mxu0 0.0
    %2690 = vmatpush1.msra.mxu0 0.0
    %2691 = vmatprep.subr.mxu0 0.0
    %2692 = vmatpush1.msra.mxu0 0.0
    %2693 = vmatprep.subr.mxu0 0.0
    %2694 = vmatpush1.msra.mxu0 0.0
    %2695 = vmatprep.subr.mxu0 0.0
    %2696 = vmatpush1.msra.mxu0 0.0
    %2697 = vmatprep.subr.mxu0 0.0
    %2698 = vmatpush1.msra.mxu0 0.0
    %2699 = vmatprep.subr.mxu0 0.0
    %2700 = vmatpush1.msra.mxu0 0.0
    %2701 = vmatprep.mubr.f32.mxu0 0.0
    %2702 = vmatmul.mubr.f32.gmra.mrb[0].mxu0 %v2635
    %v2703 = vpop.f32.mrb[0].mxu0
    %v2704 = vadd.f32 0.0, %v2703
    %v2705 = vpop.f32.mrb[0].mxu0
    %2706 = vdwg.mxu0
    %2707 = vrot.lane.b32.xlu0 %v1831, 88
    %v2708 = vpop.permute.xlu0 %2707
    %v2711 = vsel %vm155, %v2542, 0
    %2713 = vmatprep.subr.mxu0 0.0
    %2714 = vmatpush1.msra.mxu0 %v2708
    %2715 = vmatprep.subr.mxu0 0.0
    %2716 = vmatpush1.msra.mxu0 0.0
    %2717 = vmatprep.subr.mxu0 0.0
    %2718 = vmatpush1.msra.mxu0 0.0
    %2719 = vmatprep.subr.mxu0 0.0
    %2720 = vmatpush1.msra.mxu0 0.0
    %2721 = vmatprep.subr.mxu0 0.0
    %2722 = vmatpush1.msra.mxu0 0.0
    %2723 = vmatprep.subr.mxu0 0.0
    %2724 = vmatpush1.msra.mxu0 0.0
    %2725 = vmatprep.subr.mxu0 0.0
    %2726 = vmatpush1.msra.mxu0 0.0
    %2727 = vmatprep.subr.mxu0 0.0
    %2728 = vmatpush1.msra.mxu0 0.0
    %2729 = vmatprep.subr.mxu0 0.0
    %2730 = vmatpush1.msra.mxu0 0.0
    %2731 = vmatprep.subr.mxu0 0.0
    %2732 = vmatpush1.msra.mxu0 0.0
    %2733 = vmatprep.subr.mxu0 0.0
    %2734 = vmatpush1.msra.mxu0 0.0
    %2735 = vmatprep.subr.mxu0 0.0
    %2736 = vmatpush1.msra.mxu0 0.0
    %2737 = vmatprep.subr.mxu0 0.0
    %2738 = vmatpush1.msra.mxu0 0.0
    %2739 = vmatprep.subr.mxu0 0.0
    %2740 = vmatpush1.msra.mxu0 0.0
    %2741 = vmatprep.subr.mxu0 0.0
    %2742 = vmatpush1.msra.mxu0 0.0
    %2743 = vmatprep.subr.mxu0 0.0
    %2744 = vmatpush1.msra.mxu0 0.0
    %2745 = vmatprep.subr.mxu0 0.0
    %2746 = vmatpush1.msra.mxu0 0.0
    %2747 = vmatprep.subr.mxu0 0.0
    %2748 = vmatpush1.msra.mxu0 0.0
    %2749 = vmatprep.subr.mxu0 0.0
    %2750 = vmatpush1.msra.mxu0 0.0
    %2751 = vmatprep.subr.mxu0 0.0
    %2752 = vmatpush1.msra.mxu0 0.0
    %2753 = vmatprep.subr.mxu0 0.0
    %2754 = vmatpush1.msra.mxu0 0.0
    %2755 = vmatprep.subr.mxu0 0.0
    %2756 = vmatpush1.msra.mxu0 0.0
    %2757 = vmatprep.subr.mxu0 0.0
    %2758 = vmatpush1.msra.mxu0 0.0
    %2759 = vmatprep.subr.mxu0 0.0
    %2760 = vmatpush1.msra.mxu0 0.0
    %2761 = vmatprep.subr.mxu0 0.0
    %2762 = vmatpush1.msra.mxu0 0.0
    %2763 = vmatprep.subr.mxu0 0.0
    %2764 = vmatpush1.msra.mxu0 0.0
    %2765 = vmatprep.subr.mxu0 0.0
    %2766 = vmatpush1.msra.mxu0 0.0
    %2767 = vmatprep.subr.mxu0 0.0
    %2768 = vmatpush1.msra.mxu0 0.0
    %2769 = vmatprep.subr.mxu0 0.0
    %2770 = vmatpush1.msra.mxu0 0.0
    %2771 = vmatprep.subr.mxu0 0.0
    %2772 = vmatpush1.msra.mxu0 0.0
    %2773 = vmatprep.subr.mxu0 0.0
    %2774 = vmatpush1.msra.mxu0 0.0
    %2775 = vmatprep.subr.mxu0 0.0
    %2776 = vmatpush1.msra.mxu0 0.0
    %2777 = vmatprep.mubr.f32.mxu0 0.0
    %2778 = vmatmul.mubr.f32.gmra.mrb[0].mxu0 %v2711
    %v2779 = vpop.f32.mrb[0].mxu0
    %v2780 = vadd.f32 0.0, %v2779
    %v2781 = vpop.f32.mrb[0].mxu0
    %2782 = vdwg.mxu0
    %2783 = vrot.lane.b32.xlu0 %v1836, 88
    %v2784 = vpop.permute.xlu0 %2783
    %v2787 = vsel %vm155, %v2550, 0
    %2789 = vmatprep.subr.mxu0 0.0
    %2790 = vmatpush1.msra.mxu0 %v2784
    %2791 = vmatprep.subr.mxu0 0.0
    %2792 = vmatpush1.msra.mxu0 0.0
    %2793 = vmatprep.subr.mxu0 0.0
    %2794 = vmatpush1.msra.mxu0 0.0
    %2795 = vmatprep.subr.mxu0 0.0
    %2796 = vmatpush1.msra.mxu0 0.0
    %2797 = vmatprep.subr.mxu0 0.0
    %2798 = vmatpush1.msra.mxu0 0.0
    %2799 = vmatprep.subr.mxu0 0.0
    %2800 = vmatpush1.msra.mxu0 0.0
    %2801 = vmatprep.subr.mxu0 0.0
    %2802 = vmatpush1.msra.mxu0 0.0
    %2803 = vmatprep.subr.mxu0 0.0
    %2804 = vmatpush1.msra.mxu0 0.0
    %2805 = vmatprep.subr.mxu0 0.0
    %2806 = vmatpush1.msra.mxu0 0.0
    %2807 = vmatprep.subr.mxu0 0.0
    %2808 = vmatpush1.msra.mxu0 0.0
    %2809 = vmatprep.subr.mxu0 0.0
    %2810 = vmatpush1.msra.mxu0 0.0
    %2811 = vmatprep.subr.mxu0 0.0
    %2812 = vmatpush1.msra.mxu0 0.0
    %2813 = vmatprep.subr.mxu0 0.0
    %2814 = vmatpush1.msra.mxu0 0.0
    %2815 = vmatprep.subr.mxu0 0.0
    %2816 = vmatpush1.msra.mxu0 0.0
    %2817 = vmatprep.subr.mxu0 0.0
    %2818 = vmatpush1.msra.mxu0 0.0
    %2819 = vmatprep.subr.mxu0 0.0
    %2820 = vmatpush1.msra.mxu0 0.0
    %2821 = vmatprep.subr.mxu0 0.0
    %2822 = vmatpush1.msra.mxu0 0.0
    %2823 = vmatprep.subr.mxu0 0.0
    %2824 = vmatpush1.msra.mxu0 0.0
    %2825 = vmatprep.subr.mxu0 0.0
    %2826 = vmatpush1.msra.mxu0 0.0
    %2827 = vmatprep.subr.mxu0 0.0
    %2828 = vmatpush1.msra.mxu0 0.0
    %2829 = vmatprep.subr.mxu0 0.0
    %2830 = vmatpush1.msra.mxu0 0.0
    %2831 = vmatprep.subr.mxu0 0.0
    %2832 = vmatpush1.msra.mxu0 0.0
    %2833 = vmatprep.subr.mxu0 0.0
    %2834 = vmatpush1.msra.mxu0 0.0
    %2835 = vmatprep.subr.mxu0 0.0
    %2836 = vmatpush1.msra.mxu0 0.0
    %2837 = vmatprep.subr.mxu0 0.0
    %2838 = vmatpush1.msra.mxu0 0.0
    %2839 = vmatprep.subr.mxu0 0.0
    %2840 = vmatpush1.msra.mxu0 0.0
    %2841 = vmatprep.subr.mxu0 0.0
    %2842 = vmatpush1.msra.mxu0 0.0
    %2843 = vmatprep.subr.mxu0 0.0
    %2844 = vmatpush1.msra.mxu0 0.0
    %2845 = vmatprep.subr.mxu0 0.0
    %2846 = vmatpush1.msra.mxu0 0.0
    %2847 = vmatprep.subr.mxu0 0.0
    %2848 = vmatpush1.msra.mxu0 0.0
    %2849 = vmatprep.subr.mxu0 0.0
    %2850 = vmatpush1.msra.mxu0 0.0
    %2851 = vmatprep.subr.mxu0 0.0
    %2852 = vmatpush1.msra.mxu0 0.0
    %2853 = vmatprep.mubr.f32.mxu0 0.0
    %2854 = vmatmul.mubr.f32.gmra.mrb[0].mxu0 %v2787
    %v2855 = vpop.f32.mrb[0].mxu0
    %v2856 = vadd.f32 0.0, %v2855
    %v2857 = vpop.f32.mrb[0].mxu0
    %2858 = vdwg.mxu0
    %2859 = vrot.lane.b32.xlu0 %v1831, 80
    %v2860 = vpop.permute.xlu0 %2859
    %v2863 = vsel %vm155, %v2544, 0
    %2865 = vmatprep.subr.mxu0 0.0
    %2866 = vmatpush1.msra.mxu0 %v2860
    %2867 = vmatprep.subr.mxu0 0.0
    %2868 = vmatpush1.msra.mxu0 0.0
    %2869 = vmatprep.subr.mxu0 0.0
    %2870 = vmatpush1.msra.mxu0 0.0
    %2871 = vmatprep.subr.mxu0 0.0
    %2872 = vmatpush1.msra.mxu0 0.0
    %2873 = vmatprep.subr.mxu0 0.0
    %2874 = vmatpush1.msra.mxu0 0.0
    %2875 = vmatprep.subr.mxu0 0.0
    %2876 = vmatpush1.msra.mxu0 0.0
    %2877 = vmatprep.subr.mxu0 0.0
    %2878 = vmatpush1.msra.mxu0 0.0
    %2879 = vmatprep.subr.mxu0 0.0
    %2880 = vmatpush1.msra.mxu0 0.0
    %2881 = vmatprep.subr.mxu0 0.0
    %2882 = vmatpush1.msra.mxu0 0.0
    %2883 = vmatprep.subr.mxu0 0.0
    %2884 = vmatpush1.msra.mxu0 0.0
    %2885 = vmatprep.subr.mxu0 0.0
    %2886 = vmatpush1.msra.mxu0 0.0
    %2887 = vmatprep.subr.mxu0 0.0
    %2888 = vmatpush1.msra.mxu0 0.0
    %2889 = vmatprep.subr.mxu0 0.0
    %2890 = vmatpush1.msra.mxu0 0.0
    %2891 = vmatprep.subr.mxu0 0.0
    %2892 = vmatpush1.msra.mxu0 0.0
    %2893 = vmatprep.subr.mxu0 0.0
    %2894 = vmatpush1.msra.mxu0 0.0
    %2895 = vmatprep.subr.mxu0 0.0
    %2896 = vmatpush1.msra.mxu0 0.0
    %2897 = vmatprep.subr.mxu0 0.0
    %2898 = vmatpush1.msra.mxu0 0.0
    %2899 = vmatprep.subr.mxu0 0.0
    %2900 = vmatpush1.msra.mxu0 0.0
    %2901 = vmatprep.subr.mxu0 0.0
    %2902 = vmatpush1.msra.mxu0 0.0
    %2903 = vmatprep.subr.mxu0 0.0
    %2904 = vmatpush1.msra.mxu0 0.0
    %2905 = vmatprep.subr.mxu0 0.0
    %2906 = vmatpush1.msra.mxu0 0.0
    %2907 = vmatprep.subr.mxu0 0.0
    %2908 = vmatpush1.msra.mxu0 0.0
    %2909 = vmatprep.subr.mxu0 0.0
    %2910 = vmatpush1.msra.mxu0 0.0
    %2911 = vmatprep.subr.mxu0 0.0
    %2912 = vmatpush1.msra.mxu0 0.0
    %2913 = vmatprep.subr.mxu0 0.0
    %2914 = vmatpush1.msra.mxu0 0.0
    %2915 = vmatprep.subr.mxu0 0.0
    %2916 = vmatpush1.msra.mxu0 0.0
    %2917 = vmatprep.subr.mxu0 0.0
    %2918 = vmatpush1.msra.mxu0 0.0
    %2919 = vmatprep.subr.mxu0 0.0
    %2920 = vmatpush1.msra.mxu0 0.0
    %2921 = vmatprep.subr.mxu0 0.0
    %2922 = vmatpush1.msra.mxu0 0.0
    %2923 = vmatprep.subr.mxu0 0.0
    %2924 = vmatpush1.msra.mxu0 0.0
    %2925 = vmatprep.subr.mxu0 0.0
    %2926 = vmatpush1.msra.mxu0 0.0
    %2927 = vmatprep.subr.mxu0 0.0
    %2928 = vmatpush1.msra.mxu0 0.0
    %2929 = vmatprep.mubr.f32.mxu0 0.0
    %2930 = vmatmul.mubr.f32.gmra.mrb[0].mxu0 %v2863
    %v2931 = vpop.f32.mrb[0].mxu0
    %v2932 = vadd.f32 0.0, %v2931
    %v2933 = vpop.f32.mrb[0].mxu0
    %2934 = vdwg.mxu0
    %2935 = vrot.lane.b32.xlu0 %v1836, 80
    %v2936 = vpop.permute.xlu0 %2935
    %v2939 = vsel %vm155, %v2552, 0
    %2941 = vmatprep.subr.mxu0 0.0
    %2942 = vmatpush1.msra.mxu0 %v2936
    %2943 = vmatprep.subr.mxu0 0.0
    %2944 = vmatpush1.msra.mxu0 0.0
    %2945 = vmatprep.subr.mxu0 0.0
    %2946 = vmatpush1.msra.mxu0 0.0
    %2947 = vmatprep.subr.mxu0 0.0
    %2948 = vmatpush1.msra.mxu0 0.0
    %2949 = vmatprep.subr.mxu0 0.0
    %2950 = vmatpush1.msra.mxu0 0.0
    %2951 = vmatprep.subr.mxu0 0.0
    %2952 = vmatpush1.msra.mxu0 0.0
    %2953 = vmatprep.subr.mxu0 0.0
    %2954 = vmatpush1.msra.mxu0 0.0
    %2955 = vmatprep.subr.mxu0 0.0
    %2956 = vmatpush1.msra.mxu0 0.0
    %2957 = vmatprep.subr.mxu0 0.0
    %2958 = vmatpush1.msra.mxu0 0.0
    %2959 = vmatprep.subr.mxu0 0.0
    %2960 = vmatpush1.msra.mxu0 0.0
    %2961 = vmatprep.subr.mxu0 0.0
    %2962 = vmatpush1.msra.mxu0 0.0
    %2963 = vmatprep.subr.mxu0 0.0
    %2964 = vmatpush1.msra.mxu0 0.0
    %2965 = vmatprep.subr.mxu0 0.0
    %2966 = vmatpush1.msra.mxu0 0.0
    %2967 = vmatprep.subr.mxu0 0.0
    %2968 = vmatpush1.msra.mxu0 0.0
    %2969 = vmatprep.subr.mxu0 0.0
    %2970 = vmatpush1.msra.mxu0 0.0
    %2971 = vmatprep.subr.mxu0 0.0
    %2972 = vmatpush1.msra.mxu0 0.0
    %2973 = vmatprep.subr.mxu0 0.0
    %2974 = vmatpush1.msra.mxu0 0.0
    %2975 = vmatprep.subr.mxu0 0.0
    %2976 = vmatpush1.msra.mxu0 0.0
    %2977 = vmatprep.subr.mxu0 0.0
    %2978 = vmatpush1.msra.mxu0 0.0
    %2979 = vmatprep.subr.mxu0 0.0
    %2980 = vmatpush1.msra.mxu0 0.0
    %2981 = vmatprep.subr.mxu0 0.0
    %2982 = vmatpush1.msra.mxu0 0.0
    %2983 = vmatprep.subr.mxu0 0.0
    %2984 = vmatpush1.msra.mxu0 0.0
    %2985 = vmatprep.subr.mxu0 0.0
    %2986 = vmatpush1.msra.mxu0 0.0
    %2987 = vmatprep.subr.mxu0 0.0
    %2988 = vmatpush1.msra.mxu0 0.0
    %2989 = vmatprep.subr.mxu0 0.0
    %2990 = vmatpush1.msra.mxu0 0.0
    %2991 = vmatprep.subr.mxu0 0.0
    %2992 = vmatpush1.msra.mxu0 0.0
    %2993 = vmatprep.subr.mxu0 0.0
    %2994 = vmatpush1.msra.mxu0 0.0
    %2995 = vmatprep.subr.mxu0 0.0
    %2996 = vmatpush1.msra.mxu0 0.0
    %2997 = vmatprep.subr.mxu0 0.0
    %2998 = vmatpush1.msra.mxu0 0.0
    %2999 = vmatprep.subr.mxu0 0.0
    %3000 = vmatpush1.msra.mxu0 0.0
    %3001 = vmatprep.subr.mxu0 0.0
    %3002 = vmatpush1.msra.mxu0 0.0
    %3003 = vmatprep.subr.mxu0 0.0
    %3004 = vmatpush1.msra.mxu0 0.0
    %3005 = vmatprep.mubr.f32.mxu0 0.0
    %3006 = vmatmul.mubr.f32.gmra.mrb[0].mxu0 %v2939
    %v3007 = vpop.f32.mrb[0].mxu0
    %v3008 = vadd.f32 0.0, %v3007
    %v3009 = vpop.f32.mrb[0].mxu0
    %3010 = vdwg.mxu0
    %3011 = vrot.lane.b32.xlu0 %v1831, 72
    %v3012 = vpop.permute.xlu0 %3011
    %v3015 = vsel %vm155, %v2546, 0
    %3017 = vmatprep.subr.mxu0 0.0
    %3018 = vmatpush1.msra.mxu0 %v3012
    %3019 = vmatprep.subr.mxu0 0.0
    %3020 = vmatpush1.msra.mxu0 0.0
    %3021 = vmatprep.subr.mxu0 0.0
    %3022 = vmatpush1.msra.mxu0 0.0
    %3023 = vmatprep.subr.mxu0 0.0
    %3024 = vmatpush1.msra.mxu0 0.0
    %3025 = vmatprep.subr.mxu0 0.0
    %3026 = vmatpush1.msra.mxu0 0.0
    %3027 = vmatprep.subr.mxu0 0.0
    %3028 = vmatpush1.msra.mxu0 0.0
    %3029 = vmatprep.subr.mxu0 0.0
    %3030 = vmatpush1.msra.mxu0 0.0
    %3031 = vmatprep.subr.mxu0 0.0
    %3032 = vmatpush1.msra.mxu0 0.0
    %3033 = vmatprep.subr.mxu0 0.0
    %3034 = vmatpush1.msra.mxu0 0.0
    %3035 = vmatprep.subr.mxu0 0.0
    %3036 = vmatpush1.msra.mxu0 0.0
    %3037 = vmatprep.subr.mxu0 0.0
    %3038 = vmatpush1.msra.mxu0 0.0
    %3039 = vmatprep.subr.mxu0 0.0
    %3040 = vmatpush1.msra.mxu0 0.0
    %3041 = vmatprep.subr.mxu0 0.0
    %3042 = vmatpush1.msra.mxu0 0.0
    %3043 = vmatprep.subr.mxu0 0.0
    %3044 = vmatpush1.msra.mxu0 0.0
    %3045 = vmatprep.subr.mxu0 0.0
    %3046 = vmatpush1.msra.mxu0 0.0
    %3047 = vmatprep.subr.mxu0 0.0
    %3048 = vmatpush1.msra.mxu0 0.0
    %3049 = vmatprep.subr.mxu0 0.0
    %3050 = vmatpush1.msra.mxu0 0.0
    %3051 = vmatprep.subr.mxu0 0.0
    %3052 = vmatpush1.msra.mxu0 0.0
    %3053 = vmatprep.subr.mxu0 0.0
    %3054 = vmatpush1.msra.mxu0 0.0
    %3055 = vmatprep.subr.mxu0 0.0
    %3056 = vmatpush1.msra.mxu0 0.0
    %3057 = vmatprep.subr.mxu0 0.0
    %3058 = vmatpush1.msra.mxu0 0.0
    %3059 = vmatprep.subr.mxu0 0.0
    %3060 = vmatpush1.msra.mxu0 0.0
    %3061 = vmatprep.subr.mxu0 0.0
    %3062 = vmatpush1.msra.mxu0 0.0
    %3063 = vmatprep.subr.mxu0 0.0
    %3064 = vmatpush1.msra.mxu0 0.0
    %3065 = vmatprep.subr.mxu0 0.0
    %3066 = vmatpush1.msra.mxu0 0.0
    %3067 = vmatprep.subr.mxu0 0.0
    %3068 = vmatpush1.msra.mxu0 0.0
    %3069 = vmatprep.subr.mxu0 0.0
    %3070 = vmatpush1.msra.mxu0 0.0
    %3071 = vmatprep.subr.mxu0 0.0
    %3072 = vmatpush1.msra.mxu0 0.0
    %3073 = vmatprep.subr.mxu0 0.0
    %3074 = vmatpush1.msra.mxu0 0.0
    %3075 = vmatprep.subr.mxu0 0.0
    %3076 = vmatpush1.msra.mxu0 0.0
    %3077 = vmatprep.subr.mxu0 0.0
    %3078 = vmatpush1.msra.mxu0 0.0
    %3079 = vmatprep.subr.mxu0 0.0
    %3080 = vmatpush1.msra.mxu0 0.0
    %3081 = vmatprep.mubr.f32.mxu0 0.0
    %3082 = vmatmul.mubr.f32.gmra.mrb[0].mxu0 %v3015
    %v3083 = vpop.f32.mrb[0].mxu0
    %v3084 = vadd.f32 0.0, %v3083
    %v3085 = vpop.f32.mrb[0].mxu0
    %3086 = vdwg.mxu0
    %3087 = vrot.lane.b32.xlu0 %v1836, 72
    %v3088 = vpop.permute.xlu0 %3087
    %v3091 = vsel %vm155, %v2554, 0
    %3093 = vmatprep.subr.mxu0 0.0
    %3094 = vmatpush1.msra.mxu0 %v3088
    %3095 = vmatprep.subr.mxu0 0.0
    %3096 = vmatpush1.msra.mxu0 0.0
    %3097 = vmatprep.subr.mxu0 0.0
    %3098 = vmatpush1.msra.mxu0 0.0
    %3099 = vmatprep.subr.mxu0 0.0
    %3100 = vmatpush1.msra.mxu0 0.0
    %3101 = vmatprep.subr.mxu0 0.0
    %3102 = vmatpush1.msra.mxu0 0.0
    %3103 = vmatprep.subr.mxu0 0.0
    %3104 = vmatpush1.msra.mxu0 0.0
    %3105 = vmatprep.subr.mxu0 0.0
    %3106 = vmatpush1.msra.mxu0 0.0
    %3107 = vmatprep.subr.mxu0 0.0
    %3108 = vmatpush1.msra.mxu0 0.0
    %3109 = vmatprep.subr.mxu0 0.0
    %3110 = vmatpush1.msra.mxu0 0.0
    %3111 = vmatprep.subr.mxu0 0.0
    %3112 = vmatpush1.msra.mxu0 0.0
    %3113 = vmatprep.subr.mxu0 0.0
    %3114 = vmatpush1.msra.mxu0 0.0
    %3115 = vmatprep.subr.mxu0 0.0
    %3116 = vmatpush1.msra.mxu0 0.0
    %3117 = vmatprep.subr.mxu0 0.0
    %3118 = vmatpush1.msra.mxu0 0.0
    %3119 = vmatprep.subr.mxu0 0.0
    %3120 = vmatpush1.msra.mxu0 0.0
    %3121 = vmatprep.subr.mxu0 0.0
    %3122 = vmatpush1.msra.mxu0 0.0
    %3123 = vmatprep.subr.mxu0 0.0
    %3124 = vmatpush1.msra.mxu0 0.0
    %3125 = vmatprep.subr.mxu0 0.0
    %3126 = vmatpush1.msra.mxu0 0.0
    %3127 = vmatprep.subr.mxu0 0.0
    %3128 = vmatpush1.msra.mxu0 0.0
    %3129 = vmatprep.subr.mxu0 0.0
    %3130 = vmatpush1.msra.mxu0 0.0
    %3131 = vmatprep.subr.mxu0 0.0
    %3132 = vmatpush1.msra.mxu0 0.0
    %3133 = vmatprep.subr.mxu0 0.0
    %3134 = vmatpush1.msra.mxu0 0.0
    %3135 = vmatprep.subr.mxu0 0.0
    %3136 = vmatpush1.msra.mxu0 0.0
    %3137 = vmatprep.subr.mxu0 0.0
    %3138 = vmatpush1.msra.mxu0 0.0
    %3139 = vmatprep.subr.mxu0 0.0
    %3140 = vmatpush1.msra.mxu0 0.0
    %3141 = vmatprep.subr.mxu0 0.0
    %3142 = vmatpush1.msra.mxu0 0.0
    %3143 = vmatprep.subr.mxu0 0.0
    %3144 = vmatpush1.msra.mxu0 0.0
    %3145 = vmatprep.subr.mxu0 0.0
    %3146 = vmatpush1.msra.mxu0 0.0
    %3147 = vmatprep.subr.mxu0 0.0
    %3148 = vmatpush1.msra.mxu0 0.0
    %3149 = vmatprep.subr.mxu0 0.0
    %3150 = vmatpush1.msra.mxu0 0.0
    %3151 = vmatprep.subr.mxu0 0.0
    %3152 = vmatpush1.msra.mxu0 0.0
    %3153 = vmatprep.subr.mxu0 0.0
    %3154 = vmatpush1.msra.mxu0 0.0
    %3155 = vmatprep.subr.mxu0 0.0
    %3156 = vmatpush1.msra.mxu0 0.0
    %3157 = vmatprep.mubr.f32.mxu0 0.0
    %3158 = vmatmul.mubr.f32.gmra.mrb[0].mxu0 %v3091
    %v3159 = vpop.f32.mrb[0].mxu0
    %v3160 = vadd.f32 0.0, %v3159
    %v3161 = vpop.f32.mrb[0].mxu0
    %3162 = vdwg.mxu0
    %3165 = vrot.lane.b32.xlu0 %v2780, 8
    %v3166 = vpop.permute.xlu0 %3165
    %3167 = vrot.lane.b32.xlu0 %v2856, 8
    %v3168 = vpop.permute.xlu0 %3167
    %3173 = vrot.lane.b32.xlu0 %v2932, 16
    %v3174 = vpop.permute.xlu0 %3173
    %3175 = vrot.lane.b32.xlu0 %v3008, 16
    %v3176 = vpop.permute.xlu0 %3175
    %3181 = vrot.lane.b32.xlu0 %v3084, 24
    %v3182 = vpop.permute.xlu0 %3181
    %3183 = vrot.lane.b32.xlu0 %v3160, 24
    %v3184 = vpop.permute.xlu0 %3183
    %v3187 = vsel %vm155, %v2628, %v3166
    %v3188 = vsel %vm155, %v2704, %v3168
    %v3189 = vsel %vm1505, %v3187, %v3174
    %v3190 = vsel %vm1505, %v3188, %v3176
    %v3191 = vsel %vm1508, %v3189, %v3182
    %v3192 = vsel %vm1508, %v3190, %v3184
    %v3193 = vlaneseq
    %v3194 = vshrl.u32 %v3193, 7
    %v3195 = vsub.s32 0, %v3194
    %v3196 = vrot.slane %v58, %v3195
    %3197 = vrot.lane.b32.xlu0 %v33, 32
    %v3198 = vpop.permute.xlu0 %3197
    %3199 = vrot.lane.b32.xlu0 %v34, 32
    %v3200 = vpop.permute.xlu0 %3199
    %3201 = vrot.lane.b32.xlu0 %v35, 32
    %v3202 = vpop.permute.xlu0 %3201
    %3203 = vrot.lane.b32.xlu0 %v36, 32
    %v3204 = vpop.permute.xlu0 %3203
    %v3210 = vsel %vm70, %v3191, 0
    %v3213 = vsel %vm70, %v3192, 0
    %3215 = vmatprep.subr.mxu0 0.0
    %3216 = vmatpush1.msra.mxu0 %v3198
    %3217 = vmatprep.subr.mxu0 0.0
    %3218 = vmatpush1.msra.mxu0 %v3200
    %3219 = vmatprep.subr.mxu0 0.0
    %3220 = vmatpush1.msra.mxu0 %v3202
    %3221 = vmatprep.subr.mxu0 0.0
    %3222 = vmatpush1.msra.mxu0 %v3204
    %3223 = vmatprep.subr.mxu0 0.0
    %3224 = vmatpush1.msra.mxu0 0.0
    %3225 = vmatprep.subr.mxu0 0.0
    %3226 = vmatpush1.msra.mxu0 0.0
    %3227 = vmatprep.subr.mxu0 0.0
    %3228 = vmatpush1.msra.mxu0 0.0
    %3229 = vmatprep.subr.mxu0 0.0
    %3230 = vmatpush1.msra.mxu0 0.0
    %3231 = vmatprep.subr.mxu0 0.0
    %3232 = vmatpush1.msra.mxu0 0.0
    %3233 = vmatprep.subr.mxu0 0.0
    %3234 = vmatpush1.msra.mxu0 0.0
    %3235 = vmatprep.subr.mxu0 0.0
    %3236 = vmatpush1.msra.mxu0 0.0
    %3237 = vmatprep.subr.mxu0 0.0
    %3238 = vmatpush1.msra.mxu0 0.0
    %3239 = vmatprep.subr.mxu0 0.0
    %3240 = vmatpush1.msra.mxu0 0.0
    %3241 = vmatprep.subr.mxu0 0.0
    %3242 = vmatpush1.msra.mxu0 0.0
    %3243 = vmatprep.subr.mxu0 0.0
    %3244 = vmatpush1.msra.mxu0 0.0
    %3245 = vmatprep.subr.mxu0 0.0
    %3246 = vmatpush1.msra.mxu0 0.0
    %3247 = vmatprep.subr.mxu0 0.0
    %3248 = vmatpush1.msra.mxu0 0.0
    %3249 = vmatprep.subr.mxu0 0.0
    %3250 = vmatpush1.msra.mxu0 0.0
    %3251 = vmatprep.subr.mxu0 0.0
    %3252 = vmatpush1.msra.mxu0 0.0
    %3253 = vmatprep.subr.mxu0 0.0
    %3254 = vmatpush1.msra.mxu0 0.0
    %3255 = vmatprep.subr.mxu0 0.0
    %3256 = vmatpush1.msra.mxu0 0.0
    %3257 = vmatprep.subr.mxu0 0.0
    %3258 = vmatpush1.msra.mxu0 0.0
    %3259 = vmatprep.subr.mxu0 0.0
    %3260 = vmatpush1.msra.mxu0 0.0
    %3261 = vmatprep.subr.mxu0 0.0
    %3262 = vmatpush1.msra.mxu0 0.0
    %3263 = vmatprep.subr.mxu0 0.0
    %3264 = vmatpush1.msra.mxu0 0.0
    %3265 = vmatprep.subr.mxu0 0.0
    %3266 = vmatpush1.msra.mxu0 0.0
    %3267 = vmatprep.subr.mxu0 0.0
    %3268 = vmatpush1.msra.mxu0 0.0
    %3269 = vmatprep.subr.mxu0 0.0
    %3270 = vmatpush1.msra.mxu0 0.0
    %3271 = vmatprep.subr.mxu0 0.0
    %3272 = vmatpush1.msra.mxu0 0.0
    %3273 = vmatprep.subr.mxu0 0.0
    %3274 = vmatpush1.msra.mxu0 0.0
    %3275 = vmatprep.subr.mxu0 0.0
    %3276 = vmatpush1.msra.mxu0 0.0
    %3277 = vmatprep.subr.mxu0 0.0
    %3278 = vmatpush1.msra.mxu0 0.0
    %3279 = vmatprep.mubr.f32.mxu0 0.0
    %3280 = vmatmul.mubr.f32.gmra.mrb[0].mxu0 %v3210
    %v3281 = vpop.f32.mrb[0].mxu0
    %v3282 = vadd.f32 %v3196, %v3281
    %v3283 = vpop.f32.mrb[0].mxu0
    %3284 = vmatprep.mubr.f32.mxu0 0.0
    %3285 = vmatmul.mubr.f32.gmra.mrb[0].mxu0 %v3213
    %v3286 = vpop.f32.mrb[0].mxu0
    %v3287 = vadd.f32 %v3196, %v3286
    %v3288 = vpop.f32.mrb[0].mxu0
    %3289 = vdwg.mxu0
    %v3290 = vadd.f32 %v1651, %v3282
    %v3291 = vadd.f32 %v1652, %v3287
    %v3292 = vsel %vm70, %v3290, 0.0
    %3293 = vadd.xlane.f32.xlu0 %v3292
    %v3294 = vpop.xlane.xlu0 %3293
    %v3295 = vsel %vm70, %v3291, 0.0
    %3296 = vadd.xlane.f32.xlu0 %v3295
    %v3297 = vpop.xlane.xlu0 %3296
    %v3298 = vmul.f32 %v3294, %v1620
    %v3299 = vmul.f32 %v3297, %v1620
    %v3300 = vsub.f32 %v3290, %v3298
    %v3301 = vsub.f32 %v3291, %v3299
    %v3302 = vmul.f32 %v3300, %v3300
    %v3303 = vmul.f32 %v3301, %v3301
    %v3304 = vsel %vm70, %v3302, 0.0
    %3305 = vadd.xlane.f32.xlu0 %v3304
    %v3306 = vpop.xlane.xlu0 %3305
    %v3307 = vsel %vm70, %v3303, 0.0
    %3308 = vadd.xlane.f32.xlu0 %v3307
    %v3309 = vpop.xlane.xlu0 %3308
    %v3310 = vmul.f32 %v3306, %v1620
    %v3311 = vmul.f32 %v3309, %v1620
    %v3312 = vadd.f32 %v3310, 1e-05
    %v3313 = vadd.f32 %v3311, 1e-05
    %v3314 = vrsqrt.pop %v3312
    %v3315 = vrsqrt.pop %v3313
    %v3316 = vmul.f32 %v3300, %v3314
    %v3317 = vmul.f32 %v3301, %v3315
    %v3318 = vlaneseq
    %v3319 = vshrl.u32 %v3318, 7
    %v3320 = vsub.s32 0, %v3319
    %v3321 = vrot.slane %v62, %v3320
    %v3322 = vmul.f32 %v3316, %v3321
    %v3323 = vmul.f32 %v3317, %v3321
    %v3324 = vlaneseq
    %v3325 = vshrl.u32 %v3324, 7
    %v3326 = vsub.s32 0, %v3325
    %v3327 = vrot.slane %v63, %v3326
    %v3328 = vadd.f32 %v3322, %v3327
    %v3329 = vadd.f32 %v3323, %v3327
    %v3330 = vlaneseq
    %v3331 = vshrl.u32 %v3330, 7
    %v3332 = vsub.s32 0, %v3331
    %v3333 = vrot.slane %v53, %v3332
    %v3335 = vsel %vm70, %v3328, 0
    %v3338 = vsel %vm70, %v3329, 0
    %3340 = vmatprep.subr.mxu0 0.0
    %3341 = vmatpush1.msra.mxu0 %v25
    %3342 = vmatprep.subr.mxu0 0.0
    %3343 = vmatpush1.msra.mxu0 %v26
    %3344 = vmatprep.subr.mxu0 0.0
    %3345 = vmatpush1.msra.mxu0 %v27
    %3346 = vmatprep.subr.mxu0 0.0
    %3347 = vmatpush1.msra.mxu0 %v28
    %3348 = vmatprep.subr.mxu0 0.0
    %3349 = vmatpush1.msra.mxu0 0.0
    %3350 = vmatprep.subr.mxu0 0.0
    %3351 = vmatpush1.msra.mxu0 0.0
    %3352 = vmatprep.subr.mxu0 0.0
    %3353 = vmatpush1.msra.mxu0 0.0
    %3354 = vmatprep.subr.mxu0 0.0
    %3355 = vmatpush1.msra.mxu0 0.0
    %3356 = vmatprep.subr.mxu0 0.0
    %3357 = vmatpush1.msra.mxu0 0.0
    %3358 = vmatprep.subr.mxu0 0.0
    %3359 = vmatpush1.msra.mxu0 0.0
    %3360 = vmatprep.subr.mxu0 0.0
    %3361 = vmatpush1.msra.mxu0 0.0
    %3362 = vmatprep.subr.mxu0 0.0
    %3363 = vmatpush1.msra.mxu0 0.0
    %3364 = vmatprep.subr.mxu0 0.0
    %3365 = vmatpush1.msra.mxu0 0.0
    %3366 = vmatprep.subr.mxu0 0.0
    %3367 = vmatpush1.msra.mxu0 0.0
    %3368 = vmatprep.subr.mxu0 0.0
    %3369 = vmatpush1.msra.mxu0 0.0
    %3370 = vmatprep.subr.mxu0 0.0
    %3371 = vmatpush1.msra.mxu0 0.0
    %3372 = vmatprep.subr.mxu0 0.0
    %3373 = vmatpush1.msra.mxu0 0.0
    %3374 = vmatprep.subr.mxu0 0.0
    %3375 = vmatpush1.msra.mxu0 0.0
    %3376 = vmatprep.subr.mxu0 0.0
    %3377 = vmatpush1.msra.mxu0 0.0
    %3378 = vmatprep.subr.mxu0 0.0
    %3379 = vmatpush1.msra.mxu0 0.0
    %3380 = vmatprep.subr.mxu0 0.0
    %3381 = vmatpush1.msra.mxu0 0.0
    %3382 = vmatprep.subr.mxu0 0.0
    %3383 = vmatpush1.msra.mxu0 0.0
    %3384 = vmatprep.subr.mxu0 0.0
    %3385 = vmatpush1.msra.mxu0 0.0
    %3386 = vmatprep.subr.mxu0 0.0
    %3387 = vmatpush1.msra.mxu0 0.0
    %3388 = vmatprep.subr.mxu0 0.0
    %3389 = vmatpush1.msra.mxu0 0.0
    %3390 = vmatprep.subr.mxu0 0.0
    %3391 = vmatpush1.msra.mxu0 0.0
    %3392 = vmatprep.subr.mxu0 0.0
    %3393 = vmatpush1.msra.mxu0 0.0
    %3394 = vmatprep.subr.mxu0 0.0
    %3395 = vmatpush1.msra.mxu0 0.0
    %3396 = vmatprep.subr.mxu0 0.0
    %3397 = vmatpush1.msra.mxu0 0.0
    %3398 = vmatprep.subr.mxu0 0.0
    %3399 = vmatpush1.msra.mxu0 0.0
    %3400 = vmatprep.subr.mxu0 0.0
    %3401 = vmatpush1.msra.mxu0 0.0
    %3402 = vmatprep.subr.mxu0 0.0
    %3403 = vmatpush1.msra.mxu0 0.0
    %3404 = vmatprep.mubr.f32.mxu0 0.0
    %3405 = vmatmul.mubr.f32.gmra.mrb[0].mxu0 %v3335
    %v3406 = vpop.f32.mrb[0].mxu0
    %v3407 = vadd.f32 %v3333, %v3406
    %v3408 = vpop.f32.mrb[0].mxu0
    %3409 = vmatprep.mubr.f32.mxu0 0.0
    %3410 = vmatmul.mubr.f32.gmra.mrb[0].mxu0 %v3338
    %v3411 = vpop.f32.mrb[0].mxu0
    %v3412 = vadd.f32 %v3333, %v3411
    %v3413 = vpop.f32.mrb[0].mxu0
    %3414 = vdwg.mxu0
    %v3415 = vmax.f32 %v3407, 0.0
    %v3416 = vmax.f32 %v3412, 0.0
    %v3417 = vlaneseq
    %v3418 = vshrl.u32 %v3417, 7
    %v3419 = vsub.s32 0, %v3418
    %v3420 = vrot.slane %v59, %v3419
    %3421 = vmatprep.subr.mxu0 0.0
    %3422 = vmatpush1.msra.mxu0 %v37
    %3423 = vmatprep.subr.mxu0 0.0
    %3424 = vmatpush1.msra.mxu0 %v38
    %3425 = vmatprep.subr.mxu0 0.0
    %3426 = vmatpush1.msra.mxu0 %v39
    %3427 = vmatprep.subr.mxu0 0.0
    %3428 = vmatpush1.msra.mxu0 %v40
    %3429 = vmatprep.subr.mxu0 0.0
    %3430 = vmatpush1.msra.mxu0 %v41
    %3431 = vmatprep.subr.mxu0 0.0
    %3432 = vmatpush1.msra.mxu0 %v42
    %3433 = vmatprep.subr.mxu0 0.0
    %3434 = vmatpush1.msra.mxu0 %v43
    %3435 = vmatprep.subr.mxu0 0.0
    %3436 = vmatpush1.msra.mxu0 %v44
    %3437 = vmatprep.subr.mxu0 0.0
    %3438 = vmatpush1.msra.mxu0 %v45
    %3439 = vmatprep.subr.mxu0 0.0
    %3440 = vmatpush1.msra.mxu0 %v46
    %3441 = vmatprep.subr.mxu0 0.0
    %3442 = vmatpush1.msra.mxu0 %v47
    %3443 = vmatprep.subr.mxu0 0.0
    %3444 = vmatpush1.msra.mxu0 %v48
    %3445 = vmatprep.subr.mxu0 0.0
    %3446 = vmatpush1.msra.mxu0 %v49
    %3447 = vmatprep.subr.mxu0 0.0
    %3448 = vmatpush1.msra.mxu0 %v50
    %3449 = vmatprep.subr.mxu0 0.0
    %3450 = vmatpush1.msra.mxu0 %v51
    %3451 = vmatprep.subr.mxu0 0.0
    %3452 = vmatpush1.msra.mxu0 %v52
    %3453 = vmatprep.subr.mxu0 0.0
    %3454 = vmatpush1.msra.mxu0 0.0
    %3455 = vmatprep.subr.mxu0 0.0
    %3456 = vmatpush1.msra.mxu0 0.0
    %3457 = vmatprep.subr.mxu0 0.0
    %3458 = vmatpush1.msra.mxu0 0.0
    %3459 = vmatprep.subr.mxu0 0.0
    %3460 = vmatpush1.msra.mxu0 0.0
    %3461 = vmatprep.subr.mxu0 0.0
    %3462 = vmatpush1.msra.mxu0 0.0
    %3463 = vmatprep.subr.mxu0 0.0
    %3464 = vmatpush1.msra.mxu0 0.0
    %3465 = vmatprep.subr.mxu0 0.0
    %3466 = vmatpush1.msra.mxu0 0.0
    %3467 = vmatprep.subr.mxu0 0.0
    %3468 = vmatpush1.msra.mxu0 0.0
    %3469 = vmatprep.subr.mxu0 0.0
    %3470 = vmatpush1.msra.mxu0 0.0
    %3471 = vmatprep.subr.mxu0 0.0
    %3472 = vmatpush1.msra.mxu0 0.0
    %3473 = vmatprep.subr.mxu0 0.0
    %3474 = vmatpush1.msra.mxu0 0.0
    %3475 = vmatprep.subr.mxu0 0.0
    %3476 = vmatpush1.msra.mxu0 0.0
    %3477 = vmatprep.subr.mxu0 0.0
    %3478 = vmatpush1.msra.mxu0 0.0
    %3479 = vmatprep.subr.mxu0 0.0
    %3480 = vmatpush1.msra.mxu0 0.0
    %3481 = vmatprep.subr.mxu0 0.0
    %3482 = vmatpush1.msra.mxu0 0.0
    %3483 = vmatprep.subr.mxu0 0.0
    %3484 = vmatpush1.msra.mxu0 0.0
    %3485 = vmatprep.mubr.f32.mxu0 0.0
    %3486 = vmatmul.mubr.f32.gmra.mrb[0].mxu0 %v3415
    %v3487 = vpop.f32.mrb[0].mxu0
    %v3488 = vadd.f32 %v3420, %v3487
    %v3489 = vpop.f32.mrb[0].mxu0
    %3490 = vmatprep.mubr.f32.mxu0 0.0
    %3491 = vmatmul.mubr.f32.gmra.mrb[0].mxu0 %v3416
    %v3492 = vpop.f32.mrb[0].mxu0
    %v3493 = vadd.f32 %v3420, %v3492
    %v3494 = vpop.f32.mrb[0].mxu0
    %3495 = vdwg.mxu0
    %v3496 = vadd.f32 %v3328, %v3488
    %v3497 = vadd.f32 %v3329, %v3493
    %v3498 = vsel %vm70, %v3496, 0.0
    %3499 = vadd.xlane.f32.xlu0 %v3498
    %v3500 = vpop.xlane.xlu0 %3499
    %v3501 = vsel %vm70, %v3497, 0.0
    %3502 = vadd.xlane.f32.xlu0 %v3501
    %v3503 = vpop.xlane.xlu0 %3502
    %v3504 = vmul.f32 %v3500, %v1620
    %v3505 = vmul.f32 %v3503, %v1620
    %v3506 = vsub.f32 %v3496, %v3504
    %v3507 = vsub.f32 %v3497, %v3505
    %v3508 = vmul.f32 %v3506, %v3506
    %v3509 = vmul.f32 %v3507, %v3507
    %v3510 = vsel %vm70, %v3508, 0.0
    %3511 = vadd.xlane.f32.xlu0 %v3510
    %v3512 = vpop.xlane.xlu0 %3511
    %v3513 = vsel %vm70, %v3509, 0.0
    %3514 = vadd.xlane.f32.xlu0 %v3513
    %v3515 = vpop.xlane.xlu0 %3514
    %v3516 = vmul.f32 %v3512, %v1620
    %v3517 = vmul.f32 %v3515, %v1620
    %v3518 = vadd.f32 %v3516, 1e-05
    %v3519 = vadd.f32 %v3517, 1e-05
    %v3520 = vrsqrt.pop %v3518
    %v3521 = vrsqrt.pop %v3519
    %v3522 = vmul.f32 %v3506, %v3520
    %v3523 = vmul.f32 %v3507, %v3521
    %v3524 = vlaneseq
    %v3525 = vshrl.u32 %v3524, 7
    %v3526 = vsub.s32 0, %v3525
    %v3527 = vrot.slane %v64, %v3526
    %v3528 = vmul.f32 %v3522, %v3527
    %v3529 = vmul.f32 %v3523, %v3527
    %v3530 = vlaneseq
    %v3531 = vshrl.u32 %v3530, 7
    %v3532 = vsub.s32 0, %v3531
    %v3533 = vrot.slane %v65, %v3532
    %v3534 = vadd.f32 %v3528, %v3533
    %v3535 = vadd.f32 %v3529, %v3533
    %3536 = vst.msk [vmem:[#allocation2] sm:$0xff] %vm70, %v3534
    %3537 = vst.msk [vmem:[#allocation2 + $0x8] sm:$0xff] %vm70, %v3535
    // Predicated region
    $region22: #{tpu_custom_call.1} parent=1 // pred_check
      _
    $region23: #{tpu_custom_call.1} parent=1 // pred_check_branch
      %3539 = sbr.rel (0) target = $region25
    $region24: #{tpu_custom_call.1} parent=1 // pred_region
      %s3541 = ssub.s32 256, 256
      %3542 = vsyncadd [#allocation3], %s3541
      %s3543 = sshll.u32 [#allocation2], 4
      %s3544 = int_to_ptr.vmem [resolvable:$true] %s3543
      %3549 = dma.vmem_to_hbm [thread:$0]  %s3544, 256, %s5, [#allocation3], 128, 128, 8
    $region25: #{tpu_custom_call.1} parent=1 // pred_fallthru
      _
    // Predicated region
    $region26: #{tpu_custom_call.1} parent=1 // pred_check
      _
    $region27: #{tpu_custom_call.1} parent=1 // pred_check_branch
      %3551 = sbr.rel (0) target = $region29
    $region28: #{tpu_custom_call.1} parent=1 // pred_region
      %3552 = dma.done [#allocation3], 256
    $region29: #{tpu_custom_call.1} parent=1 // pred_fallthru
      _
    %3553 = vsyncpa [#allocation3], 1

</llo_original>
